<compile_context>
chip_gen: v5e
topology: v5e:2x2
jax: 0.10.0
libtpu: 0.0.40
codegen_flags: <defaults>
</compile_context>

<pallas_src>
import functools
import math

import jax
import jax.numpy as jnp
import numpy as np
from jax.experimental import pallas as pl
from jax.experimental.pallas import tpu as pltpu

# ----------------------------- config --------------------------------------
NUM_LABELS = 4        # L
FMAP_DIM = 32         # C (feature_map_dim)
STYLE_DIM = 32        # S
ATT_DIM = 32          # A (attention_latent_dim)
NUM_HEADS = 2
KERNEL_SIZE = 3
HIDDEN_DIM = 128      # SegMapEncoder hidden dim (hard-coded in reference)
LR_MUL = 1.0
LEAK = 0.2
EPS = 1e-5            # InstanceNorm2d default eps

# The attention mask is a nearest-interpolated label map (hard one-hot per
# token); under that guarantee the masked softmax collapses exactly to the
# mask.  Set False to run the general masked multi-head path (soft masks).
SEG_MASK_IS_HARD_ONE_HOT = True


# =============================== fused kernel ===============================
def scam_fused_kernel(x_ref, seg_ref, style_ref, noise_ref, pe_ref, edge_ref,
                      fc1w_ref, fc1b_ref, fc2w_ref, fc2b_ref,
                      wq_ref, bq_ref, wk_ref, bk_ref, wv_ref, bv_ref,
                      wo_ref, bo_ref, wgb_ref, bgb_ref,
                      c1w_ref, c1b_ref, c2w_ref, c2b_ref,
                      alpha_ref, nv2_ref,
                      out_ref, so_ref, *, H, W, hard_one_hot):
    """Whole SCAMModulation forward for one batch element.

    Matmul-heavy middle section is token-major (N, C); x, InstanceNorm and the
    final store are channel-major (C, N) = native NCHW token layout."""
    f32, bf16 = jnp.float32, jnp.bfloat16
    N = H * W
    C, A, L, HD = FMAP_DIM, ATT_DIM, NUM_LABELS, HIDDEN_DIM
    TOP, BOT = 2 * W, 2 * W                 # zero halo rows on the token axis

    seg = seg_ref[...]                                                  # (N, L)

    # ------------------- fc_itl (simplex image->latent) ---------------------
    st = style_ref[...]                                                 # (L, S)
    h1 = jnp.dot(st.astype(bf16), fc1w_ref[...],
                 preferred_element_type=f32) + fc1b_ref[...]
    h1 = jnp.maximum(h1, LEAK * h1)                                     # LeakyReLU(0.2)
    s_out = jnp.dot(h1.astype(bf16), fc2w_ref[...],
                    preferred_element_type=f32) + fc2b_ref[...]         # (L, S)
    so_ref[...] = s_out
    s_out_b = s_out.astype(bf16)

    # ------------- masked multi-head cross attention (latent_to_image) ------
    v = jnp.dot(s_out_b, wv_ref[...], preferred_element_type=f32) + bv_ref[...]  # (L, A)
    if hard_one_hot:
        # Hard one-hot mask: per-head masked softmax == seg exactly, so
        #   x_out = seg @ (v @ wo) + bo   (q/k/scores/softmax are dead code).
        vwo = jnp.dot(v.astype(bf16), wo_ref[...], preferred_element_type=f32)   # (L, C)
        x_out = jnp.dot(seg.astype(bf16), vwo.astype(bf16),
                        preferred_element_type=f32) + bo_ref[...]                # (N, C)
    else:
        # General soft-mask path (per-head masked softmax).
        x_nc = x_ref[...].T + pe_ref[...]                               # (N, C)
        q = jnp.dot(x_nc.astype(bf16), wq_ref[...],
                    preferred_element_type=f32) + bq_ref[...]           # (N, A)
        k = jnp.dot(s_out_b, wk_ref[...], preferred_element_type=f32) + bk_ref[...]
        dh = A // NUM_HEADS
        scale = 1.0 / math.sqrt(dh)
        x_out = jnp.zeros((N, C), f32)
        for hh in range(NUM_HEADS):
            sl = slice(hh * dh, (hh + 1) * dh)
            sc = jax.lax.dot_general(q[:, sl].astype(bf16), k[:, sl].astype(bf16),
                                     (((1,), (1,)), ((), ())),
                                     preferred_element_type=f32) * scale
            sc = jnp.where(seg > 0.5, sc, -1e9)
            pr = jnp.exp(sc - jnp.max(sc, axis=-1, keepdims=True))
            pr = pr * pl.reciprocal(jnp.sum(pr, axis=-1, keepdims=True), approx=True)
            # (p @ v_h) @ wo_h == p @ (v_h @ wo_h): no per-head concat needed.
            vwo_h = jnp.dot(v[:, sl].astype(bf16), wo_ref[...][sl, :],
                            preferred_element_type=f32)
            x_out = x_out + jnp.dot(pr.astype(bf16), vwo_h.astype(bf16),
                                    preferred_element_type=f32)
        x_out = x_out + bo_ref[...]

    # mlp_lti_gamma | mlp_lti_beta as one lane-dense matmul -> (N, 2C)
    gb = jnp.dot(x_out.astype(bf16), wgb_ref[...],
                 preferred_element_type=f32) + bgb_ref[...]

    # --------------------------- SegMapEncoder -------------------------------
    # 3x3 SAME convs: the 9 taps are static slices of a zero-row-padded copy of
    # the token-major input (dy boundary handled by the zero halo); only the
    # dx=+/-1 wrap masks remain (precomputed in the wrapper).  Taps are lane-
    # concatenated and contracted in ONE long-K MXU matmul per conv.
    not_left = edge_ref[:, 0:1] > 0.5       # token has a valid left neighbour
    not_right = edge_ref[:, 1:2] > 0.5      # token has a valid right neighbour

    def conv_taps(center):                  # (N, cin) -> (N, 9*cin)
        cin = center.shape[1]
        pad = jnp.concatenate([jnp.zeros((TOP, cin), center.dtype), center,
                               jnp.zeros((BOT, cin), center.dtype)], axis=0)
        cols = []
        for dy in (-1, 0, 1):
            for dx in (-1, 0, 1):
                start = TOP + dy * W + dx
                t = pad[start:start + N, :]
                if dx == -1:
                    t = jnp.where(not_left, t, 0.0)
                elif dx == 1:
                    t = jnp.where(not_right, t, 0.0)
                cols.append(t)
        return jnp.concatenate(cols, axis=1)

    taps1 = conv_taps(seg)                                              # (N, 9L)
    actv = jnp.dot(taps1.astype(bf16), c1w_ref[...],
                   preferred_element_type=f32) + c1b_ref[...]
    actv = jnp.maximum(actv, 0.0)                                       # ReLU, (N, HD)
    taps2 = conv_taps(actv)                                             # (N, 9*HD)
    gbs = jnp.dot(taps2.astype(bf16), c2w_ref[...],
                  preferred_element_type=f32) + c2b_ref[...]            # (N, 2C)

    # --------- InstanceNorm (channel-major) + blended modulation + noise -----
    x_cn = x_ref[...]                                                   # (C, N)
    mean = jnp.mean(x_cn, axis=1, keepdims=True)
    cent = x_cn - mean
    var = jnp.mean(cent * cent, axis=1, keepdims=True)
    normalized = cent * jax.lax.rsqrt(var + EPS)                        # (C, N)

    # blended gamma|beta (+ noise folded into the beta half), then ONE square
    # (N, 2C) transpose so the elementwise tail and the store are lane-dense.
    gb_f = (alpha_ref[...] * gb + (1.0 - alpha_ref[...]) * gbs
            + noise_ref[...] * nv2_ref[...])                            # (N, 2C)
    gb_cn = gb_f.T                                                      # (2C, N)
    out = (1.0 + gb_cn[:C, :]) * normalized + gb_cn[C:, :]              # (C, N)
    out_ref[...] = jnp.maximum(out, LEAK * out)                         # LeakyReLU(0.2)


# ================================ glue ======================================
def sinusoidal_pos_encoding_2d(C, H, W):
    c_half = C // 2

    def enc_1d(length, dim):
        pos = jnp.arange(length, dtype=jnp.float32)[:, None]
        i = jnp.arange(dim // 2, dtype=jnp.float32)[None, :]
        freq = jnp.exp(-math.log(10000.0) * (2.0 * i) / dim)
        ang = pos * freq
        pe = jnp.zeros((length, dim), jnp.float32)
        pe = pe.at[:, 0::2].set(jnp.sin(ang)).at[:, 1::2].set(jnp.cos(ang))
        return pe

    pe_y = enc_1d(H, c_half)
    pe_x = enc_1d(W, C - c_half)
    pe = jnp.concatenate(
        [jnp.broadcast_to(pe_y[:, None, :], (H, W, c_half)),
         jnp.broadcast_to(pe_x[None, :, :], (H, W, C - c_half))], axis=-1)
    return jnp.transpose(pe, (2, 0, 1))          # (C, H, W)


def scam_modulation_forward(x, segmentation_map, style_codes, noise_spatial, params):
    """x: (B,C,H,W); segmentation_map: (B,L,H,W) already at feature-map
    resolution (nearest interpolation is the identity); style_codes: (B,L,S);
    noise_spatial: (B,W,H,1) ~ torch.randn in the reference code."""
    B, C, H, W = x.shape
    L = segmentation_map.shape[1]
    N = H * W
    S, A, HD = STYLE_DIM, ATT_DIM, HIDDEN_DIM
    p = params
    f32, bf16 = jnp.float32, jnp.bfloat16

    # x / output stay channel-major (C, N): reshape only, no transpose.
    x_cn = x.reshape(B, C, N)
    seg_nl = jnp.transpose(segmentation_map.reshape(B, L, N), (0, 2, 1))  # (B,N,L)
    noise_tok = jnp.transpose(noise_spatial[..., 0], (0, 2, 1)).reshape(B, N, 1)

    pe = sinusoidal_pos_encoding_2d(C, H, W)                              # (C,H,W)
    pe_nc = jnp.transpose(pe.reshape(C, N), (1, 0))                       # (N, C)

    # dx = +/-1 conv-tap validity masks, precomputed once (no in-kernel //,%).
    w_idx = jnp.arange(N, dtype=jnp.int32) % W
    edge = jnp.stack([w_idx > 0, w_idx < W - 1], axis=1).astype(f32)      # (N, 2)

    # gamma|beta linear weights fused lane-wise; conv weights as tap-major
    # slabs: rows [o*Cin:(o+1)*Cin] = (Cin, Cout) matrix of tap o = ky*3 + kx
    # (matches the (dy, dx) loop order in the kernel).
    wgb = jnp.concatenate([p['wg'], p['wb']], axis=1).astype(bf16)        # (C, 2C)
    bgb = jnp.concatenate([p['bg'], p['bb']], axis=1)                     # (1, 2C)
    c1w = jnp.transpose(p['conv_shared_w'], (2, 3, 1, 0)).reshape(9 * L, HD).astype(bf16)
    c2wg = jnp.transpose(p['conv_gamma_w'], (2, 3, 1, 0)).reshape(9, HD, C)
    c2wb = jnp.transpose(p['conv_beta_w'], (2, 3, 1, 0)).reshape(9, HD, C)
    c2w = jnp.concatenate([c2wg, c2wb], axis=-1).reshape(9 * HD, 2 * C).astype(bf16)
    c1b = p['conv_shared_b'].reshape(1, HD)
    c2b = jnp.concatenate([p['conv_gamma_b'].reshape(1, C),
                           p['conv_beta_b'].reshape(1, C)], axis=1)       # (1, 2C)

    # blending alphas as a (1, 2C) lane row (gamma half | beta half); noise_var
    # applies only to the beta half so it folds into the same blend.
    ga = jax.nn.sigmoid(p['blending_gamma'][0] * LR_MUL)
    ba = jax.nn.sigmoid(p['blending_beta'][0] * LR_MUL)
    alpha_row = jnp.concatenate([jnp.broadcast_to(ga, (1, C)),
                                 jnp.broadcast_to(ba, (1, C))], axis=1).astype(f32)
    nv2 = jnp.concatenate([jnp.zeros((1, C), f32),
                           p['noise_var'].reshape(1, C) * LR_MUL], axis=1)

    def batched(shape):
        return pl.BlockSpec((None,) + shape, lambda b: (b,) + (0,) * len(shape))

    def const(shape):
        return pl.BlockSpec(shape, lambda b: (0,) * len(shape))

    # (array, spec) pairs in the exact kernel-argument order.
    inputs = [
        (x_cn,                        batched((C, N))),
        (seg_nl,                      batched((N, L))),
        (style_codes,                 batched((L, S))),
        (noise_tok,                   batched((N, 1))),
        (pe_nc,                       const((N, C))),
        (edge,                        const((N, 2))),
        (p['fc1_w'].astype(bf16),     const((S, S))),
        (p['fc1_b'],                  const((1, S))),
        (p['fc2_w'].astype(bf16),     const((S, S))),
        (p['fc2_b'],                  const((1, S))),
        (p['wq'].astype(bf16),        const((C, A))),
        (p['bq'],                     const((1, A))),
        (p['wk'].astype(bf16),        const((S, A))),
        (p['bk'],                     const((1, A))),
        (p['wv'].astype(bf16),        const((S, A))),
        (p['bv'],                     const((1, A))),
        (p['wo'].astype(bf16),        const((A, C))),
        (p['bo'],                     const((1, C))),
        (wgb,                         const((C, 2 * C))),
        (bgb,                         const((1, 2 * C))),
        (c1w,                         const((9 * L, HD))),
        (c1b,                         const((1, HD))),
        (c2w,                         const((9 * HD, 2 * C))),
        (c2b,                         const((1, 2 * C))),
        (alpha_row,                   const((1, 2 * C))),
        (nv2,                         const((1, 2 * C))),
    ]
    arrays = [a for a, _ in inputs]
    in_specs = [s for _, s in inputs]

    kernel = functools.partial(scam_fused_kernel, H=H, W=W,
                               hard_one_hot=SEG_MASK_IS_HARD_ONE_HOT)

    out_cn, style_out = pl.pallas_call(
        kernel,
        grid=(B,),
        in_specs=in_specs,
        out_specs=(batched((C, N)), batched((L, S))),
        out_shape=(jax.ShapeDtypeStruct((B, C, N), jnp.float32),
                   jax.ShapeDtypeStruct((B, L, S), jnp.float32)),
        compiler_params=pltpu.CompilerParams(dimension_semantics=("parallel",)),
        # TODO(synk): for large N add a token-tile grid axis and an explicit
        # vmem_limit_bytes (v7x only has 64 MiB VMEM).
    )(*arrays)

    # channel-major kernel output already matches NCHW: reshape only.
    return out_cn.reshape(B, C, H, W), style_out


# ============================== parameters ==================================
def init_params(key):
    ks = list(jax.random.split(key, 24))
    it = iter(ks)

    def w(shape, scale=0.05):
        return scale * jax.random.normal(next(it), shape, dtype=jnp.float32)

    S, C, A, L, K, HD = STYLE_DIM, FMAP_DIM, ATT_DIM, NUM_LABELS, KERNEL_SIZE, HIDDEN_DIM
    return {
        'fc1_w': w((S, S)), 'fc1_b': w((1, S)),
        'fc2_w': w((S, S)), 'fc2_b': w((1, S)),
        'wq': w((C, A)), 'bq': w((1, A)),
        'wk': w((S, A)), 'bk': w((1, A)),
        'wv': w((S, A)), 'bv': w((1, A)),
        'wo': w((A, C)), 'bo': w((1, C)),
        'wg': w((C, C)), 'bg': w((1, C)),
        'wb': w((C, C)), 'bb': w((1, C)),
        'conv_shared_w': w((HD, L, K, K)), 'conv_shared_b': w((HD,)),
        'conv_gamma_w': w((C, HD, K, K)), 'conv_gamma_b': w((C,)),
        'conv_beta_w': w((C, HD, K, K)), 'conv_beta_b': w((C,)),
        'blending_gamma': jnp.zeros((1,), jnp.float32),
        'blending_beta': jnp.zeros((1,), jnp.float32),
        # nn.Parameter(torch.zeros(C)) in the module; randomized here so the
        # noise path is actually exercised by the numerical check.
        'noise_var': w((FMAP_DIM,)),
    }


# ====================== pure-JAX reference (for checking) ===================
def reference_forward(x, seg, style, noise_spatial, p):
    B, C, H, W = x.shape
    L = seg.shape[1]
    N = H * W
    pe = sinusoidal_pos_encoding_2d(C, H, W)
    x_enc = jnp.transpose((x + pe[None]).reshape(B, C, N), (0, 2, 1))
    mask_t = jnp.transpose(seg.reshape(B, L, N), (0, 2, 1))

    leaky = lambda t: jnp.where(t > 0, t, LEAK * t)
    h = leaky(style @ p['fc1_w'] + p['fc1_b'])
    style_out = h @ p['fc2_w'] + p['fc2_b']

    q = x_enc @ p['wq'] + p['bq']
    k = style_out @ p['wk'] + p['bk']
    v = style_out @ p['wv'] + p['bv']
    dh = ATT_DIM // NUM_HEADS
    outs = []
    for hh in range(NUM_HEADS):
        sl = slice(hh * dh, (hh + 1) * dh)
        sc = jnp.einsum('bnd,bld->bnl', q[..., sl], k[..., sl]) / math.sqrt(dh)
        sc = jnp.where(mask_t > 0.5, sc, -1e9)
        a = jax.nn.softmax(sc, axis=-1)
        outs.append(jnp.einsum('bnl,bld->bnd', a, v[..., sl]))
    x_out = jnp.concatenate(outs, -1) @ p['wo'] + p['bo']
    gamma_lti = jnp.transpose(x_out @ p['wg'] + p['bg'], (0, 2, 1)).reshape(B, C, H, W)
    beta_lti = jnp.transpose(x_out @ p['wb'] + p['bb'], (0, 2, 1)).reshape(B, C, H, W)

    def conv(xi, wi, bi):
        y = jax.lax.conv_general_dilated(xi, wi, (1, 1), 'SAME',
                                         dimension_numbers=('NCHW', 'OIHW', 'NCHW'))
        return y + bi[None, :, None, None]

    actv = jnp.maximum(conv(seg, p['conv_shared_w'], p['conv_shared_b']), 0.0)
    gamma_seg = conv(actv, p['conv_gamma_w'], p['conv_gamma_b'])
    beta_seg = conv(actv, p['conv_beta_w'], p['conv_beta_b'])

    mean = x.mean(axis=(2, 3), keepdims=True)
    var = ((x - mean) ** 2).mean(axis=(2, 3), keepdims=True)
    normalized = (x - mean) / jnp.sqrt(var + EPS)

    ga = jax.nn.sigmoid(p['blending_gamma'][0] * LR_MUL)
    ba = jax.nn.sigmoid(p['blending_beta'][0] * LR_MUL)
    gamma = ga * gamma_lti + (1.0 - ga) * gamma_seg
    beta = ba * beta_lti + (1.0 - ba) * beta_seg
    out = (1.0 + gamma) * normalized + beta

    noise = jnp.transpose(p['noise_var'][None, None, None, :] * LR_MUL * noise_spatial,
                          (0, 3, 2, 1))
    out = leaky(out + noise)
    return out, style_out


# ================================= main =====================================
if __name__ == "__main__":
    key = jax.random.PRNGKey(0)
    kx, kseg, kstyle, knoise, kparams = jax.random.split(key, 5)

    B, H, W = 2, 8, 8
    x = jax.random.normal(kx, (B, FMAP_DIM, H, W), dtype=jnp.float32)
    labels = jax.random.randint(kseg, (B, H, W), 0, NUM_LABELS)
    seg = jax.nn.one_hot(labels, NUM_LABELS, axis=1, dtype=jnp.float32)  # (B, L, H, W)
    style = jax.random.normal(kstyle, (B, NUM_LABELS, STYLE_DIM), dtype=jnp.float32)
    noise_spatial = jax.random.normal(knoise, (B, W, H, 1), dtype=jnp.float32)
    params = init_params(kparams)

    out, style_out = scam_modulation_forward(x, seg, style, noise_spatial, params)
    out = jax.block_until_ready(out)
    style_out = jax.block_until_ready(style_out)

    ref_out, ref_style = reference_forward(x, seg, style, noise_spatial, params)
    np.testing.assert_allclose(np.asarray(out), np.asarray(ref_out),
                               rtol=1e-2, atol=1e-2)
    np.testing.assert_allclose(np.asarray(style_out), np.asarray(ref_style),
                               rtol=1e-2, atol=1e-2)
    print("KERNEL_OK")
</pallas_src>

<mosaic_0001>
module attributes {stable_mosaic.version = 11 : i64} {
  func.func @scam_fused_kernel(%arg0: i32, %arg1: memref<1x32x64xf32, #tpu.memory_space<vmem>>, %arg2: memref<1x64x4xf32, #tpu.memory_space<vmem>>, %arg3: memref<1x4x32xf32, #tpu.memory_space<vmem>>, %arg4: memref<1x64x1xf32, #tpu.memory_space<vmem>>, %arg5: memref<64x32xf32, #tpu.memory_space<vmem>>, %arg6: memref<64x2xf32, #tpu.memory_space<vmem>>, %arg7: memref<32x32xbf16, #tpu.memory_space<vmem>>, %arg8: memref<1x32xf32, #tpu.memory_space<vmem>>, %arg9: memref<32x32xbf16, #tpu.memory_space<vmem>>, %arg10: memref<1x32xf32, #tpu.memory_space<vmem>>, %arg11: memref<32x32xbf16, #tpu.memory_space<vmem>>, %arg12: memref<1x32xf32, #tpu.memory_space<vmem>>, %arg13: memref<32x32xbf16, #tpu.memory_space<vmem>>, %arg14: memref<1x32xf32, #tpu.memory_space<vmem>>, %arg15: memref<32x32xbf16, #tpu.memory_space<vmem>>, %arg16: memref<1x32xf32, #tpu.memory_space<vmem>>, %arg17: memref<32x32xbf16, #tpu.memory_space<vmem>>, %arg18: memref<1x32xf32, #tpu.memory_space<vmem>>, %arg19: memref<32x64xbf16, #tpu.memory_space<vmem>>, %arg20: memref<1x64xf32, #tpu.memory_space<vmem>>, %arg21: memref<36x128xbf16, #tpu.memory_space<vmem>>, %arg22: memref<1x128xf32, #tpu.memory_space<vmem>>, %arg23: memref<1152x64xbf16, #tpu.memory_space<vmem>>, %arg24: memref<1x64xf32, #tpu.memory_space<vmem>>, %arg25: memref<1x64xf32, #tpu.memory_space<vmem>>, %arg26: memref<1x64xf32, #tpu.memory_space<vmem>>, %arg27: memref<1x32x64xf32, #tpu.memory_space<vmem>>, %arg28: memref<1x4x32xf32, #tpu.memory_space<vmem>>) attributes {dimension_semantics = [#tpu.dimension_semantics<parallel>], iteration_bounds = array<i64: 2>, scalar_prefetch = 0 : i64, scratch_operands = 0 : i64, tpu.core_type = #tpu.core_type<tc>, window_params = [{transform_indices = @transform_0, window_bounds = array<i64: 1, 32, 64>}, {transform_indices = @transform_1, window_bounds = array<i64: 1, 64, 4>}, {transform_indices = @transform_2, window_bounds = array<i64: 1, 4, 32>}, {transform_indices = @transform_3, window_bounds = array<i64: 1, 64, 1>}, {pipeline_mode = #tpu.pipeline_mode<synchronous>, transform_indices = @transform_4, window_bounds = array<i64: 64, 32>}, {pipeline_mode = #tpu.pipeline_mode<synchronous>, transform_indices = @transform_5, window_bounds = array<i64: 64, 2>}, {pipeline_mode = #tpu.pipeline_mode<synchronous>, transform_indices = @transform_6, window_bounds = array<i64: 32, 32>}, {pipeline_mode = #tpu.pipeline_mode<synchronous>, transform_indices = @transform_7, window_bounds = array<i64: 1, 32>}, {pipeline_mode = #tpu.pipeline_mode<synchronous>, transform_indices = @transform_8, window_bounds = array<i64: 32, 32>}, {pipeline_mode = #tpu.pipeline_mode<synchronous>, transform_indices = @transform_9, window_bounds = array<i64: 1, 32>}, {pipeline_mode = #tpu.pipeline_mode<synchronous>, transform_indices = @transform_10, window_bounds = array<i64: 32, 32>}, {pipeline_mode = #tpu.pipeline_mode<synchronous>, transform_indices = @transform_11, window_bounds = array<i64: 1, 32>}, {pipeline_mode = #tpu.pipeline_mode<synchronous>, transform_indices = @transform_12, window_bounds = array<i64: 32, 32>}, {pipeline_mode = #tpu.pipeline_mode<synchronous>, transform_indices = @transform_13, window_bounds = array<i64: 1, 32>}, {pipeline_mode = #tpu.pipeline_mode<synchronous>, transform_indices = @transform_14, window_bounds = array<i64: 32, 32>}, {pipeline_mode = #tpu.pipeline_mode<synchronous>, transform_indices = @transform_15, window_bounds = array<i64: 1, 32>}, {pipeline_mode = #tpu.pipeline_mode<synchronous>, transform_indices = @transform_16, window_bounds = array<i64: 32, 32>}, {pipeline_mode = #tpu.pipeline_mode<synchronous>, transform_indices = @transform_17, window_bounds = array<i64: 1, 32>}, {pipeline_mode = #tpu.pipeline_mode<synchronous>, transform_indices = @transform_18, window_bounds = array<i64: 32, 64>}, {pipeline_mode = #tpu.pipeline_mode<synchronous>, transform_indices = @transform_19, window_bounds = array<i64: 1, 64>}, {pipeline_mode = #tpu.pipeline_mode<synchronous>, transform_indices = @transform_20, window_bounds = array<i64: 36, 128>}, {pipeline_mode = #tpu.pipeline_mode<synchronous>, transform_indices = @transform_21, window_bounds = array<i64: 1, 128>}, {pipeline_mode = #tpu.pipeline_mode<synchronous>, transform_indices = @transform_22, window_bounds = array<i64: 1152, 64>}, {pipeline_mode = #tpu.pipeline_mode<synchronous>, transform_indices = @transform_23, window_bounds = array<i64: 1, 64>}, {pipeline_mode = #tpu.pipeline_mode<synchronous>, transform_indices = @transform_24, window_bounds = array<i64: 1, 64>}, {pipeline_mode = #tpu.pipeline_mode<synchronous>, transform_indices = @transform_25, window_bounds = array<i64: 1, 64>}, {transform_indices = @transform_26, window_bounds = array<i64: 1, 32, 64>}, {transform_indices = @transform_27, window_bounds = array<i64: 1, 4, 32>}]} {
    %c0 = arith.constant 0 : index
    %c0_0 = arith.constant 0 : index
    %c0_1 = arith.constant 0 : index
    %0 = vector.load %arg2[%c0, %c0_0, %c0_1] : memref<1x64x4xf32, #tpu.memory_space<vmem>>, vector<1x64x4xf32>
    %1 = vector.shape_cast %0 : vector<1x64x4xf32> to vector<64x4xf32>
    %c0_2 = arith.constant 0 : index
    %c0_3 = arith.constant 0 : index
    %c0_4 = arith.constant 0 : index
    %2 = vector.load %arg3[%c0_2, %c0_3, %c0_4] : memref<1x4x32xf32, #tpu.memory_space<vmem>>, vector<1x4x32xf32>
    %3 = vector.shape_cast %2 : vector<1x4x32xf32> to vector<4x32xf32>
    %4 = arith.truncf %3 : vector<4x32xf32> to vector<4x32xbf16>
    %c0_5 = arith.constant 0 : index
    %c0_6 = arith.constant 0 : index
    %5 = vector.load %arg7[%c0_5, %c0_6] : memref<32x32xbf16, #tpu.memory_space<vmem>>, vector<32x32xbf16>
    %cst = arith.constant dense<0.000000e+00> : vector<4x32xf32>
    %6 = tpu.matmul %4, %5, %cst {dimension_numbers = #tpu.dot_dimension_numbers<[1], [0], [0], [1], [0, 0, 1, 1], [], []>} : vector<4x32xbf16>, vector<32x32xbf16>, vector<4x32xf32> -> vector<4x32xf32>
    %c0_7 = arith.constant 0 : index
    %c0_8 = arith.constant 0 : index
    %7 = vector.load %arg8[%c0_7, %c0_8] : memref<1x32xf32, #tpu.memory_space<vmem>>, vector<1x32xf32>
    %8 = vector.broadcast %7 : vector<1x32xf32> to vector<4x32xf32>
    %9 = arith.addf %6, %8 : vector<4x32xf32>
    %cst_9 = arith.constant 2.000000e-01 : f32
    %10 = vector.broadcast %cst_9 : f32 to vector<4x32xf32>
    %11 = arith.mulf %10, %9 : vector<4x32xf32>
    %12 = arith.maximumf %9, %11 : vector<4x32xf32>
    %13 = arith.truncf %12 : vector<4x32xf32> to vector<4x32xbf16>
    %c0_10 = arith.constant 0 : index
    %c0_11 = arith.constant 0 : index
    %14 = vector.load %arg9[%c0_10, %c0_11] : memref<32x32xbf16, #tpu.memory_space<vmem>>, vector<32x32xbf16>
    %cst_12 = arith.constant dense<0.000000e+00> : vector<4x32xf32>
    %15 = tpu.matmul %13, %14, %cst_12 {dimension_numbers = #tpu.dot_dimension_numbers<[1], [0], [0], [1], [0, 0, 1, 1], [], []>} : vector<4x32xbf16>, vector<32x32xbf16>, vector<4x32xf32> -> vector<4x32xf32>
    %c0_13 = arith.constant 0 : index
    %c0_14 = arith.constant 0 : index
    %16 = vector.load %arg10[%c0_13, %c0_14] : memref<1x32xf32, #tpu.memory_space<vmem>>, vector<1x32xf32>
    %17 = vector.broadcast %16 : vector<1x32xf32> to vector<4x32xf32>
    %18 = arith.addf %15, %17 : vector<4x32xf32>
    %c0_15 = arith.constant 0 : index
    %c0_16 = arith.constant 0 : index
    %c0_17 = arith.constant 0 : index
    %19 = vector.load %arg28[%c0_15, %c0_16, %c0_17] : memref<1x4x32xf32, #tpu.memory_space<vmem>>, vector<1x4x32xf32>
    %20 = vector.shape_cast %19 : vector<1x4x32xf32> to vector<4x32xf32>
    %21 = vector.shape_cast %18 : vector<4x32xf32> to vector<1x4x32xf32>
    tpu.vector_store %arg28[%c0_15, %c0_16, %c0_17], %21 {strides = array<i32>} : memref<1x4x32xf32, #tpu.memory_space<vmem>>, vector<1x4x32xf32>,
    %22 = arith.truncf %18 : vector<4x32xf32> to vector<4x32xbf16>
    %c0_18 = arith.constant 0 : index
    %c0_19 = arith.constant 0 : index
    %23 = vector.load %arg15[%c0_18, %c0_19] : memref<32x32xbf16, #tpu.memory_space<vmem>>, vector<32x32xbf16>
    %cst_20 = arith.constant dense<0.000000e+00> : vector<4x32xf32>
    %24 = tpu.matmul %22, %23, %cst_20 {dimension_numbers = #tpu.dot_dimension_numbers<[1], [0], [0], [1], [0, 0, 1, 1], [], []>} : vector<4x32xbf16>, vector<32x32xbf16>, vector<4x32xf32> -> vector<4x32xf32>
    %c0_21 = arith.constant 0 : index
    %c0_22 = arith.constant 0 : index
    %25 = vector.load %arg16[%c0_21, %c0_22] : memref<1x32xf32, #tpu.memory_space<vmem>>, vector<1x32xf32>
    %26 = vector.broadcast %25 : vector<1x32xf32> to vector<4x32xf32>
    %27 = arith.addf %24, %26 : vector<4x32xf32>
    %28 = arith.truncf %27 : vector<4x32xf32> to vector<4x32xbf16>
    %c0_23 = arith.constant 0 : index
    %c0_24 = arith.constant 0 : index
    %29 = vector.load %arg17[%c0_23, %c0_24] : memref<32x32xbf16, #tpu.memory_space<vmem>>, vector<32x32xbf16>
    %cst_25 = arith.constant dense<0.000000e+00> : vector<4x32xf32>
    %30 = tpu.matmul %28, %29, %cst_25 {dimension_numbers = #tpu.dot_dimension_numbers<[1], [0], [0], [1], [0, 0, 1, 1], [], []>} : vector<4x32xbf16>, vector<32x32xbf16>, vector<4x32xf32> -> vector<4x32xf32>
    %31 = arith.truncf %1 : vector<64x4xf32> to vector<64x4xbf16>
    %32 = arith.truncf %30 : vector<4x32xf32> to vector<4x32xbf16>
    %cst_26 = arith.constant dense<0.000000e+00> : vector<64x32xf32>
    %33 = tpu.matmul %31, %32, %cst_26 {dimension_numbers = #tpu.dot_dimension_numbers<[1], [0], [0], [1], [0, 0, 1, 1], [], []>} : vector<64x4xbf16>, vector<4x32xbf16>, vector<64x32xf32> -> vector<64x32xf32>
    %c0_27 = arith.constant 0 : index
    %c0_28 = arith.constant 0 : index
    %34 = vector.load %arg18[%c0_27, %c0_28] : memref<1x32xf32, #tpu.memory_space<vmem>>, vector<1x32xf32>
    %35 = vector.broadcast %34 : vector<1x32xf32> to vector<64x32xf32>
    %36 = arith.addf %33, %35 : vector<64x32xf32>
    %37 = arith.truncf %36 : vector<64x32xf32> to vector<64x32xbf16>
    %c0_29 = arith.constant 0 : index
    %c0_30 = arith.constant 0 : index
    %38 = vector.load %arg19[%c0_29, %c0_30] : memref<32x64xbf16, #tpu.memory_space<vmem>>, vector<32x64xbf16>
    %cst_31 = arith.constant dense<0.000000e+00> : vector<64x64xf32>
    %39 = tpu.matmul %37, %38, %cst_31 {dimension_numbers = #tpu.dot_dimension_numbers<[1], [0], [0], [1], [0, 0, 1, 1], [], []>} : vector<64x32xbf16>, vector<32x64xbf16>, vector<64x64xf32> -> vector<64x64xf32>
    %c0_32 = arith.constant 0 : index
    %c0_33 = arith.constant 0 : index
    %40 = vector.load %arg20[%c0_32, %c0_33] : memref<1x64xf32, #tpu.memory_space<vmem>>, vector<1x64xf32>
    %41 = vector.broadcast %40 : vector<1x64xf32> to vector<64x64xf32>
    %42 = arith.addf %39, %41 : vector<64x64xf32>
    %c0_34 = arith.constant 0 : index
    %c0_35 = arith.constant 0 : index
    %43 = vector.load %arg6[%c0_34, %c0_35] : memref<64x2xf32, #tpu.memory_space<vmem>>, vector<64x1xf32>
    %cst_36 = arith.constant 5.000000e-01 : f32
    %44 = vector.broadcast %cst_36 : f32 to vector<64x1xf32>
    %45 = arith.cmpf ogt, %43, %44 : vector<64x1xf32>
    %c0_37 = arith.constant 0 : index
    %c1 = arith.constant 1 : index
    %46 = vector.load %arg6[%c0_37, %c1] : memref<64x2xf32, #tpu.memory_space<vmem>>, vector<64x1xf32>
    %cst_38 = arith.constant 5.000000e-01 : f32
    %47 = vector.broadcast %cst_38 : f32 to vector<64x1xf32>
    %48 = arith.cmpf ogt, %46, %47 : vector<64x1xf32>
    %cst_39 = arith.constant 0.000000e+00 : f32
    %49 = vector.broadcast %cst_39 : f32 to vector<16x4xf32>
    %cst_40 = arith.constant 0.000000e+00 : f32
    %50 = vector.broadcast %cst_40 : f32 to vector<16x4xf32>
    %51 = tpu.concatenate %49, %1, %50 in 0 : vector<16x4xf32>, vector<64x4xf32>, vector<16x4xf32> -> vector<96x4xf32>
    %52 = vector.extract_strided_slice %51 {offsets = [7, 0], sizes = [64, 4], strides = [1, 1]} : vector<96x4xf32> to vector<64x4xf32>
    %cst_41 = arith.constant 0.000000e+00 : f32
    %53 = vector.shape_cast %45 : vector<64x1xi1> to vector<64x1xi1>
    %54 = vector.broadcast %53 : vector<64x1xi1> to vector<64x4xi1>
    %55 = vector.broadcast %cst_41 : f32 to vector<64x4xf32>
    %56 = arith.select %54, %52, %55 : vector<64x4xi1>, vector<64x4xf32>
    %57 = vector.extract_strided_slice %51 {offsets = [8, 0], sizes = [64, 4], strides = [1, 1]} : vector<96x4xf32> to vector<64x4xf32>
    %58 = vector.extract_strided_slice %51 {offsets = [9, 0], sizes = [64, 4], strides = [1, 1]} : vector<96x4xf32> to vector<64x4xf32>
    %cst_42 = arith.constant 0.000000e+00 : f32
    %59 = vector.shape_cast %48 : vector<64x1xi1> to vector<64x1xi1>
    %60 = vector.broadcast %59 : vector<64x1xi1> to vector<64x4xi1>
    %61 = vector.broadcast %cst_42 : f32 to vector<64x4xf32>
    %62 = arith.select %60, %58, %61 : vector<64x4xi1>, vector<64x4xf32>
    %63 = vector.extract_strided_slice %51 {offsets = [15, 0], sizes = [64, 4], strides = [1, 1]} : vector<96x4xf32> to vector<64x4xf32>
    %cst_43 = arith.constant 0.000000e+00 : f32
    %64 = vector.shape_cast %45 : vector<64x1xi1> to vector<64x1xi1>
    %65 = vector.broadcast %64 : vector<64x1xi1> to vector<64x4xi1>
    %66 = vector.broadcast %cst_43 : f32 to vector<64x4xf32>
    %67 = arith.select %65, %63, %66 : vector<64x4xi1>, vector<64x4xf32>
    %68 = vector.extract_strided_slice %51 {offsets = [16, 0], sizes = [64, 4], strides = [1, 1]} : vector<96x4xf32> to vector<64x4xf32>
    %69 = vector.extract_strided_slice %51 {offsets = [17, 0], sizes = [64, 4], strides = [1, 1]} : vector<96x4xf32> to vector<64x4xf32>
    %cst_44 = arith.constant 0.000000e+00 : f32
    %70 = vector.shape_cast %48 : vector<64x1xi1> to vector<64x1xi1>
    %71 = vector.broadcast %70 : vector<64x1xi1> to vector<64x4xi1>
    %72 = vector.broadcast %cst_44 : f32 to vector<64x4xf32>
    %73 = arith.select %71, %69, %72 : vector<64x4xi1>, vector<64x4xf32>
    %74 = vector.extract_strided_slice %51 {offsets = [23, 0], sizes = [64, 4], strides = [1, 1]} : vector<96x4xf32> to vector<64x4xf32>
    %cst_45 = arith.constant 0.000000e+00 : f32
    %75 = vector.shape_cast %45 : vector<64x1xi1> to vector<64x1xi1>
    %76 = vector.broadcast %75 : vector<64x1xi1> to vector<64x4xi1>
    %77 = vector.broadcast %cst_45 : f32 to vector<64x4xf32>
    %78 = arith.select %76, %74, %77 : vector<64x4xi1>, vector<64x4xf32>
    %79 = vector.extract_strided_slice %51 {offsets = [24, 0], sizes = [64, 4], strides = [1, 1]} : vector<96x4xf32> to vector<64x4xf32>
    %80 = vector.extract_strided_slice %51 {offsets = [25, 0], sizes = [64, 4], strides = [1, 1]} : vector<96x4xf32> to vector<64x4xf32>
    %cst_46 = arith.constant 0.000000e+00 : f32
    %81 = vector.shape_cast %48 : vector<64x1xi1> to vector<64x1xi1>
    %82 = vector.broadcast %81 : vector<64x1xi1> to vector<64x4xi1>
    %83 = vector.broadcast %cst_46 : f32 to vector<64x4xf32>
    %84 = arith.select %82, %80, %83 : vector<64x4xi1>, vector<64x4xf32>
    %85 = tpu.concatenate %56, %57, %62, %67, %68, %73, %78, %79, %84 in 1 : vector<64x4xf32>, vector<64x4xf32>, vector<64x4xf32>, vector<64x4xf32>, vector<64x4xf32>, vector<64x4xf32>, vector<64x4xf32>, vector<64x4xf32>, vector<64x4xf32> -> vector<64x36xf32>
    %86 = arith.truncf %85 : vector<64x36xf32> to vector<64x36xbf16>
    %c0_47 = arith.constant 0 : index
    %c0_48 = arith.constant 0 : index
    %87 = vector.load %arg21[%c0_47, %c0_48] : memref<36x128xbf16, #tpu.memory_space<vmem>>, vector<36x128xbf16>
    %cst_49 = arith.constant dense<0.000000e+00> : vector<64x128xf32>
    %88 = tpu.matmul %86, %87, %cst_49 {dimension_numbers = #tpu.dot_dimension_numbers<[1], [0], [0], [1], [0, 0, 1, 1], [], []>} : vector<64x36xbf16>, vector<36x128xbf16>, vector<64x128xf32> -> vector<64x128xf32>
    %c0_50 = arith.constant 0 : index
    %c0_51 = arith.constant 0 : index
    %89 = vector.load %arg22[%c0_50, %c0_51] : memref<1x128xf32, #tpu.memory_space<vmem>>, vector<1x128xf32>
    %90 = vector.broadcast %89 : vector<1x128xf32> to vector<64x128xf32>
    %91 = arith.addf %88, %90 : vector<64x128xf32>
    %cst_52 = arith.constant 0.000000e+00 : f32
    %92 = vector.broadcast %cst_52 : f32 to vector<64x128xf32>
    %93 = arith.maximumf %91, %92 : vector<64x128xf32>
    %cst_53 = arith.constant 0.000000e+00 : f32
    %94 = vector.broadcast %cst_53 : f32 to vector<16x128xf32>
    %cst_54 = arith.constant 0.000000e+00 : f32
    %95 = vector.broadcast %cst_54 : f32 to vector<16x128xf32>
    %96 = tpu.concatenate %94, %93, %95 in 0 : vector<16x128xf32>, vector<64x128xf32>, vector<16x128xf32> -> vector<96x128xf32>
    %97 = vector.extract_strided_slice %96 {offsets = [7, 0], sizes = [64, 128], strides = [1, 1]} : vector<96x128xf32> to vector<64x128xf32>
    %cst_55 = arith.constant 0.000000e+00 : f32
    %98 = vector.shape_cast %45 : vector<64x1xi1> to vector<64x1xi1>
    %99 = vector.broadcast %98 : vector<64x1xi1> to vector<64x128xi1>
    %100 = vector.broadcast %cst_55 : f32 to vector<64x128xf32>
    %101 = arith.select %99, %97, %100 : vector<64x128xi1>, vector<64x128xf32>
    %102 = vector.extract_strided_slice %96 {offsets = [8, 0], sizes = [64, 128], strides = [1, 1]} : vector<96x128xf32> to vector<64x128xf32>
    %103 = vector.extract_strided_slice %96 {offsets = [9, 0], sizes = [64, 128], strides = [1, 1]} : vector<96x128xf32> to vector<64x128xf32>
    %cst_56 = arith.constant 0.000000e+00 : f32
    %104 = vector.shape_cast %48 : vector<64x1xi1> to vector<64x1xi1>
    %105 = vector.broadcast %104 : vector<64x1xi1> to vector<64x128xi1>
    %106 = vector.broadcast %cst_56 : f32 to vector<64x128xf32>
    %107 = arith.select %105, %103, %106 : vector<64x128xi1>, vector<64x128xf32>
    %108 = vector.extract_strided_slice %96 {offsets = [15, 0], sizes = [64, 128], strides = [1, 1]} : vector<96x128xf32> to vector<64x128xf32>
    %cst_57 = arith.constant 0.000000e+00 : f32
    %109 = vector.shape_cast %45 : vector<64x1xi1> to vector<64x1xi1>
    %110 = vector.broadcast %109 : vector<64x1xi1> to vector<64x128xi1>
    %111 = vector.broadcast %cst_57 : f32 to vector<64x128xf32>
    %112 = arith.select %110, %108, %111 : vector<64x128xi1>, vector<64x128xf32>
    %113 = vector.extract_strided_slice %96 {offsets = [16, 0], sizes = [64, 128], strides = [1, 1]} : vector<96x128xf32> to vector<64x128xf32>
    %114 = vector.extract_strided_slice %96 {offsets = [17, 0], sizes = [64, 128], strides = [1, 1]} : vector<96x128xf32> to vector<64x128xf32>
    %cst_58 = arith.constant 0.000000e+00 : f32
    %115 = vector.shape_cast %48 : vector<64x1xi1> to vector<64x1xi1>
    %116 = vector.broadcast %115 : vector<64x1xi1> to vector<64x128xi1>
    %117 = vector.broadcast %cst_58 : f32 to vector<64x128xf32>
    %118 = arith.select %116, %114, %117 : vector<64x128xi1>, vector<64x128xf32>
    %119 = vector.extract_strided_slice %96 {offsets = [23, 0], sizes = [64, 128], strides = [1, 1]} : vector<96x128xf32> to vector<64x128xf32>
    %cst_59 = arith.constant 0.000000e+00 : f32
    %120 = vector.shape_cast %45 : vector<64x1xi1> to vector<64x1xi1>
    %121 = vector.broadcast %120 : vector<64x1xi1> to vector<64x128xi1>
    %122 = vector.broadcast %cst_59 : f32 to vector<64x128xf32>
    %123 = arith.select %121, %119, %122 : vector<64x128xi1>, vector<64x128xf32>
    %124 = vector.extract_strided_slice %96 {offsets = [24, 0], sizes = [64, 128], strides = [1, 1]} : vector<96x128xf32> to vector<64x128xf32>
    %125 = vector.extract_strided_slice %96 {offsets = [25, 0], sizes = [64, 128], strides = [1, 1]} : vector<96x128xf32> to vector<64x128xf32>
    %cst_60 = arith.constant 0.000000e+00 : f32
    %126 = vector.shape_cast %48 : vector<64x1xi1> to vector<64x1xi1>
    %127 = vector.broadcast %126 : vector<64x1xi1> to vector<64x128xi1>
    %128 = vector.broadcast %cst_60 : f32 to vector<64x128xf32>
    %129 = arith.select %127, %125, %128 : vector<64x128xi1>, vector<64x128xf32>
    %130 = tpu.concatenate %101, %102, %107, %112, %113, %118, %123, %124, %129 in 1 : vector<64x128xf32>, vector<64x128xf32>, vector<64x128xf32>, vector<64x128xf32>, vector<64x128xf32>, vector<64x128xf32>, vector<64x128xf32>, vector<64x128xf32>, vector<64x128xf32> -> vector<64x1152xf32>
    %131 = arith.truncf %130 : vector<64x1152xf32> to vector<64x1152xbf16>
    %c0_61 = arith.constant 0 : index
    %c0_62 = arith.constant 0 : index
    %132 = vector.load %arg23[%c0_61, %c0_62] : memref<1152x64xbf16, #tpu.memory_space<vmem>>, vector<1152x64xbf16>
    %cst_63 = arith.constant dense<0.000000e+00> : vector<64x64xf32>
    %133 = tpu.matmul %131, %132, %cst_63 {dimension_numbers = #tpu.dot_dimension_numbers<[1], [0], [0], [1], [0, 0, 1, 1], [], []>} : vector<64x1152xbf16>, vector<1152x64xbf16>, vector<64x64xf32> -> vector<64x64xf32>
    %c0_64 = arith.constant 0 : index
    %c0_65 = arith.constant 0 : index
    %134 = vector.load %arg24[%c0_64, %c0_65] : memref<1x64xf32, #tpu.memory_space<vmem>>, vector<1x64xf32>
    %135 = vector.broadcast %134 : vector<1x64xf32> to vector<64x64xf32>
    %136 = arith.addf %133, %135 : vector<64x64xf32>
    %c0_66 = arith.constant 0 : index
    %c0_67 = arith.constant 0 : index
    %c0_68 = arith.constant 0 : index
    %137 = vector.load %arg1[%c0_66, %c0_67, %c0_68] : memref<1x32x64xf32, #tpu.memory_space<vmem>>, vector<1x32x64xf32>
    %138 = vector.shape_cast %137 : vector<1x32x64xf32> to vector<32x64xf32>
    %cst_69 = arith.constant dense<0.000000e+00> : vector<32xf32>
    %139 = vector.multi_reduction <add>, %138, %cst_69 [1] : vector<32x64xf32> to vector<32xf32>
    %140 = vector.shape_cast %139 : vector<32xf32> to vector<32x1xf32>
    %cst_70 = arith.constant 6.400000e+01 : f32
    %141 = vector.broadcast %cst_70 : f32 to vector<32x1xf32>
    %142 = arith.divf %140, %141 : vector<32x1xf32>
    %143 = vector.broadcast %142 : vector<32x1xf32> to vector<32x64xf32>
    %144 = arith.subf %138, %143 : vector<32x64xf32>
    %145 = arith.mulf %144, %144 : vector<32x64xf32>
    %cst_71 = arith.constant dense<0.000000e+00> : vector<32xf32>
    %146 = vector.multi_reduction <add>, %145, %cst_71 [1] : vector<32x64xf32> to vector<32xf32>
    %147 = vector.shape_cast %146 : vector<32xf32> to vector<32x1xf32>
    %cst_72 = arith.constant 6.400000e+01 : f32
    %148 = vector.broadcast %cst_72 : f32 to vector<32x1xf32>
    %149 = arith.divf %147, %148 : vector<32x1xf32>
    %cst_73 = arith.constant 9.99999974E-6 : f32
    %150 = vector.broadcast %cst_73 : f32 to vector<32x1xf32>
    %151 = arith.addf %149, %150 : vector<32x1xf32>
    %152 = math.rsqrt %151 : vector<32x1xf32>
    %153 = vector.broadcast %152 : vector<32x1xf32> to vector<32x64xf32>
    %154 = arith.mulf %144, %153 : vector<32x64xf32>
    %c0_74 = arith.constant 0 : index
    %c0_75 = arith.constant 0 : index
    %155 = vector.load %arg25[%c0_74, %c0_75] : memref<1x64xf32, #tpu.memory_space<vmem>>, vector<1x64xf32>
    %156 = vector.broadcast %155 : vector<1x64xf32> to vector<64x64xf32>
    %157 = arith.mulf %156, %42 : vector<64x64xf32>
    %c0_76 = arith.constant 0 : index
    %c0_77 = arith.constant 0 : index
    %158 = vector.load %arg25[%c0_76, %c0_77] : memref<1x64xf32, #tpu.memory_space<vmem>>, vector<1x64xf32>
    %cst_78 = arith.constant 1.000000e+00 : f32
    %159 = vector.broadcast %cst_78 : f32 to vector<1x64xf32>
    %160 = arith.subf %159, %158 : vector<1x64xf32>
    %161 = vector.broadcast %160 : vector<1x64xf32> to vector<64x64xf32>
    %162 = arith.mulf %161, %136 : vector<64x64xf32>
    %163 = arith.addf %157, %162 : vector<64x64xf32>
    %c0_79 = arith.constant 0 : index
    %c0_80 = arith.constant 0 : index
    %c0_81 = arith.constant 0 : index
    %164 = vector.load %arg4[%c0_79, %c0_80, %c0_81] : memref<1x64x1xf32, #tpu.memory_space<vmem>>, vector<1x64x1xf32>
    %165 = vector.shape_cast %164 : vector<1x64x1xf32> to vector<64x1xf32>
    %c0_82 = arith.constant 0 : index
    %c0_83 = arith.constant 0 : index
    %166 = vector.load %arg26[%c0_82, %c0_83] : memref<1x64xf32, #tpu.memory_space<vmem>>, vector<1x64xf32>
    %167 = vector.broadcast %165 : vector<64x1xf32> to vector<64x64xf32>
    %168 = vector.broadcast %166 : vector<1x64xf32> to vector<64x64xf32>
    %169 = arith.mulf %167, %168 : vector<64x64xf32>
    %170 = arith.addf %163, %169 : vector<64x64xf32>
    %171 = tpu.transpose %170, [1, 0] : vector<64x64xf32> -> vector<64x64xf32>
    %172 = vector.extract_strided_slice %171 {offsets = [0, 0], sizes = [32, 64], strides = [1, 1]} : vector<64x64xf32> to vector<32x64xf32>
    %cst_84 = arith.constant 1.000000e+00 : f32
    %173 = vector.broadcast %cst_84 : f32 to vector<32x64xf32>
    %174 = arith.addf %173, %172 : vector<32x64xf32>
    %175 = arith.mulf %174, %154 : vector<32x64xf32>
    %176 = vector.extract_strided_slice %171 {offsets = [32, 0], sizes = [32, 64], strides = [1, 1]} : vector<64x64xf32> to vector<32x64xf32>
    %177 = arith.addf %175, %176 : vector<32x64xf32>
    %cst_85 = arith.constant 2.000000e-01 : f32
    %178 = vector.broadcast %cst_85 : f32 to vector<32x64xf32>
    %179 = arith.mulf %178, %177 : vector<32x64xf32>
    %180 = arith.maximumf %177, %179 : vector<32x64xf32>
    %c0_86 = arith.constant 0 : index
    %c0_87 = arith.constant 0 : index
    %c0_88 = arith.constant 0 : index
    %181 = vector.load %arg27[%c0_86, %c0_87, %c0_88] : memref<1x32x64xf32, #tpu.memory_space<vmem>>, vector<1x32x64xf32>
    %182 = vector.shape_cast %181 : vector<1x32x64xf32> to vector<32x64xf32>
    %183 = vector.shape_cast %180 : vector<32x64xf32> to vector<1x32x64xf32>
    tpu.vector_store %arg27[%c0_86, %c0_87, %c0_88], %183 {strides = array<i32>} : memref<1x32x64xf32, #tpu.memory_space<vmem>>, vector<1x32x64xf32>,
    return
  }
  func.func @transform_0(%arg0: i32) -> (i32, i32, i32) {
    %c0_i32 = arith.constant 0 : i32
    %c0_i32_0 = arith.constant 0 : i32
    %c0_i32_1 = arith.constant 0 : i32
    return %arg0, %c0_i32, %c0_i32_0 : i32, i32, i32
  }
  func.func @transform_1(%arg0: i32) -> (i32, i32, i32) {
    %c0_i32 = arith.constant 0 : i32
    %c0_i32_0 = arith.constant 0 : i32
    %c0_i32_1 = arith.constant 0 : i32
    return %arg0, %c0_i32, %c0_i32_0 : i32, i32, i32
  }
  func.func @transform_2(%arg0: i32) -> (i32, i32, i32) {
    %c0_i32 = arith.constant 0 : i32
    %c0_i32_0 = arith.constant 0 : i32
    %c0_i32_1 = arith.constant 0 : i32
    return %arg0, %c0_i32, %c0_i32_0 : i32, i32, i32
  }
  func.func @transform_3(%arg0: i32) -> (i32, i32, i32) {
    %c0_i32 = arith.constant 0 : i32
    %c0_i32_0 = arith.constant 0 : i32
    %c0_i32_1 = arith.constant 0 : i32
    return %arg0, %c0_i32, %c0_i32_0 : i32, i32, i32
  }
  func.func @transform_4(%arg0: i32) -> (i32, i32) {
    %c0_i32 = arith.constant 0 : i32
    %c0_i32_0 = arith.constant 0 : i32
    %c0_i32_1 = arith.constant 0 : i32
    return %c0_i32, %c0_i32_0 : i32, i32
  }
  func.func @transform_5(%arg0: i32) -> (i32, i32) {
    %c0_i32 = arith.constant 0 : i32
    %c0_i32_0 = arith.constant 0 : i32
    %c0_i32_1 = arith.constant 0 : i32
    return %c0_i32, %c0_i32_0 : i32, i32
  }
  func.func @transform_6(%arg0: i32) -> (i32, i32) {
    %c0_i32 = arith.constant 0 : i32
    %c0_i32_0 = arith.constant 0 : i32
    %c0_i32_1 = arith.constant 0 : i32
    return %c0_i32, %c0_i32_0 : i32, i32
  }
  func.func @transform_7(%arg0: i32) -> (i32, i32) {
    %c0_i32 = arith.constant 0 : i32
    %c0_i32_0 = arith.constant 0 : i32
    %c0_i32_1 = arith.constant 0 : i32
    return %c0_i32, %c0_i32_0 : i32, i32
  }
  func.func @transform_8(%arg0: i32) -> (i32, i32) {
    %c0_i32 = arith.constant 0 : i32
    %c0_i32_0 = arith.constant 0 : i32
    %c0_i32_1 = arith.constant 0 : i32
    return %c0_i32, %c0_i32_0 : i32, i32
  }
  func.func @transform_9(%arg0: i32) -> (i32, i32) {
    %c0_i32 = arith.constant 0 : i32
    %c0_i32_0 = arith.constant 0 : i32
    %c0_i32_1 = arith.constant 0 : i32
    return %c0_i32, %c0_i32_0 : i32, i32
  }
  func.func @transform_10(%arg0: i32) -> (i32, i32) {
    %c0_i32 = arith.constant 0 : i32
    %c0_i32_0 = arith.constant 0 : i32
    %c0_i32_1 = arith.constant 0 : i32
    return %c0_i32, %c0_i32_0 : i32, i32
  }
  func.func @transform_11(%arg0: i32) -> (i32, i32) {
    %c0_i32 = arith.constant 0 : i32
    %c0_i32_0 = arith.constant 0 : i32
    %c0_i32_1 = arith.constant 0 : i32
    return %c0_i32, %c0_i32_0 : i32, i32
  }
  func.func @transform_12(%arg0: i32) -> (i32, i32) {
    %c0_i32 = arith.constant 0 : i32
    %c0_i32_0 = arith.constant 0 : i32
    %c0_i32_1 = arith.constant 0 : i32
    return %c0_i32, %c0_i32_0 : i32, i32
  }
  func.func @transform_13(%arg0: i32) -> (i32, i32) {
    %c0_i32 = arith.constant 0 : i32
    %c0_i32_0 = arith.constant 0 : i32
    %c0_i32_1 = arith.constant 0 : i32
    return %c0_i32, %c0_i32_0 : i32, i32
  }
  func.func @transform_14(%arg0: i32) -> (i32, i32) {
    %c0_i32 = arith.constant 0 : i32
    %c0_i32_0 = arith.constant 0 : i32
    %c0_i32_1 = arith.constant 0 : i32
    return %c0_i32, %c0_i32_0 : i32, i32
  }
  func.func @transform_15(%arg0: i32) -> (i32, i32) {
    %c0_i32 = arith.constant 0 : i32
    %c0_i32_0 = arith.constant 0 : i32
    %c0_i32_1 = arith.constant 0 : i32
    return %c0_i32, %c0_i32_0 : i32, i32
  }
  func.func @transform_16(%arg0: i32) -> (i32, i32) {
    %c0_i32 = arith.constant 0 : i32
    %c0_i32_0 = arith.constant 0 : i32
    %c0_i32_1 = arith.constant 0 : i32
    return %c0_i32, %c0_i32_0 : i32, i32
  }
  func.func @transform_17(%arg0: i32) -> (i32, i32) {
    %c0_i32 = arith.constant 0 : i32
    %c0_i32_0 = arith.constant 0 : i32
    %c0_i32_1 = arith.constant 0 : i32
    return %c0_i32, %c0_i32_0 : i32, i32
  }
  func.func @transform_18(%arg0: i32) -> (i32, i32) {
    %c0_i32 = arith.constant 0 : i32
    %c0_i32_0 = arith.constant 0 : i32
    %c0_i32_1 = arith.constant 0 : i32
    return %c0_i32, %c0_i32_0 : i32, i32
  }
  func.func @transform_19(%arg0: i32) -> (i32, i32) {
    %c0_i32 = arith.constant 0 : i32
    %c0_i32_0 = arith.constant 0 : i32
    %c0_i32_1 = arith.constant 0 : i32
    return %c0_i32, %c0_i32_0 : i32, i32
  }
  func.func @transform_20(%arg0: i32) -> (i32, i32) {
    %c0_i32 = arith.constant 0 : i32
    %c0_i32_0 = arith.constant 0 : i32
    %c0_i32_1 = arith.constant 0 : i32
    return %c0_i32, %c0_i32_0 : i32, i32
  }
  func.func @transform_21(%arg0: i32) -> (i32, i32) {
    %c0_i32 = arith.constant 0 : i32
    %c0_i32_0 = arith.constant 0 : i32
    %c0_i32_1 = arith.constant 0 : i32
    return %c0_i32, %c0_i32_0 : i32, i32
  }
  func.func @transform_22(%arg0: i32) -> (i32, i32) {
    %c0_i32 = arith.constant 0 : i32
    %c0_i32_0 = arith.constant 0 : i32
    %c0_i32_1 = arith.constant 0 : i32
    return %c0_i32, %c0_i32_0 : i32, i32
  }
  func.func @transform_23(%arg0: i32) -> (i32, i32) {
    %c0_i32 = arith.constant 0 : i32
    %c0_i32_0 = arith.constant 0 : i32
    %c0_i32_1 = arith.constant 0 : i32
    return %c0_i32, %c0_i32_0 : i32, i32
  }
  func.func @transform_24(%arg0: i32) -> (i32, i32) {
    %c0_i32 = arith.constant 0 : i32
    %c0_i32_0 = arith.constant 0 : i32
    %c0_i32_1 = arith.constant 0 : i32
    return %c0_i32, %c0_i32_0 : i32, i32
  }
  func.func @transform_25(%arg0: i32) -> (i32, i32) {
    %c0_i32 = arith.constant 0 : i32
    %c0_i32_0 = arith.constant 0 : i32
    %c0_i32_1 = arith.constant 0 : i32
    return %c0_i32, %c0_i32_0 : i32, i32
  }
  func.func @transform_26(%arg0: i32) -> (i32, i32, i32) {
    %c0_i32 = arith.constant 0 : i32
    %c0_i32_0 = arith.constant 0 : i32
    %c0_i32_1 = arith.constant 0 : i32
    return %arg0, %c0_i32, %c0_i32_0 : i32, i32, i32
  }
  func.func @transform_27(%arg0: i32) -> (i32, i32, i32) {
    %c0_i32 = arith.constant 0 : i32
    %c0_i32_0 = arith.constant 0 : i32
    %c0_i32_1 = arith.constant 0 : i32
    return %arg0, %c0_i32, %c0_i32_0 : i32, i32, i32
  }
}

</mosaic_0001>

<llo_original>
// kernel: tpu_custom_call.1
$region0: #{tpu_custom_call.1}
  #allocation0 [shape = 'u32[]', space=smem, size = 0x4, offset = 0x4, fixed_abs, tag = 'smem constant byte address 0x4 - core index']
  #allocation1 [shape = 'u32[72,128]{1,0:T(1,128)}', space=vmem, size = 0x9000, scoped, tag = 'internal scratch']
  %s0 = inlined_call_operand.vmem [shape: f32[2,32,64], index: 0, kind: input, shape index: {}]
  %s1 = inlined_call_operand.vmem [shape: f32[2,64,4], index: 1, kind: input, shape index: {}]
  %s2 = inlined_call_operand.vmem [shape: f32[2,4,32], index: 2, kind: input, shape index: {}]
  %s3 = inlined_call_operand.vmem [shape: f32[2,64,1], index: 3, kind: input, shape index: {}]
  %s4 = inlined_call_operand.vmem [shape: f32[64,32], index: 4, kind: input, shape index: {}]
  %s5 = inlined_call_operand.vmem [shape: f32[64,2], index: 5, kind: input, shape index: {}]
  %s6 = inlined_call_operand.vmem [shape: bf16[32,32], index: 6, kind: input, shape index: {}]
  %s7 = inlined_call_operand.vmem [shape: f32[1,32], index: 7, kind: input, shape index: {}]
  %s8 = inlined_call_operand.vmem [shape: bf16[32,32], index: 8, kind: input, shape index: {}]
  %s9 = inlined_call_operand.vmem [shape: f32[1,32], index: 9, kind: input, shape index: {}]
  %s10 = inlined_call_operand.vmem [shape: bf16[32,32], index: 10, kind: input, shape index: {}]
  %s11 = inlined_call_operand.vmem [shape: f32[1,32], index: 11, kind: input, shape index: {}]
  %s12 = inlined_call_operand.vmem [shape: bf16[32,32], index: 12, kind: input, shape index: {}]
  %s13 = inlined_call_operand.vmem [shape: f32[1,32], index: 13, kind: input, shape index: {}]
  %s14 = inlined_call_operand.vmem [shape: bf16[32,32], index: 14, kind: input, shape index: {}]
  %s15 = inlined_call_operand.vmem [shape: f32[1,32], index: 15, kind: input, shape index: {}]
  %s16 = inlined_call_operand.vmem [shape: bf16[32,32], index: 16, kind: input, shape index: {}]
  %s17 = inlined_call_operand.vmem [shape: f32[1,32], index: 17, kind: input, shape index: {}]
  %s18 = inlined_call_operand.vmem [shape: bf16[32,64], index: 18, kind: input, shape index: {}]
  %s19 = inlined_call_operand.vmem [shape: f32[1,64], index: 19, kind: input, shape index: {}]
  %s20 = inlined_call_operand.vmem [shape: bf16[36,128], index: 20, kind: input, shape index: {}]
  %s21 = inlined_call_operand.vmem [shape: f32[1,128], index: 21, kind: input, shape index: {}]
  %s22 = inlined_call_operand.vmem [shape: bf16[1152,64], index: 22, kind: input, shape index: {}]
  %s23 = inlined_call_operand.vmem [shape: f32[1,64], index: 23, kind: input, shape index: {}]
  %s24 = inlined_call_operand.vmem [shape: f32[1,64], index: 24, kind: input, shape index: {}]
  %s25 = inlined_call_operand.vmem [shape: f32[1,64], index: 25, kind: input, shape index: {}]
  %s26 = inlined_call_operand.hbm [shape: f32[2,32,64], index: 26, kind: output, shape index: {0}]
  %s27 = inlined_call_operand.hbm [shape: f32[2,4,32], index: 27, kind: output, shape index: {1}]
  %28 = xla_tuple %s26, %s27
  %s29 = sld [smem:[#allocation0]]
  $region145: #{tpu_custom_call.1} parent=0
    _
  %s31 = ssub.s32 1, %s29
  %s32 = scalar_select 0, %s31, %s29
  $region1: #{tpu_custom_call.1} parent=0
    #allocation2 [shape = 'u8[32768]{0}', space=vmem, size = 0x8000, scoped, tag = 'output window, operand 0']
    #allocation3 [shape = 's32[2]{0}', space=sflag, size = 0x8, scoped, tag = 'scoped memory for tpu_custom_call.1']
    #allocation4 [shape = 'u8[4096]{0}', space=vmem, size = 0x1000, scoped, tag = 'output window, operand 1']
    #allocation5 [shape = 's32[2]{0}', space=sflag, size = 0x8, scoped, tag = 'scoped memory for tpu_custom_call.1']
    %33 = vsyncpa [#allocation3], 0
    %s34 = scalar_lea.sflag [#allocation3], 1
    %35 = vsyncpa %s34, 0
    %36 = vsyncpa [#allocation5], 0
    %s37 = scalar_lea.sflag [#allocation5], 1
    %38 = vsyncpa %s37, 0
    loop: start=0, step=1, limit=4
    $region2: #{tpu_custom_call.1} parent=1 // loop_pre_header
      _
    $region3: #{tpu_custom_call.1} parent=1 // loop_header
      %s40 = sphi 0, %s44
      %p41 = scmp.ge.s32.totalorder %s40, 4
      %s50 = sphi 0, %s52
      %s53 = sphi 0, %s50
      %s54 = sphi 0, %s53
      %s70 = sphi 0, %s54
      %s76 = sphi 0, %s78
      %s79 = sphi 0, %s76
      %s80 = sphi 0, %s79
      %s96 = sphi 0, %s80
      %s102 = sphi 0, %s104
      %s105 = sphi 0, %s102
      %s106 = sphi 0, %s105
      %s122 = sphi 0, %s106
      %s128 = sphi 0, %s130
      %s131 = sphi 0, %s128
      %s132 = sphi 0, %s131
      %s148 = sphi 0, %s132
      %s152 = sphi 0, %s152
      %s154 = sphi 0, %s152
      %s155 = sphi 0, %s154
      %s169 = sphi 0, %s155
      %s173 = sphi 0, %s173
      %s175 = sphi 0, %s173
      %s176 = sphi 0, %s175
      %s190 = sphi 0, %s176
      %s194 = sphi 0, %s194
      %s196 = sphi 0, %s194
      %s197 = sphi 0, %s196
      %s211 = sphi 0, %s197
      %s215 = sphi 0, %s215
      %s217 = sphi 0, %s215
      %s218 = sphi 0, %s217
      %s232 = sphi 0, %s218
      %s236 = sphi 0, %s236
      %s238 = sphi 0, %s236
      %s239 = sphi 0, %s238
      %s253 = sphi 0, %s239
      %s257 = sphi 0, %s257
      %s259 = sphi 0, %s257
      %s260 = sphi 0, %s259
      %s274 = sphi 0, %s260
      %s278 = sphi 0, %s278
      %s280 = sphi 0, %s278
      %s281 = sphi 0, %s280
      %s295 = sphi 0, %s281
      %s299 = sphi 0, %s299
      %s301 = sphi 0, %s299
      %s302 = sphi 0, %s301
      %s316 = sphi 0, %s302
      %s320 = sphi 0, %s320
      %s322 = sphi 0, %s320
      %s323 = sphi 0, %s322
      %s337 = sphi 0, %s323
      %s341 = sphi 0, %s341
      %s343 = sphi 0, %s341
      %s344 = sphi 0, %s343
      %s358 = sphi 0, %s344
      %s362 = sphi 0, %s362
      %s364 = sphi 0, %s362
      %s365 = sphi 0, %s364
      %s379 = sphi 0, %s365
      %s383 = sphi 0, %s383
      %s385 = sphi 0, %s383
      %s386 = sphi 0, %s385
      %s400 = sphi 0, %s386
      %s404 = sphi 0, %s404
      %s406 = sphi 0, %s404
      %s407 = sphi 0, %s406
      %s421 = sphi 0, %s407
      %s425 = sphi 0, %s425
      %s427 = sphi 0, %s425
      %s428 = sphi 0, %s427
      %s442 = sphi 0, %s428
      %s446 = sphi 0, %s446
      %s448 = sphi 0, %s446
      %s449 = sphi 0, %s448
      %s463 = sphi 0, %s449
      %s467 = sphi 0, %s467
      %s469 = sphi 0, %s467
      %s470 = sphi 0, %s469
      %s484 = sphi 0, %s470
      %s488 = sphi 0, %s488
      %s490 = sphi 0, %s488
      %s491 = sphi 0, %s490
      %s505 = sphi 0, %s491
      %s509 = sphi 0, %s509
      %s511 = sphi 0, %s509
      %s512 = sphi 0, %s511
      %s526 = sphi 0, %s512
      %s530 = sphi 0, %s530
      %s532 = sphi 0, %s530
      %s533 = sphi 0, %s532
      %s547 = sphi 0, %s533
      %s551 = sphi 0, %s551
      %s553 = sphi 0, %s551
      %s554 = sphi 0, %s553
      %s568 = sphi 0, %s554
      %s572 = sphi 0, %s572
      %s574 = sphi 0, %s572
      %s575 = sphi 0, %s574
      %s589 = sphi 0, %s575
      %s593 = sphi 0, %s593
      %s595 = sphi 0, %s593
      %s596 = sphi 0, %s595
      %s610 = sphi 0, %s596
      %s616 = sphi 0, %s618
      %s619 = sphi 0, %s616
      %s620 = sphi 0, %s619
      %s636 = sphi 0, %s620
      %s642 = sphi 0, %s644
      %s645 = sphi 0, %s642
      %s646 = sphi 0, %s645
      %s662 = sphi 0, %s646
    $region4: #{tpu_custom_call.1} parent=1 // loop_header_branch
      %43 = sbr.rel (%p41) target = $region8
    $region5: #{tpu_custom_call.1} parent=1 // loop_body
      %s45 = ssub.s32 %s40, 1
      %s46 = ssub.s32 %s40, 2
      %s47 = sadd.s32 %s40, 1
      %s48 = ssub.s32 %s40, %s47
      %p49 = scmp.eq.s32.totalorder %s48, 0
      %s51 = sadd.s32 %s50, 1
      %s52 = scalar_select %p49, %s50, %s51
      %p55 = pneg %p49
      %p56 = scmp.eq.s32.totalorder %s40, 1
      %p57 = por %p55, %p56
      %p58 = scmp.ne.s32.totalorder %s50, %s53
      %p59 = scmp.eq.s32.totalorder %s40, 0
      %p60 = por %p58, %p59
      %p61 = scmp.ne.s32.totalorder %s50, %s53
      %p62 = scmp.eq.s32.totalorder %s45, 1
      %p63 = por %p61, %p62
      %p64 = scmp.ne.s32.totalorder %s53, %s54
      %p65 = scmp.eq.s32.totalorder %s45, 0
      %p66 = por %p64, %p65
      %p67 = scmp.ne.s32.totalorder %s53, %s54
      %p68 = scmp.eq.s32.totalorder %s46, 1
      %p69 = por %p67, %p68
      %p71 = scmp.ne.s32.totalorder %s54, %s70
      %p72 = scmp.eq.s32.totalorder %s46, 0
      %p73 = por %p71, %p72
      %s74 = ssub.s32 %s40, %s47
      %p75 = scmp.eq.s32.totalorder %s74, 0
      %s77 = sadd.s32 %s76, 1
      %s78 = scalar_select %p75, %s76, %s77
      %p81 = pneg %p75
      %p82 = scmp.eq.s32.totalorder %s40, 1
      %p83 = por %p81, %p82
      %p84 = scmp.ne.s32.totalorder %s76, %s79
      %p85 = scmp.eq.s32.totalorder %s40, 0
      %p86 = por %p84, %p85
      %p87 = scmp.ne.s32.totalorder %s76, %s79
      %p88 = scmp.eq.s32.totalorder %s45, 1
      %p89 = por %p87, %p88
      %p90 = scmp.ne.s32.totalorder %s79, %s80
      %p91 = scmp.eq.s32.totalorder %s45, 0
      %p92 = por %p90, %p91
      %p93 = scmp.ne.s32.totalorder %s79, %s80
      %p94 = scmp.eq.s32.totalorder %s46, 1
      %p95 = por %p93, %p94
      %p97 = scmp.ne.s32.totalorder %s80, %s96
      %p98 = scmp.eq.s32.totalorder %s46, 0
      %p99 = por %p97, %p98
      %s100 = ssub.s32 %s40, %s47
      %p101 = scmp.eq.s32.totalorder %s100, 0
      %s103 = sadd.s32 %s102, 1
      %s104 = scalar_select %p101, %s102, %s103
      %p107 = pneg %p101
      %p108 = scmp.eq.s32.totalorder %s40, 1
      %p109 = por %p107, %p108
      %p110 = scmp.ne.s32.totalorder %s102, %s105
      %p111 = scmp.eq.s32.totalorder %s40, 0
      %p112 = por %p110, %p111
      %p113 = scmp.ne.s32.totalorder %s102, %s105
      %p114 = scmp.eq.s32.totalorder %s45, 1
      %p115 = por %p113, %p114
      %p116 = scmp.ne.s32.totalorder %s105, %s106
      %p117 = scmp.eq.s32.totalorder %s45, 0
      %p118 = por %p116, %p117
      %p119 = scmp.ne.s32.totalorder %s105, %s106
      %p120 = scmp.eq.s32.totalorder %s46, 1
      %p121 = por %p119, %p120
      %p123 = scmp.ne.s32.totalorder %s106, %s122
      %p124 = scmp.eq.s32.totalorder %s46, 0
      %p125 = por %p123, %p124
      %s126 = ssub.s32 %s40, %s47
      %p127 = scmp.eq.s32.totalorder %s126, 0
      %s129 = sadd.s32 %s128, 1
      %s130 = scalar_select %p127, %s128, %s129
      %p133 = pneg %p127
      %p134 = scmp.eq.s32.totalorder %s40, 1
      %p135 = por %p133, %p134
      %p136 = scmp.ne.s32.totalorder %s128, %s131
      %p137 = scmp.eq.s32.totalorder %s40, 0
      %p138 = por %p136, %p137
      %p139 = scmp.ne.s32.totalorder %s128, %s131
      %p140 = scmp.eq.s32.totalorder %s45, 1
      %p141 = por %p139, %p140
      %p142 = scmp.ne.s32.totalorder %s131, %s132
      %p143 = scmp.eq.s32.totalorder %s45, 0
      %p144 = por %p142, %p143
      %p145 = scmp.ne.s32.totalorder %s131, %s132
      %p146 = scmp.eq.s32.totalorder %s46, 1
      %p147 = por %p145, %p146
      %p149 = scmp.ne.s32.totalorder %s132, %s148
      %p150 = scmp.eq.s32.totalorder %s46, 0
      %p151 = por %p149, %p150
      %s153 = sadd.s32 %s152, 1
      %p156 = scmp.eq.s32.totalorder %s40, 1
      %p157 = scmp.ne.s32.totalorder %s152, %s154
      %p158 = scmp.eq.s32.totalorder %s40, 0
      %p159 = por %p157, %p158
      %p160 = scmp.ne.s32.totalorder %s152, %s154
      %p161 = scmp.eq.s32.totalorder %s45, 1
      %p162 = por %p160, %p161
      %p163 = scmp.ne.s32.totalorder %s154, %s155
      %p164 = scmp.eq.s32.totalorder %s45, 0
      %p165 = por %p163, %p164
      %p166 = scmp.ne.s32.totalorder %s154, %s155
      %p167 = scmp.eq.s32.totalorder %s46, 1
      %p168 = por %p166, %p167
      %p170 = scmp.ne.s32.totalorder %s155, %s169
      %p171 = scmp.eq.s32.totalorder %s46, 0
      %p172 = por %p170, %p171
      %s174 = sadd.s32 %s173, 1
      %p177 = scmp.eq.s32.totalorder %s40, 1
      %p178 = scmp.ne.s32.totalorder %s173, %s175
      %p179 = scmp.eq.s32.totalorder %s40, 0
      %p180 = por %p178, %p179
      %p181 = scmp.ne.s32.totalorder %s173, %s175
      %p182 = scmp.eq.s32.totalorder %s45, 1
      %p183 = por %p181, %p182
      %p184 = scmp.ne.s32.totalorder %s175, %s176
      %p185 = scmp.eq.s32.totalorder %s45, 0
      %p186 = por %p184, %p185
      %p187 = scmp.ne.s32.totalorder %s175, %s176
      %p188 = scmp.eq.s32.totalorder %s46, 1
      %p189 = por %p187, %p188
      %p191 = scmp.ne.s32.totalorder %s176, %s190
      %p192 = scmp.eq.s32.totalorder %s46, 0
      %p193 = por %p191, %p192
      %s195 = sadd.s32 %s194, 1
      %p198 = scmp.eq.s32.totalorder %s40, 1
      %p199 = scmp.ne.s32.totalorder %s194, %s196
      %p200 = scmp.eq.s32.totalorder %s40, 0
      %p201 = por %p199, %p200
      %p202 = scmp.ne.s32.totalorder %s194, %s196
      %p203 = scmp.eq.s32.totalorder %s45, 1
      %p204 = por %p202, %p203
      %p205 = scmp.ne.s32.totalorder %s196, %s197
      %p206 = scmp.eq.s32.totalorder %s45, 0
      %p207 = por %p205, %p206
      %p208 = scmp.ne.s32.totalorder %s196, %s197
      %p209 = scmp.eq.s32.totalorder %s46, 1
      %p210 = por %p208, %p209
      %p212 = scmp.ne.s32.totalorder %s197, %s211
      %p213 = scmp.eq.s32.totalorder %s46, 0
      %p214 = por %p212, %p213
      %s216 = sadd.s32 %s215, 1
      %p219 = scmp.eq.s32.totalorder %s40, 1
      %p220 = scmp.ne.s32.totalorder %s215, %s217
      %p221 = scmp.eq.s32.totalorder %s40, 0
      %p222 = por %p220, %p221
      %p223 = scmp.ne.s32.totalorder %s215, %s217
      %p224 = scmp.eq.s32.totalorder %s45, 1
      %p225 = por %p223, %p224
      %p226 = scmp.ne.s32.totalorder %s217, %s218
      %p227 = scmp.eq.s32.totalorder %s45, 0
      %p228 = por %p226, %p227
      %p229 = scmp.ne.s32.totalorder %s217, %s218
      %p230 = scmp.eq.s32.totalorder %s46, 1
      %p231 = por %p229, %p230
      %p233 = scmp.ne.s32.totalorder %s218, %s232
      %p234 = scmp.eq.s32.totalorder %s46, 0
      %p235 = por %p233, %p234
      %s237 = sadd.s32 %s236, 1
      %p240 = scmp.eq.s32.totalorder %s40, 1
      %p241 = scmp.ne.s32.totalorder %s236, %s238
      %p242 = scmp.eq.s32.totalorder %s40, 0
      %p243 = por %p241, %p242
      %p244 = scmp.ne.s32.totalorder %s236, %s238
      %p245 = scmp.eq.s32.totalorder %s45, 1
      %p246 = por %p244, %p245
      %p247 = scmp.ne.s32.totalorder %s238, %s239
      %p248 = scmp.eq.s32.totalorder %s45, 0
      %p249 = por %p247, %p248
      %p250 = scmp.ne.s32.totalorder %s238, %s239
      %p251 = scmp.eq.s32.totalorder %s46, 1
      %p252 = por %p250, %p251
      %p254 = scmp.ne.s32.totalorder %s239, %s253
      %p255 = scmp.eq.s32.totalorder %s46, 0
      %p256 = por %p254, %p255
      %s258 = sadd.s32 %s257, 1
      %p261 = scmp.eq.s32.totalorder %s40, 1
      %p262 = scmp.ne.s32.totalorder %s257, %s259
      %p263 = scmp.eq.s32.totalorder %s40, 0
      %p264 = por %p262, %p263
      %p265 = scmp.ne.s32.totalorder %s257, %s259
      %p266 = scmp.eq.s32.totalorder %s45, 1
      %p267 = por %p265, %p266
      %p268 = scmp.ne.s32.totalorder %s259, %s260
      %p269 = scmp.eq.s32.totalorder %s45, 0
      %p270 = por %p268, %p269
      %p271 = scmp.ne.s32.totalorder %s259, %s260
      %p272 = scmp.eq.s32.totalorder %s46, 1
      %p273 = por %p271, %p272
      %p275 = scmp.ne.s32.totalorder %s260, %s274
      %p276 = scmp.eq.s32.totalorder %s46, 0
      %p277 = por %p275, %p276
      %s279 = sadd.s32 %s278, 1
      %p282 = scmp.eq.s32.totalorder %s40, 1
      %p283 = scmp.ne.s32.totalorder %s278, %s280
      %p284 = scmp.eq.s32.totalorder %s40, 0
      %p285 = por %p283, %p284
      %p286 = scmp.ne.s32.totalorder %s278, %s280
      %p287 = scmp.eq.s32.totalorder %s45, 1
      %p288 = por %p286, %p287
      %p289 = scmp.ne.s32.totalorder %s280, %s281
      %p290 = scmp.eq.s32.totalorder %s45, 0
      %p291 = por %p289, %p290
      %p292 = scmp.ne.s32.totalorder %s280, %s281
      %p293 = scmp.eq.s32.totalorder %s46, 1
      %p294 = por %p292, %p293
      %p296 = scmp.ne.s32.totalorder %s281, %s295
      %p297 = scmp.eq.s32.totalorder %s46, 0
      %p298 = por %p296, %p297
      %s300 = sadd.s32 %s299, 1
      %p303 = scmp.eq.s32.totalorder %s40, 1
      %p304 = scmp.ne.s32.totalorder %s299, %s301
      %p305 = scmp.eq.s32.totalorder %s40, 0
      %p306 = por %p304, %p305
      %p307 = scmp.ne.s32.totalorder %s299, %s301
      %p308 = scmp.eq.s32.totalorder %s45, 1
      %p309 = por %p307, %p308
      %p310 = scmp.ne.s32.totalorder %s301, %s302
      %p311 = scmp.eq.s32.totalorder %s45, 0
      %p312 = por %p310, %p311
      %p313 = scmp.ne.s32.totalorder %s301, %s302
      %p314 = scmp.eq.s32.totalorder %s46, 1
      %p315 = por %p313, %p314
      %p317 = scmp.ne.s32.totalorder %s302, %s316
      %p318 = scmp.eq.s32.totalorder %s46, 0
      %p319 = por %p317, %p318
      %s321 = sadd.s32 %s320, 1
      %p324 = scmp.eq.s32.totalorder %s40, 1
      %p325 = scmp.ne.s32.totalorder %s320, %s322
      %p326 = scmp.eq.s32.totalorder %s40, 0
      %p327 = por %p325, %p326
      %p328 = scmp.ne.s32.totalorder %s320, %s322
      %p329 = scmp.eq.s32.totalorder %s45, 1
      %p330 = por %p328, %p329
      %p331 = scmp.ne.s32.totalorder %s322, %s323
      %p332 = scmp.eq.s32.totalorder %s45, 0
      %p333 = por %p331, %p332
      %p334 = scmp.ne.s32.totalorder %s322, %s323
      %p335 = scmp.eq.s32.totalorder %s46, 1
      %p336 = por %p334, %p335
      %p338 = scmp.ne.s32.totalorder %s323, %s337
      %p339 = scmp.eq.s32.totalorder %s46, 0
      %p340 = por %p338, %p339
      %s342 = sadd.s32 %s341, 1
      %p345 = scmp.eq.s32.totalorder %s40, 1
      %p346 = scmp.ne.s32.totalorder %s341, %s343
      %p347 = scmp.eq.s32.totalorder %s40, 0
      %p348 = por %p346, %p347
      %p349 = scmp.ne.s32.totalorder %s341, %s343
      %p350 = scmp.eq.s32.totalorder %s45, 1
      %p351 = por %p349, %p350
      %p352 = scmp.ne.s32.totalorder %s343, %s344
      %p353 = scmp.eq.s32.totalorder %s45, 0
      %p354 = por %p352, %p353
      %p355 = scmp.ne.s32.totalorder %s343, %s344
      %p356 = scmp.eq.s32.totalorder %s46, 1
      %p357 = por %p355, %p356
      %p359 = scmp.ne.s32.totalorder %s344, %s358
      %p360 = scmp.eq.s32.totalorder %s46, 0
      %p361 = por %p359, %p360
      %s363 = sadd.s32 %s362, 1
      %p366 = scmp.eq.s32.totalorder %s40, 1
      %p367 = scmp.ne.s32.totalorder %s362, %s364
      %p368 = scmp.eq.s32.totalorder %s40, 0
      %p369 = por %p367, %p368
      %p370 = scmp.ne.s32.totalorder %s362, %s364
      %p371 = scmp.eq.s32.totalorder %s45, 1
      %p372 = por %p370, %p371
      %p373 = scmp.ne.s32.totalorder %s364, %s365
      %p374 = scmp.eq.s32.totalorder %s45, 0
      %p375 = por %p373, %p374
      %p376 = scmp.ne.s32.totalorder %s364, %s365
      %p377 = scmp.eq.s32.totalorder %s46, 1
      %p378 = por %p376, %p377
      %p380 = scmp.ne.s32.totalorder %s365, %s379
      %p381 = scmp.eq.s32.totalorder %s46, 0
      %p382 = por %p380, %p381
      %s384 = sadd.s32 %s383, 1
      %p387 = scmp.eq.s32.totalorder %s40, 1
      %p388 = scmp.ne.s32.totalorder %s383, %s385
      %p389 = scmp.eq.s32.totalorder %s40, 0
      %p390 = por %p388, %p389
      %p391 = scmp.ne.s32.totalorder %s383, %s385
      %p392 = scmp.eq.s32.totalorder %s45, 1
      %p393 = por %p391, %p392
      %p394 = scmp.ne.s32.totalorder %s385, %s386
      %p395 = scmp.eq.s32.totalorder %s45, 0
      %p396 = por %p394, %p395
      %p397 = scmp.ne.s32.totalorder %s385, %s386
      %p398 = scmp.eq.s32.totalorder %s46, 1
      %p399 = por %p397, %p398
      %p401 = scmp.ne.s32.totalorder %s386, %s400
      %p402 = scmp.eq.s32.totalorder %s46, 0
      %p403 = por %p401, %p402
      %s405 = sadd.s32 %s404, 1
      %p408 = scmp.eq.s32.totalorder %s40, 1
      %p409 = scmp.ne.s32.totalorder %s404, %s406
      %p410 = scmp.eq.s32.totalorder %s40, 0
      %p411 = por %p409, %p410
      %p412 = scmp.ne.s32.totalorder %s404, %s406
      %p413 = scmp.eq.s32.totalorder %s45, 1
      %p414 = por %p412, %p413
      %p415 = scmp.ne.s32.totalorder %s406, %s407
      %p416 = scmp.eq.s32.totalorder %s45, 0
      %p417 = por %p415, %p416
      %p418 = scmp.ne.s32.totalorder %s406, %s407
      %p419 = scmp.eq.s32.totalorder %s46, 1
      %p420 = por %p418, %p419
      %p422 = scmp.ne.s32.totalorder %s407, %s421
      %p423 = scmp.eq.s32.totalorder %s46, 0
      %p424 = por %p422, %p423
      %s426 = sadd.s32 %s425, 1
      %p429 = scmp.eq.s32.totalorder %s40, 1
      %p430 = scmp.ne.s32.totalorder %s425, %s427
      %p431 = scmp.eq.s32.totalorder %s40, 0
      %p432 = por %p430, %p431
      %p433 = scmp.ne.s32.totalorder %s425, %s427
      %p434 = scmp.eq.s32.totalorder %s45, 1
      %p435 = por %p433, %p434
      %p436 = scmp.ne.s32.totalorder %s427, %s428
      %p437 = scmp.eq.s32.totalorder %s45, 0
      %p438 = por %p436, %p437
      %p439 = scmp.ne.s32.totalorder %s427, %s428
      %p440 = scmp.eq.s32.totalorder %s46, 1
      %p441 = por %p439, %p440
      %p443 = scmp.ne.s32.totalorder %s428, %s442
      %p444 = scmp.eq.s32.totalorder %s46, 0
      %p445 = por %p443, %p444
      %s447 = sadd.s32 %s446, 1
      %p450 = scmp.eq.s32.totalorder %s40, 1
      %p451 = scmp.ne.s32.totalorder %s446, %s448
      %p452 = scmp.eq.s32.totalorder %s40, 0
      %p453 = por %p451, %p452
      %p454 = scmp.ne.s32.totalorder %s446, %s448
      %p455 = scmp.eq.s32.totalorder %s45, 1
      %p456 = por %p454, %p455
      %p457 = scmp.ne.s32.totalorder %s448, %s449
      %p458 = scmp.eq.s32.totalorder %s45, 0
      %p459 = por %p457, %p458
      %p460 = scmp.ne.s32.totalorder %s448, %s449
      %p461 = scmp.eq.s32.totalorder %s46, 1
      %p462 = por %p460, %p461
      %p464 = scmp.ne.s32.totalorder %s449, %s463
      %p465 = scmp.eq.s32.totalorder %s46, 0
      %p466 = por %p464, %p465
      %s468 = sadd.s32 %s467, 1
      %p471 = scmp.eq.s32.totalorder %s40, 1
      %p472 = scmp.ne.s32.totalorder %s467, %s469
      %p473 = scmp.eq.s32.totalorder %s40, 0
      %p474 = por %p472, %p473
      %p475 = scmp.ne.s32.totalorder %s467, %s469
      %p476 = scmp.eq.s32.totalorder %s45, 1
      %p477 = por %p475, %p476
      %p478 = scmp.ne.s32.totalorder %s469, %s470
      %p479 = scmp.eq.s32.totalorder %s45, 0
      %p480 = por %p478, %p479
      %p481 = scmp.ne.s32.totalorder %s469, %s470
      %p482 = scmp.eq.s32.totalorder %s46, 1
      %p483 = por %p481, %p482
      %p485 = scmp.ne.s32.totalorder %s470, %s484
      %p486 = scmp.eq.s32.totalorder %s46, 0
      %p487 = por %p485, %p486
      %s489 = sadd.s32 %s488, 1
      %p492 = scmp.eq.s32.totalorder %s40, 1
      %p493 = scmp.ne.s32.totalorder %s488, %s490
      %p494 = scmp.eq.s32.totalorder %s40, 0
      %p495 = por %p493, %p494
      %p496 = scmp.ne.s32.totalorder %s488, %s490
      %p497 = scmp.eq.s32.totalorder %s45, 1
      %p498 = por %p496, %p497
      %p499 = scmp.ne.s32.totalorder %s490, %s491
      %p500 = scmp.eq.s32.totalorder %s45, 0
      %p501 = por %p499, %p500
      %p502 = scmp.ne.s32.totalorder %s490, %s491
      %p503 = scmp.eq.s32.totalorder %s46, 1
      %p504 = por %p502, %p503
      %p506 = scmp.ne.s32.totalorder %s491, %s505
      %p507 = scmp.eq.s32.totalorder %s46, 0
      %p508 = por %p506, %p507
      %s510 = sadd.s32 %s509, 1
      %p513 = scmp.eq.s32.totalorder %s40, 1
      %p514 = scmp.ne.s32.totalorder %s509, %s511
      %p515 = scmp.eq.s32.totalorder %s40, 0
      %p516 = por %p514, %p515
      %p517 = scmp.ne.s32.totalorder %s509, %s511
      %p518 = scmp.eq.s32.totalorder %s45, 1
      %p519 = por %p517, %p518
      %p520 = scmp.ne.s32.totalorder %s511, %s512
      %p521 = scmp.eq.s32.totalorder %s45, 0
      %p522 = por %p520, %p521
      %p523 = scmp.ne.s32.totalorder %s511, %s512
      %p524 = scmp.eq.s32.totalorder %s46, 1
      %p525 = por %p523, %p524
      %p527 = scmp.ne.s32.totalorder %s512, %s526
      %p528 = scmp.eq.s32.totalorder %s46, 0
      %p529 = por %p527, %p528
      %s531 = sadd.s32 %s530, 1
      %p534 = scmp.eq.s32.totalorder %s40, 1
      %p535 = scmp.ne.s32.totalorder %s530, %s532
      %p536 = scmp.eq.s32.totalorder %s40, 0
      %p537 = por %p535, %p536
      %p538 = scmp.ne.s32.totalorder %s530, %s532
      %p539 = scmp.eq.s32.totalorder %s45, 1
      %p540 = por %p538, %p539
      %p541 = scmp.ne.s32.totalorder %s532, %s533
      %p542 = scmp.eq.s32.totalorder %s45, 0
      %p543 = por %p541, %p542
      %p544 = scmp.ne.s32.totalorder %s532, %s533
      %p545 = scmp.eq.s32.totalorder %s46, 1
      %p546 = por %p544, %p545
      %p548 = scmp.ne.s32.totalorder %s533, %s547
      %p549 = scmp.eq.s32.totalorder %s46, 0
      %p550 = por %p548, %p549
      %s552 = sadd.s32 %s551, 1
      %p555 = scmp.eq.s32.totalorder %s40, 1
      %p556 = scmp.ne.s32.totalorder %s551, %s553
      %p557 = scmp.eq.s32.totalorder %s40, 0
      %p558 = por %p556, %p557
      %p559 = scmp.ne.s32.totalorder %s551, %s553
      %p560 = scmp.eq.s32.totalorder %s45, 1
      %p561 = por %p559, %p560
      %p562 = scmp.ne.s32.totalorder %s553, %s554
      %p563 = scmp.eq.s32.totalorder %s45, 0
      %p564 = por %p562, %p563
      %p565 = scmp.ne.s32.totalorder %s553, %s554
      %p566 = scmp.eq.s32.totalorder %s46, 1
      %p567 = por %p565, %p566
      %p569 = scmp.ne.s32.totalorder %s554, %s568
      %p570 = scmp.eq.s32.totalorder %s46, 0
      %p571 = por %p569, %p570
      %s573 = sadd.s32 %s572, 1
      %p576 = scmp.eq.s32.totalorder %s40, 1
      %p577 = scmp.ne.s32.totalorder %s572, %s574
      %p578 = scmp.eq.s32.totalorder %s40, 0
      %p579 = por %p577, %p578
      %p580 = scmp.ne.s32.totalorder %s572, %s574
      %p581 = scmp.eq.s32.totalorder %s45, 1
      %p582 = por %p580, %p581
      %p583 = scmp.ne.s32.totalorder %s574, %s575
      %p584 = scmp.eq.s32.totalorder %s45, 0
      %p585 = por %p583, %p584
      %p586 = scmp.ne.s32.totalorder %s574, %s575
      %p587 = scmp.eq.s32.totalorder %s46, 1
      %p588 = por %p586, %p587
      %p590 = scmp.ne.s32.totalorder %s575, %s589
      %p591 = scmp.eq.s32.totalorder %s46, 0
      %p592 = por %p590, %p591
      %s594 = sadd.s32 %s593, 1
      %p597 = scmp.eq.s32.totalorder %s40, 1
      %p598 = scmp.ne.s32.totalorder %s593, %s595
      %p599 = scmp.eq.s32.totalorder %s40, 0
      %p600 = por %p598, %p599
      %p601 = scmp.ne.s32.totalorder %s593, %s595
      %p602 = scmp.eq.s32.totalorder %s45, 1
      %p603 = por %p601, %p602
      %p604 = scmp.ne.s32.totalorder %s595, %s596
      %p605 = scmp.eq.s32.totalorder %s45, 0
      %p606 = por %p604, %p605
      %p607 = scmp.ne.s32.totalorder %s595, %s596
      %p608 = scmp.eq.s32.totalorder %s46, 1
      %p609 = por %p607, %p608
      %p611 = scmp.ne.s32.totalorder %s596, %s610
      %p612 = scmp.eq.s32.totalorder %s46, 0
      %p613 = por %p611, %p612
      %s614 = ssub.s32 %s40, %s47
      %p615 = scmp.eq.s32.totalorder %s614, 0
      %s617 = sadd.s32 %s616, 1
      %s618 = scalar_select %p615, %s616, %s617
      %p621 = pneg %p615
      %p622 = scmp.eq.s32.totalorder %s40, 1
      %p623 = por %p621, %p622
      %p624 = scmp.ne.s32.totalorder %s616, %s619
      %p625 = scmp.eq.s32.totalorder %s40, 0
      %p626 = por %p624, %p625
      %p627 = scmp.ne.s32.totalorder %s616, %s619
      %p628 = scmp.eq.s32.totalorder %s45, 1
      %p629 = por %p627, %p628
      %p630 = scmp.ne.s32.totalorder %s619, %s620
      %p631 = scmp.eq.s32.totalorder %s45, 0
      %p632 = por %p630, %p631
      %p633 = scmp.ne.s32.totalorder %s619, %s620
      %p634 = scmp.eq.s32.totalorder %s46, 1
      %p635 = por %p633, %p634
      %p637 = scmp.ne.s32.totalorder %s620, %s636
      %p638 = scmp.eq.s32.totalorder %s46, 0
      %p639 = por %p637, %p638
      %s640 = ssub.s32 %s40, %s47
      %p641 = scmp.eq.s32.totalorder %s640, 0
      %s643 = sadd.s32 %s642, 1
      %s644 = scalar_select %p641, %s642, %s643
      %p647 = pneg %p641
      %p648 = scmp.eq.s32.totalorder %s40, 1
      %p649 = por %p647, %p648
      %p650 = scmp.ne.s32.totalorder %s642, %s645
      %p651 = scmp.eq.s32.totalorder %s40, 0
      %p652 = por %p650, %p651
      %p653 = scmp.ne.s32.totalorder %s642, %s645
      %p654 = scmp.eq.s32.totalorder %s45, 1
      %p655 = por %p653, %p654
      %p656 = scmp.ne.s32.totalorder %s645, %s646
      %p657 = scmp.eq.s32.totalorder %s45, 0
      %p658 = por %p656, %p657
      %p659 = scmp.ne.s32.totalorder %s645, %s646
      %p660 = scmp.eq.s32.totalorder %s46, 1
      %p661 = por %p659, %p660
      %p663 = scmp.ne.s32.totalorder %s646, %s662
      %p664 = scmp.eq.s32.totalorder %s46, 0
      %p665 = por %p663, %p664
      %p666 = scmp.le.s32.totalorder 1, %s40
      %p667 = scmp.lt.s32.totalorder %s40, 3
      %p668 = pnand %p666, %p667
      %p669 = pneg %p668
      // Predicated region
      $region9: #{tpu_custom_call.1} parent=5 // pred_check
        _
      $region10: #{tpu_custom_call.1} parent=5 // pred_check_branch
        %671 = sbr.rel (%p668) target = $region12
      $region11: #{tpu_custom_call.1} parent=5 // pred_region
        %s672 = ssub.s32 %s40, 1
        // Predicated region
        $region13: #{tpu_custom_call.1} parent=11 // pred_check
          %p673 = pneg %p165
        $region14: #{tpu_custom_call.1} parent=11 // pred_check_branch
          %675 = sbr.rel (%p673) target = $region16
        $region15: #{tpu_custom_call.1} parent=11 // pred_region
          _
        $region16: #{tpu_custom_call.1} parent=11 // pred_fallthru
          _
        // Predicated region
        $region17: #{tpu_custom_call.1} parent=11 // pred_check
          %p676 = pneg %p186
        $region18: #{tpu_custom_call.1} parent=11 // pred_check_branch
          %678 = sbr.rel (%p676) target = $region20
        $region19: #{tpu_custom_call.1} parent=11 // pred_region
          _
        $region20: #{tpu_custom_call.1} parent=11 // pred_fallthru
          _
        // Predicated region
        $region21: #{tpu_custom_call.1} parent=11 // pred_check
          %p679 = pneg %p207
        $region22: #{tpu_custom_call.1} parent=11 // pred_check_branch
          %681 = sbr.rel (%p679) target = $region24
        $region23: #{tpu_custom_call.1} parent=11 // pred_region
          _
        $region24: #{tpu_custom_call.1} parent=11 // pred_fallthru
          _
        // Predicated region
        $region25: #{tpu_custom_call.1} parent=11 // pred_check
          %p682 = pneg %p228
        $region26: #{tpu_custom_call.1} parent=11 // pred_check_branch
          %684 = sbr.rel (%p682) target = $region28
        $region27: #{tpu_custom_call.1} parent=11 // pred_region
          _
        $region28: #{tpu_custom_call.1} parent=11 // pred_fallthru
          _
        // Predicated region
        $region29: #{tpu_custom_call.1} parent=11 // pred_check
          %p685 = pneg %p249
        $region30: #{tpu_custom_call.1} parent=11 // pred_check_branch
          %687 = sbr.rel (%p685) target = $region32
        $region31: #{tpu_custom_call.1} parent=11 // pred_region
          _
        $region32: #{tpu_custom_call.1} parent=11 // pred_fallthru
          _
        // Predicated region
        $region33: #{tpu_custom_call.1} parent=11 // pred_check
          %p688 = pneg %p270
        $region34: #{tpu_custom_call.1} parent=11 // pred_check_branch
          %690 = sbr.rel (%p688) target = $region36
        $region35: #{tpu_custom_call.1} parent=11 // pred_region
          _
        $region36: #{tpu_custom_call.1} parent=11 // pred_fallthru
          _
        // Predicated region
        $region37: #{tpu_custom_call.1} parent=11 // pred_check
          %p691 = pneg %p291
        $region38: #{tpu_custom_call.1} parent=11 // pred_check_branch
          %693 = sbr.rel (%p691) target = $region40
        $region39: #{tpu_custom_call.1} parent=11 // pred_region
          _
        $region40: #{tpu_custom_call.1} parent=11 // pred_fallthru
          _
        // Predicated region
        $region41: #{tpu_custom_call.1} parent=11 // pred_check
          %p694 = pneg %p312
        $region42: #{tpu_custom_call.1} parent=11 // pred_check_branch
          %696 = sbr.rel (%p694) target = $region44
        $region43: #{tpu_custom_call.1} parent=11 // pred_region
          _
        $region44: #{tpu_custom_call.1} parent=11 // pred_fallthru
          _
        // Predicated region
        $region45: #{tpu_custom_call.1} parent=11 // pred_check
          %p697 = pneg %p333
        $region46: #{tpu_custom_call.1} parent=11 // pred_check_branch
          %699 = sbr.rel (%p697) target = $region48
        $region47: #{tpu_custom_call.1} parent=11 // pred_region
          _
        $region48: #{tpu_custom_call.1} parent=11 // pred_fallthru
          _
        // Predicated region
        $region49: #{tpu_custom_call.1} parent=11 // pred_check
          %p700 = pneg %p354
        $region50: #{tpu_custom_call.1} parent=11 // pred_check_branch
          %702 = sbr.rel (%p700) target = $region52
        $region51: #{tpu_custom_call.1} parent=11 // pred_region
          _
        $region52: #{tpu_custom_call.1} parent=11 // pred_fallthru
          _
        // Predicated region
        $region53: #{tpu_custom_call.1} parent=11 // pred_check
          %p703 = pneg %p375
        $region54: #{tpu_custom_call.1} parent=11 // pred_check_branch
          %705 = sbr.rel (%p703) target = $region56
        $region55: #{tpu_custom_call.1} parent=11 // pred_region
          _
        $region56: #{tpu_custom_call.1} parent=11 // pred_fallthru
          _
        // Predicated region
        $region57: #{tpu_custom_call.1} parent=11 // pred_check
          %p706 = pneg %p396
        $region58: #{tpu_custom_call.1} parent=11 // pred_check_branch
          %708 = sbr.rel (%p706) target = $region60
        $region59: #{tpu_custom_call.1} parent=11 // pred_region
          _
        $region60: #{tpu_custom_call.1} parent=11 // pred_fallthru
          _
        // Predicated region
        $region61: #{tpu_custom_call.1} parent=11 // pred_check
          %p709 = pneg %p417
        $region62: #{tpu_custom_call.1} parent=11 // pred_check_branch
          %711 = sbr.rel (%p709) target = $region64
        $region63: #{tpu_custom_call.1} parent=11 // pred_region
          _
        $region64: #{tpu_custom_call.1} parent=11 // pred_fallthru
          _
        // Predicated region
        $region65: #{tpu_custom_call.1} parent=11 // pred_check
          %p712 = pneg %p438
        $region66: #{tpu_custom_call.1} parent=11 // pred_check_branch
          %714 = sbr.rel (%p712) target = $region68
        $region67: #{tpu_custom_call.1} parent=11 // pred_region
          _
        $region68: #{tpu_custom_call.1} parent=11 // pred_fallthru
          _
        // Predicated region
        $region69: #{tpu_custom_call.1} parent=11 // pred_check
          %p715 = pneg %p459
        $region70: #{tpu_custom_call.1} parent=11 // pred_check_branch
          %717 = sbr.rel (%p715) target = $region72
        $region71: #{tpu_custom_call.1} parent=11 // pred_region
          _
        $region72: #{tpu_custom_call.1} parent=11 // pred_fallthru
          _
        // Predicated region
        $region73: #{tpu_custom_call.1} parent=11 // pred_check
          %p718 = pneg %p480
        $region74: #{tpu_custom_call.1} parent=11 // pred_check_branch
          %720 = sbr.rel (%p718) target = $region76
        $region75: #{tpu_custom_call.1} parent=11 // pred_region
          _
        $region76: #{tpu_custom_call.1} parent=11 // pred_fallthru
          _
        // Predicated region
        $region77: #{tpu_custom_call.1} parent=11 // pred_check
          %p721 = pneg %p501
        $region78: #{tpu_custom_call.1} parent=11 // pred_check_branch
          %723 = sbr.rel (%p721) target = $region80
        $region79: #{tpu_custom_call.1} parent=11 // pred_region
          _
        $region80: #{tpu_custom_call.1} parent=11 // pred_fallthru
          _
        // Predicated region
        $region81: #{tpu_custom_call.1} parent=11 // pred_check
          %p724 = pneg %p522
        $region82: #{tpu_custom_call.1} parent=11 // pred_check_branch
          %726 = sbr.rel (%p724) target = $region84
        $region83: #{tpu_custom_call.1} parent=11 // pred_region
          _
        $region84: #{tpu_custom_call.1} parent=11 // pred_fallthru
          _
        // Predicated region
        $region85: #{tpu_custom_call.1} parent=11 // pred_check
          %p727 = pneg %p543
        $region86: #{tpu_custom_call.1} parent=11 // pred_check_branch
          %729 = sbr.rel (%p727) target = $region88
        $region87: #{tpu_custom_call.1} parent=11 // pred_region
          _
        $region88: #{tpu_custom_call.1} parent=11 // pred_fallthru
          _
        // Predicated region
        $region89: #{tpu_custom_call.1} parent=11 // pred_check
          %p730 = pneg %p564
        $region90: #{tpu_custom_call.1} parent=11 // pred_check_branch
          %732 = sbr.rel (%p730) target = $region92
        $region91: #{tpu_custom_call.1} parent=11 // pred_region
          _
        $region92: #{tpu_custom_call.1} parent=11 // pred_fallthru
          _
        // Predicated region
        $region93: #{tpu_custom_call.1} parent=11 // pred_check
          %p733 = pneg %p585
        $region94: #{tpu_custom_call.1} parent=11 // pred_check_branch
          %735 = sbr.rel (%p733) target = $region96
        $region95: #{tpu_custom_call.1} parent=11 // pred_region
          _
        $region96: #{tpu_custom_call.1} parent=11 // pred_fallthru
          _
        // Predicated region
        $region97: #{tpu_custom_call.1} parent=11 // pred_check
          %p736 = pneg %p606
        $region98: #{tpu_custom_call.1} parent=11 // pred_check_branch
          %738 = sbr.rel (%p736) target = $region100
        $region99: #{tpu_custom_call.1} parent=11 // pred_region
          _
        $region100: #{tpu_custom_call.1} parent=11 // pred_fallthru
          _
      $region12: #{tpu_custom_call.1} parent=5 // pred_fallthru
        _
      %p739 = scmp.lt.s32.totalorder %s40, 2
      // Predicated region
      $region101: #{tpu_custom_call.1} parent=5 // pred_check
        %p740 = pneg %p739
      $region102: #{tpu_custom_call.1} parent=5 // pred_check_branch
        %742 = sbr.rel (%p740) target = $region104
      $region103: #{tpu_custom_call.1} parent=5 // pred_region
        // Predicated region
        $region105: #{tpu_custom_call.1} parent=103 // pred_check
          %p743 = pneg %p60
        $region106: #{tpu_custom_call.1} parent=103 // pred_check_branch
          %745 = sbr.rel (%p743) target = $region108
        $region107: #{tpu_custom_call.1} parent=103 // pred_region
          %p746 = scmp.lt.s32.totalorder %s40, 1
          %s747 = scalar_select %p746, %s40, 1
          %s748 = smul.addr %s747, 4
          %s749 = smul.addr %s748, 8
          %s750 = scalar_lea.vmem %s0, %s749
        $region108: #{tpu_custom_call.1} parent=103 // pred_fallthru
          _
        // Predicated region
        $region109: #{tpu_custom_call.1} parent=103 // pred_check
          %p751 = pneg %p86
        $region110: #{tpu_custom_call.1} parent=103 // pred_check_branch
          %753 = sbr.rel (%p751) target = $region112
        $region111: #{tpu_custom_call.1} parent=103 // pred_region
          %p754 = scmp.lt.s32.totalorder %s40, 1
          %s755 = scalar_select %p754, %s40, 1
          %s756 = smul.addr %s755, 8
          %s757 = smul.addr %s756, 8
          %s758 = scalar_lea.vmem %s1, %s757
        $region112: #{tpu_custom_call.1} parent=103 // pred_fallthru
          _
        // Predicated region
        $region113: #{tpu_custom_call.1} parent=103 // pred_check
          %p759 = pneg %p112
        $region114: #{tpu_custom_call.1} parent=103 // pred_check_branch
          %761 = sbr.rel (%p759) target = $region116
        $region115: #{tpu_custom_call.1} parent=103 // pred_region
          %p762 = scmp.lt.s32.totalorder %s40, 1
          %s763 = scalar_select %p762, %s40, 1
          %s764 = smul.addr %s763, 4
          %s765 = scalar_lea.vmem %s2, %s764
        $region116: #{tpu_custom_call.1} parent=103 // pred_fallthru
          _
        // Predicated region
        $region117: #{tpu_custom_call.1} parent=103 // pred_check
          %p766 = pneg %p138
        $region118: #{tpu_custom_call.1} parent=103 // pred_check_branch
          %768 = sbr.rel (%p766) target = $region120
        $region119: #{tpu_custom_call.1} parent=103 // pred_region
          %p769 = scmp.lt.s32.totalorder %s40, 1
          %s770 = scalar_select %p769, %s40, 1
          %s771 = smul.addr %s770, 8
          %s772 = smul.addr %s771, 8
          %s773 = scalar_lea.vmem %s3, %s772
        $region120: #{tpu_custom_call.1} parent=103 // pred_fallthru
          _
      $region104: #{tpu_custom_call.1} parent=5 // pred_fallthru
        _
      %p774 = scmp.le.s32.totalorder 1, %s40
      %p775 = scmp.lt.s32.totalorder %s40, 3
      %p776 = pnand %p774, %p775
      %p777 = pneg %p776
      // Predicated region
      $region121: #{tpu_custom_call.1} parent=5 // pred_check
        _
      $region122: #{tpu_custom_call.1} parent=5 // pred_check_branch
        %779 = sbr.rel (%p776) target = $region124
      $region123: #{tpu_custom_call.1} parent=5 // pred_region
        %s780 = ssub.s32 %s40, 1
        %p781 = scmp.lt.s32.totalorder %s45, 1
        %s782 = scalar_select %p781, %s45, 1
        %s783 = smul.addr %s782, 4
        %s784 = smul.addr %s783, 8
        %s785 = scalar_lea.vmem %s0, %s784
        %p786 = pneg %p66
        %p787 = pneg %p63
        %p788 = scmp.lt.s32.totalorder %s45, 1
        %s789 = scalar_select %p788, %s45, 1
        %s790 = smul.addr %s789, 8
        %s791 = smul.addr %s790, 8
        %s792 = scalar_lea.vmem %s1, %s791
        %p793 = pneg %p92
        %p794 = pneg %p89
        %p795 = scmp.lt.s32.totalorder %s45, 1
        %s796 = scalar_select %p795, %s45, 1
        %s797 = smul.addr %s796, 4
        %s798 = scalar_lea.vmem %s2, %s797
        %p799 = pneg %p118
        %p800 = pneg %p115
        %p801 = scmp.lt.s32.totalorder %s45, 1
        %s802 = scalar_select %p801, %s45, 1
        %s803 = smul.addr %s802, 8
        %s804 = smul.addr %s803, 8
        %s805 = scalar_lea.vmem %s3, %s804
        %p806 = pneg %p144
        %p807 = pneg %p141
        %p808 = pneg %p165
        %p809 = pneg %p162
        %p810 = pneg %p186
        %p811 = pneg %p183
        %p812 = pneg %p207
        %p813 = pneg %p204
        %p814 = pneg %p228
        %p815 = pneg %p225
        %p816 = pneg %p249
        %p817 = pneg %p246
        %p818 = pneg %p270
        %p819 = pneg %p267
        %p820 = pneg %p291
        %p821 = pneg %p288
        %p822 = pneg %p312
        %p823 = pneg %p309
        %p824 = pneg %p333
        %p825 = pneg %p330
        %p826 = pneg %p354
        %p827 = pneg %p351
        %p828 = pneg %p375
        %p829 = pneg %p372
        %p830 = pneg %p396
        %p831 = pneg %p393
        %p832 = pneg %p417
        %p833 = pneg %p414
        %p834 = pneg %p438
        %p835 = pneg %p435
        %p836 = pneg %p459
        %p837 = pneg %p456
        %p838 = pneg %p480
        %p839 = pneg %p477
        %p840 = pneg %p501
        %p841 = pneg %p498
        %p842 = pneg %p522
        %p843 = pneg %p519
        %p844 = pneg %p543
        %p845 = pneg %p540
        %p846 = pneg %p564
        %p847 = pneg %p561
        %p848 = pneg %p585
        %p849 = pneg %p582
        %p850 = pneg %p606
        %p851 = pneg %p603
        %p852 = pneg %p632
        %p853 = pneg %p629
        %s854 = sand.u32 %s619, 1
        %s855 = scalar_lea.sflag [#allocation3], %s854
        %s856 = sand.u32 %s619, 1
        %s857 = smul.addr %s856, 32
        %s858 = scalar_lea.vmem [#allocation2], %s857
        %p859 = pneg %p658
        %p860 = pneg %p655
        %s861 = sand.u32 %s645, 1
        %s862 = scalar_lea.sflag [#allocation5], %s861
        %s863 = sand.u32 %s645, 1
        %s864 = smul.addr %s863, 4
        %s865 = scalar_lea.vmem [#allocation4], %s864
        %p866 = scmp.lt.s32.totalorder %s45, 1
        %s867 = scalar_select %p866, %s45, 1
        %s868 = smul.addr %s867, 4
        %s869 = smul.addr %s868, 8
        %s870 = scalar_lea.vmem %s0, %s869
        %p871 = scmp.lt.s32.totalorder %s45, 1
        %s872 = scalar_select %p871, %s45, 1
        %s873 = smul.addr %s872, 8
        %s874 = smul.addr %s873, 8
        %s875 = scalar_lea.vmem %s1, %s874
        %p876 = scmp.lt.s32.totalorder %s45, 1
        %s877 = scalar_select %p876, %s45, 1
        %s878 = smul.addr %s877, 4
        %s879 = scalar_lea.vmem %s2, %s878
        %p880 = scmp.lt.s32.totalorder %s45, 1
        %s881 = scalar_select %p880, %s45, 1
        %s882 = smul.addr %s881, 8
        %s883 = smul.addr %s882, 8
        %s884 = scalar_lea.vmem %s3, %s883
        %v886 = vld [vmem:[%s875] sm:$0xff]
        %v887 = vld [vmem:[%s875 + $0x8] sm:$0xff]
        %v888 = vld [vmem:[%s875 + $0x10] sm:$0xff]
        %v889 = vld [vmem:[%s875 + $0x18] sm:$0xff]
        %v890 = vld [vmem:[%s875 + $0x20] sm:$0xff]
        %v891 = vld [vmem:[%s875 + $0x28] sm:$0xff]
        %v892 = vld [vmem:[%s875 + $0x30] sm:$0xff]
        %v893 = vld [vmem:[%s875 + $0x38] sm:$0xff]
        %v894 = vld [vmem:[%s879] sm:$0xf]
        %v895 = vpack.c.bf16 %v894, %v894
        %v896 = vld [vmem:[%s6] sm:$0xf]
        %v897 = vld [vmem:[%s6 + $0x4] sm:$0xf]
        %v898 = vld [vmem:[%s6 + $0x8] sm:$0xf]
        %v899 = vld [vmem:[%s6 + $0xc] sm:$0xf]
        %v900 = vld [vmem:[%s7] sm:$0x1]
        %v902 = vperm.slane %v900, 0
        %v908 = vunpack.c.l.b16 %v896
        %v909 = vunpack.c.l.b16 %v897
        %v910 = vunpack.c.l.b16 %v898
        %v911 = vunpack.c.l.b16 %v899
        %v912 = vpack.c.b16 %v909, %v908
        %v913 = vpack.c.b16 %v911, %v910
        %vm916 = vcmask 261120
        %v918 = vsel %vm916, %v895, 0
        %920 = vmatpush.bf16.msra.mxu0 0
        %921 = vmatpush.bf16.msra.mxu0 0
        %922 = vmatpush.bf16.msra.mxu0 0
        %923 = vmatpush.bf16.msra.mxu0 0
        %924 = vmatpush.bf16.msra.mxu0 0
        %925 = vmatpush.bf16.msra.mxu0 0
        %926 = vmatpush.bf16.msra.mxu0 %v913
        %927 = vmatpush.bf16.msra.mxu0 %v912
        %928 = vmatmul.bf16.gmra.mxu0 %v918
        %v929 = vpop.f32.mrf.mxu0
        %v930 = vadd.f32 %v902, %v929
        %v931 = vpop.f32.mrf.mxu0
        %932 = vdwg.mxu0
        %v933 = vmul.f32 %v930, 0.2
        %v934 = vmax.f32 %v930, %v933
        %v935 = vpack.c.bf16 %v934, %v934
        %v936 = vld [vmem:[%s8] sm:$0xf]
        %v937 = vld [vmem:[%s8 + $0x4] sm:$0xf]
        %v938 = vld [vmem:[%s8 + $0x8] sm:$0xf]
        %v939 = vld [vmem:[%s8 + $0xc] sm:$0xf]
        %v940 = vld [vmem:[%s9] sm:$0x1]
        %v942 = vperm.slane %v940, 0
        %v948 = vunpack.c.l.b16 %v936
        %v949 = vunpack.c.l.b16 %v937
        %v950 = vunpack.c.l.b16 %v938
        %v951 = vunpack.c.l.b16 %v939
        %v952 = vpack.c.b16 %v949, %v948
        %v953 = vpack.c.b16 %v951, %v950
        %v957 = vsel %vm916, %v935, 0
        %959 = vmatpush.bf16.msra.mxu0 0
        %960 = vmatpush.bf16.msra.mxu0 0
        %961 = vmatpush.bf16.msra.mxu0 0
        %962 = vmatpush.bf16.msra.mxu0 0
        %963 = vmatpush.bf16.msra.mxu0 0
        %964 = vmatpush.bf16.msra.mxu0 0
        %965 = vmatpush.bf16.msra.mxu0 %v953
        %966 = vmatpush.bf16.msra.mxu0 %v952
        %967 = vmatmul.bf16.gmra.mxu0 %v957
        %v968 = vpop.f32.mrf.mxu0
        %v969 = vadd.f32 %v942, %v968
        %v970 = vpop.f32.mrf.mxu0
        %971 = vdwg.mxu0
        %vm972 = vcmask 257024
        %973 = vst.msk [vmem:[%s865] sm:$0xf] %vm972, %v969
        %v974 = vpack.c.bf16 %v969, %v969
        %v975 = vld [vmem:[%s14] sm:$0xf]
        %v976 = vld [vmem:[%s14 + $0x4] sm:$0xf]
        %v977 = vld [vmem:[%s14 + $0x8] sm:$0xf]
        %v978 = vld [vmem:[%s14 + $0xc] sm:$0xf]
        %v979 = vld [vmem:[%s15] sm:$0x1]
        %v981 = vperm.slane %v979, 0
        %v987 = vunpack.c.l.b16 %v975
        %v988 = vunpack.c.l.b16 %v976
        %v989 = vunpack.c.l.b16 %v977
        %v990 = vunpack.c.l.b16 %v978
        %v991 = vpack.c.b16 %v988, %v987
        %v992 = vpack.c.b16 %v990, %v989
        %v996 = vsel %vm916, %v974, 0
        %998 = vmatpush.bf16.msra.mxu0 0
        %999 = vmatpush.bf16.msra.mxu0 0
        %1000 = vmatpush.bf16.msra.mxu0 0
        %1001 = vmatpush.bf16.msra.mxu0 0
        %1002 = vmatpush.bf16.msra.mxu0 0
        %1003 = vmatpush.bf16.msra.mxu0 0
        %1004 = vmatpush.bf16.msra.mxu0 %v992
        %1005 = vmatpush.bf16.msra.mxu0 %v991
        %1006 = vmatmul.bf16.gmra.mxu0 %v996
        %v1007 = vpop.f32.mrf.mxu0
        %v1008 = vadd.f32 %v981, %v1007
        %v1009 = vpop.f32.mrf.mxu0
        %1010 = vdwg.mxu0
        %v1011 = vpack.c.bf16 %v1008, %v1008
        %v1012 = vld [vmem:[%s16] sm:$0xf]
        %v1013 = vld [vmem:[%s16 + $0x4] sm:$0xf]
        %v1014 = vld [vmem:[%s16 + $0x8] sm:$0xf]
        %v1015 = vld [vmem:[%s16 + $0xc] sm:$0xf]
        %v1020 = vunpack.c.l.b16 %v1012
        %v1021 = vunpack.c.l.b16 %v1013
        %v1022 = vunpack.c.l.b16 %v1014
        %v1023 = vunpack.c.l.b16 %v1015
        %v1024 = vpack.c.b16 %v1021, %v1020
        %v1025 = vpack.c.b16 %v1023, %v1022
        %v1029 = vsel %vm916, %v1011, 0
        %1031 = vmatpush.bf16.msra.mxu0 0
        %1032 = vmatpush.bf16.msra.mxu0 0
        %1033 = vmatpush.bf16.msra.mxu0 0
        %1034 = vmatpush.bf16.msra.mxu0 0
        %1035 = vmatpush.bf16.msra.mxu0 0
        %1036 = vmatpush.bf16.msra.mxu0 0
        %1037 = vmatpush.bf16.msra.mxu0 %v1025
        %1038 = vmatpush.bf16.msra.mxu0 %v1024
        %1039 = vmatmul.bf16.gmra.mxu0 %v1029
        %v1040 = vpop.f32.mrf.mxu0
        %v1041 = vadd.f32 0.0, %v1040
        %v1042 = vpop.f32.mrf.mxu0
        %1043 = vdwg.mxu0
        %v1044 = vpack.c.bf16 %v887, %v886
        %v1045 = vpack.c.bf16 %v889, %v888
        %v1046 = vpack.c.bf16 %v891, %v890
        %v1047 = vpack.c.bf16 %v893, %v892
        %v1048 = vpack.c.bf16 %v1041, %v1041
        %v1049 = vld [vmem:[%s17] sm:$0x1]
        %v1051 = vperm.slane %v1049, 0
        %vm1053 = vcmask 31744
        %v1055 = vsel %vm1053, %v1044, 0
        %v1058 = vsel %vm1053, %v1045, 0
        %v1061 = vsel %vm1053, %v1046, 0
        %v1064 = vsel %vm1053, %v1047, 0
        %vm1066 = vcmask 1041408
        %v1068 = vsel %vm1066, %v1048, 0
        %1070 = vmatpush.bf16.msra.mxu0 0
        %1071 = vmatpush.bf16.msra.mxu0 0
        %1072 = vmatpush.bf16.msra.mxu0 0
        %1073 = vmatpush.bf16.msra.mxu0 0
        %1074 = vmatpush.bf16.msra.mxu0 0
        %1075 = vmatpush.bf16.msra.mxu0 0
        %1076 = vmatpush.bf16.msra.mxu0 0
        %1077 = vmatpush.bf16.msra.mxu0 %v1068
        %1078 = vmatmul.bf16.gmra.mxu0 %v1055
        %v1079 = vpop.f32.mrf.mxu0
        %v1080 = vadd.f32 %v1051, %v1079
        %v1081 = vpop.f32.mrf.mxu0
        %v1082 = vadd.f32 %v1051, %v1081
        %1083 = vmatmul.bf16.gmra.mxu0 %v1058
        %v1084 = vpop.f32.mrf.mxu0
        %v1085 = vadd.f32 %v1051, %v1084
        %v1086 = vpop.f32.mrf.mxu0
        %v1087 = vadd.f32 %v1051, %v1086
        %1088 = vmatmul.bf16.gmra.mxu0 %v1061
        %v1089 = vpop.f32.mrf.mxu0
        %v1090 = vadd.f32 %v1051, %v1089
        %v1091 = vpop.f32.mrf.mxu0
        %v1092 = vadd.f32 %v1051, %v1091
        %1093 = vmatmul.bf16.gmra.mxu0 %v1064
        %v1094 = vpop.f32.mrf.mxu0
        %v1095 = vadd.f32 %v1051, %v1094
        %v1096 = vpop.f32.mrf.mxu0
        %v1097 = vadd.f32 %v1051, %v1096
        %1098 = vdwg.mxu0
        %v1099 = vpack.c.bf16 %v1082, %v1080
        %v1100 = vpack.c.bf16 %v1087, %v1085
        %v1101 = vpack.c.bf16 %v1092, %v1090
        %v1102 = vpack.c.bf16 %v1097, %v1095
        %v1103 = vld [vmem:[%s18] sm:$0xf]
        %v1104 = vld [vmem:[%s18 + $0x4] sm:$0xf]
        %v1105 = vld [vmem:[%s18 + $0x8] sm:$0xf]
        %v1106 = vld [vmem:[%s18 + $0xc] sm:$0xf]
        %v1107 = vld [vmem:[%s19] sm:$0x1]
        %v1109 = vperm.slane %v1107, 0
        %v1115 = vunpack.c.l.b16 %v1103
        %v1116 = vunpack.c.l.b16 %v1104
        %v1117 = vunpack.c.l.b16 %v1105
        %v1118 = vunpack.c.l.b16 %v1106
        %v1119 = vpack.c.b16 %v1116, %v1115
        %v1120 = vpack.c.b16 %v1118, %v1117
        %v1124 = vsel %vm916, %v1099, 0
        %v1127 = vsel %vm916, %v1100, 0
        %v1130 = vsel %vm916, %v1101, 0
        %v1133 = vsel %vm916, %v1102, 0
        %1135 = vmatpush.bf16.msra.mxu0 0
        %1136 = vmatpush.bf16.msra.mxu0 0
        %1137 = vmatpush.bf16.msra.mxu0 0
        %1138 = vmatpush.bf16.msra.mxu0 0
        %1139 = vmatpush.bf16.msra.mxu0 0
        %1140 = vmatpush.bf16.msra.mxu0 0
        %1141 = vmatpush.bf16.msra.mxu0 %v1120
        %1142 = vmatpush.bf16.msra.mxu0 %v1119
        %1143 = vmatmul.bf16.gmra.mxu0 %v1124
        %v1144 = vpop.f32.mrf.mxu0
        %v1145 = vadd.f32 %v1109, %v1144
        %v1146 = vpop.f32.mrf.mxu0
        %v1147 = vadd.f32 %v1109, %v1146
        %1148 = vmatmul.bf16.gmra.mxu0 %v1127
        %v1149 = vpop.f32.mrf.mxu0
        %v1150 = vadd.f32 %v1109, %v1149
        %v1151 = vpop.f32.mrf.mxu0
        %v1152 = vadd.f32 %v1109, %v1151
        %1153 = vmatmul.bf16.gmra.mxu0 %v1130
        %v1154 = vpop.f32.mrf.mxu0
        %v1155 = vadd.f32 %v1109, %v1154
        %v1156 = vpop.f32.mrf.mxu0
        %v1157 = vadd.f32 %v1109, %v1156
        %1158 = vmatmul.bf16.gmra.mxu0 %v1133
        %v1159 = vpop.f32.mrf.mxu0
        %v1160 = vadd.f32 %v1109, %v1159
        %v1161 = vpop.f32.mrf.mxu0
        %v1162 = vadd.f32 %v1109, %v1161
        %1163 = vdwg.mxu0
        %v1164 = vld [vmem:[%s5] sm:$0xff]
        %v1165 = vld [vmem:[%s5 + $0x8] sm:$0xff]
        %v1166 = vld [vmem:[%s5 + $0x10] sm:$0xff]
        %v1167 = vld [vmem:[%s5 + $0x18] sm:$0xff]
        %v1168 = vld [vmem:[%s5 + $0x20] sm:$0xff]
        %v1169 = vld [vmem:[%s5 + $0x28] sm:$0xff]
        %v1170 = vld [vmem:[%s5 + $0x30] sm:$0xff]
        %v1171 = vld [vmem:[%s5 + $0x38] sm:$0xff]
        %vm1172 = vcmp.gt.f32.partialorder %v1164, 0.5
        %vm1173 = vcmp.gt.f32.partialorder %v1165, 0.5
        %vm1174 = vcmp.gt.f32.partialorder %v1166, 0.5
        %vm1175 = vcmp.gt.f32.partialorder %v1167, 0.5
        %vm1176 = vcmp.gt.f32.partialorder %v1168, 0.5
        %vm1177 = vcmp.gt.f32.partialorder %v1169, 0.5
        %vm1178 = vcmp.gt.f32.partialorder %v1170, 0.5
        %vm1179 = vcmp.gt.f32.partialorder %v1171, 0.5
        %v1180 = vsel %vm1172, 1, 0
        %v1181 = vsel %vm1173, 1, 0
        %v1182 = vsel %vm1174, 1, 0
        %v1183 = vsel %vm1175, 1, 0
        %v1184 = vsel %vm1176, 1, 0
        %v1185 = vsel %vm1177, 1, 0
        %v1186 = vsel %vm1178, 1, 0
        %v1187 = vsel %vm1179, 1, 0
        %1188 = vset.pattern.permute.xlu0 0
        %1189 = vperm.xlu0 %1188, %v1180
        %v1190 = vpop.permute.xlu0 %1189
        %1191 = vset.pattern.permute.xlu0 0
        %1192 = vperm.xlu0 %1191, %v1181
        %v1193 = vpop.permute.xlu0 %1192
        %1194 = vset.pattern.permute.xlu0 0
        %1195 = vperm.xlu0 %1194, %v1182
        %v1196 = vpop.permute.xlu0 %1195
        %1197 = vset.pattern.permute.xlu0 0
        %1198 = vperm.xlu0 %1197, %v1183
        %v1199 = vpop.permute.xlu0 %1198
        %1200 = vset.pattern.permute.xlu0 0
        %1201 = vperm.xlu0 %1200, %v1184
        %v1202 = vpop.permute.xlu0 %1201
        %1203 = vset.pattern.permute.xlu0 0
        %1204 = vperm.xlu0 %1203, %v1185
        %v1205 = vpop.permute.xlu0 %1204
        %1206 = vset.pattern.permute.xlu0 0
        %1207 = vperm.xlu0 %1206, %v1186
        %v1208 = vpop.permute.xlu0 %1207
        %1209 = vset.pattern.permute.xlu0 0
        %1210 = vperm.xlu0 %1209, %v1187
        %v1211 = vpop.permute.xlu0 %1210
        %vm1212 = vcmp.eq.s32.totalorder %v1190, 1
        %vm1213 = vcmp.eq.s32.totalorder %v1193, 1
        %vm1214 = vcmp.eq.s32.totalorder %v1196, 1
        %vm1215 = vcmp.eq.s32.totalorder %v1199, 1
        %vm1216 = vcmp.eq.s32.totalorder %v1202, 1
        %vm1217 = vcmp.eq.s32.totalorder %v1205, 1
        %vm1218 = vcmp.eq.s32.totalorder %v1208, 1
        %vm1219 = vcmp.eq.s32.totalorder %v1211, 1
        %vm1228 = vcmask 1040384
        %v1229 = vrot.slane 0.0, 7
        %v1230 = vsel %vm1228, %v1229, %v1229
        %v1231 = vrot.slane %v886, 7
        %v1232 = vsel %vm1228, %v1229, %v1231
        %v1233 = vrot.slane %v887, 7
        %v1234 = vsel %vm1228, %v1231, %v1233
        %v1235 = vrot.slane %v888, 7
        %v1236 = vsel %vm1228, %v1233, %v1235
        %v1237 = vrot.slane %v889, 7
        %v1238 = vsel %vm1228, %v1235, %v1237
        %v1239 = vrot.slane %v890, 7
        %v1240 = vsel %vm1228, %v1237, %v1239
        %v1241 = vrot.slane %v891, 7
        %v1242 = vsel %vm1228, %v1239, %v1241
        %v1243 = vrot.slane %v892, 7
        %v1244 = vsel %vm1228, %v1241, %v1243
        %v1253 = vsel %vm1212, %v1230, 0.0
        %v1254 = vsel %vm1213, %v1232, 0.0
        %v1255 = vsel %vm1214, %v1234, 0.0
        %v1256 = vsel %vm1215, %v1236, 0.0
        %v1257 = vsel %vm1216, %v1238, 0.0
        %v1258 = vsel %vm1217, %v1240, 0.0
        %v1259 = vsel %vm1218, %v1242, 0.0
        %v1260 = vsel %vm1219, %v1244, 0.0
        %1261 = vset.pattern.permute.xlu0 1
        %1262 = vperm.xlu0 %1261, %v1180
        %v1263 = vpop.permute.xlu0 %1262
        %1264 = vset.pattern.permute.xlu0 1
        %1265 = vperm.xlu0 %1264, %v1181
        %v1266 = vpop.permute.xlu0 %1265
        %1267 = vset.pattern.permute.xlu0 1
        %1268 = vperm.xlu0 %1267, %v1182
        %v1269 = vpop.permute.xlu0 %1268
        %1270 = vset.pattern.permute.xlu0 1
        %1271 = vperm.xlu0 %1270, %v1183
        %v1272 = vpop.permute.xlu0 %1271
        %1273 = vset.pattern.permute.xlu0 1
        %1274 = vperm.xlu0 %1273, %v1184
        %v1275 = vpop.permute.xlu0 %1274
        %1276 = vset.pattern.permute.xlu0 1
        %1277 = vperm.xlu0 %1276, %v1185
        %v1278 = vpop.permute.xlu0 %1277
        %1279 = vset.pattern.permute.xlu0 1
        %1280 = vperm.xlu0 %1279, %v1186
        %v1281 = vpop.permute.xlu0 %1280
        %1282 = vset.pattern.permute.xlu0 1
        %1283 = vperm.xlu0 %1282, %v1187
        %v1284 = vpop.permute.xlu0 %1283
        %vm1285 = vcmp.eq.s32.totalorder %v1263, 1
        %vm1286 = vcmp.eq.s32.totalorder %v1266, 1
        %vm1287 = vcmp.eq.s32.totalorder %v1269, 1
        %vm1288 = vcmp.eq.s32.totalorder %v1272, 1
        %vm1289 = vcmp.eq.s32.totalorder %v1275, 1
        %vm1290 = vcmp.eq.s32.totalorder %v1278, 1
        %vm1291 = vcmp.eq.s32.totalorder %v1281, 1
        %vm1292 = vcmp.eq.s32.totalorder %v1284, 1
        %vm1294 = vcmask 1046528
        %v1295 = vrot.slane 0.0, 1
        %v1296 = vrot.slane %v886, 1
        %v1297 = vsel %vm1294, %v1295, %v1296
        %v1298 = vrot.slane %v887, 1
        %v1299 = vsel %vm1294, %v1296, %v1298
        %v1300 = vrot.slane %v888, 1
        %v1301 = vsel %vm1294, %v1298, %v1300
        %v1302 = vrot.slane %v889, 1
        %v1303 = vsel %vm1294, %v1300, %v1302
        %v1304 = vrot.slane %v890, 1
        %v1305 = vsel %vm1294, %v1302, %v1304
        %v1306 = vrot.slane %v891, 1
        %v1307 = vsel %vm1294, %v1304, %v1306
        %v1308 = vrot.slane %v892, 1
        %v1309 = vsel %vm1294, %v1306, %v1308
        %v1310 = vrot.slane %v893, 1
        %v1311 = vsel %vm1294, %v1308, %v1310
        %v1320 = vsel %vm1285, %v1297, 0.0
        %v1321 = vsel %vm1286, %v1299, 0.0
        %v1322 = vsel %vm1287, %v1301, 0.0
        %v1323 = vsel %vm1288, %v1303, 0.0
        %v1324 = vsel %vm1289, %v1305, 0.0
        %v1325 = vsel %vm1290, %v1307, 0.0
        %v1326 = vsel %vm1291, %v1309, 0.0
        %v1327 = vsel %vm1292, %v1311, 0.0
        %v1328 = vrot.slane %v893, 7
        %v1329 = vsel %vm1228, %v1243, %v1328
        %v1331 = vsel %vm1212, %v1232, 0.0
        %v1332 = vsel %vm1213, %v1234, 0.0
        %v1333 = vsel %vm1214, %v1236, 0.0
        %v1334 = vsel %vm1215, %v1238, 0.0
        %v1335 = vsel %vm1216, %v1240, 0.0
        %v1336 = vsel %vm1217, %v1242, 0.0
        %v1337 = vsel %vm1218, %v1244, 0.0
        %v1338 = vsel %vm1219, %v1329, 0.0
        %v1339 = vsel %vm1294, %v1310, %v1295
        %v1341 = vsel %vm1285, %v1299, 0.0
        %v1342 = vsel %vm1286, %v1301, 0.0
        %v1343 = vsel %vm1287, %v1303, 0.0
        %v1344 = vsel %vm1288, %v1305, 0.0
        %v1345 = vsel %vm1289, %v1307, 0.0
        %v1346 = vsel %vm1290, %v1309, 0.0
        %v1347 = vsel %vm1291, %v1311, 0.0
        %v1348 = vsel %vm1292, %v1339, 0.0
        %v1349 = vsel %vm1228, %v1328, %v1229
        %v1351 = vsel %vm1212, %v1234, 0.0
        %v1352 = vsel %vm1213, %v1236, 0.0
        %v1353 = vsel %vm1214, %v1238, 0.0
        %v1354 = vsel %vm1215, %v1240, 0.0
        %v1355 = vsel %vm1216, %v1242, 0.0
        %v1356 = vsel %vm1217, %v1244, 0.0
        %v1357 = vsel %vm1218, %v1329, 0.0
        %v1358 = vsel %vm1219, %v1349, 0.0
        %v1359 = vsel %vm1294, %v1295, %v1295
        %v1361 = vsel %vm1285, %v1301, 0.0
        %v1362 = vsel %vm1286, %v1303, 0.0
        %v1363 = vsel %vm1287, %v1305, 0.0
        %v1364 = vsel %vm1288, %v1307, 0.0
        %v1365 = vsel %vm1289, %v1309, 0.0
        %v1366 = vsel %vm1290, %v1311, 0.0
        %v1367 = vsel %vm1291, %v1339, 0.0
        %v1368 = vsel %vm1292, %v1359, 0.0
        %1369 = vrot.lane.b32.xlu0 0.0, 4
        %v1370 = vpop.permute.xlu0 %1369
        %1371 = vrot.lane.b32.xlu0 %v886, 4
        %v1372 = vpop.permute.xlu0 %1371
        %1373 = vrot.lane.b32.xlu0 %v887, 4
        %v1374 = vpop.permute.xlu0 %1373
        %1375 = vrot.lane.b32.xlu0 %v888, 4
        %v1376 = vpop.permute.xlu0 %1375
        %1377 = vrot.lane.b32.xlu0 %v889, 4
        %v1378 = vpop.permute.xlu0 %1377
        %1379 = vrot.lane.b32.xlu0 %v890, 4
        %v1380 = vpop.permute.xlu0 %1379
        %1381 = vrot.lane.b32.xlu0 %v891, 4
        %v1382 = vpop.permute.xlu0 %1381
        %1383 = vrot.lane.b32.xlu0 %v892, 4
        %v1384 = vpop.permute.xlu0 %1383
        %1401 = vrot.lane.b32.xlu0 %v1320, 8
        %v1402 = vpop.permute.xlu0 %1401
        %1403 = vrot.lane.b32.xlu0 %v1321, 8
        %v1404 = vpop.permute.xlu0 %1403
        %1405 = vrot.lane.b32.xlu0 %v1322, 8
        %v1406 = vpop.permute.xlu0 %1405
        %1407 = vrot.lane.b32.xlu0 %v1323, 8
        %v1408 = vpop.permute.xlu0 %1407
        %1409 = vrot.lane.b32.xlu0 %v1324, 8
        %v1410 = vpop.permute.xlu0 %1409
        %1411 = vrot.lane.b32.xlu0 %v1325, 8
        %v1412 = vpop.permute.xlu0 %1411
        %1413 = vrot.lane.b32.xlu0 %v1326, 8
        %v1414 = vpop.permute.xlu0 %1413
        %1415 = vrot.lane.b32.xlu0 %v1327, 8
        %v1416 = vpop.permute.xlu0 %1415
        %1433 = vrot.lane.b32.xlu0 %v1331, 12
        %v1434 = vpop.permute.xlu0 %1433
        %1435 = vrot.lane.b32.xlu0 %v1332, 12
        %v1436 = vpop.permute.xlu0 %1435
        %1437 = vrot.lane.b32.xlu0 %v1333, 12
        %v1438 = vpop.permute.xlu0 %1437
        %1439 = vrot.lane.b32.xlu0 %v1334, 12
        %v1440 = vpop.permute.xlu0 %1439
        %1441 = vrot.lane.b32.xlu0 %v1335, 12
        %v1442 = vpop.permute.xlu0 %1441
        %1443 = vrot.lane.b32.xlu0 %v1336, 12
        %v1444 = vpop.permute.xlu0 %1443
        %1445 = vrot.lane.b32.xlu0 %v1337, 12
        %v1446 = vpop.permute.xlu0 %1445
        %1447 = vrot.lane.b32.xlu0 %v1338, 12
        %v1448 = vpop.permute.xlu0 %1447
        %1457 = vrot.lane.b32.xlu0 %v886, 16
        %v1458 = vpop.permute.xlu0 %1457
        %1459 = vrot.lane.b32.xlu0 %v887, 16
        %v1460 = vpop.permute.xlu0 %1459
        %1461 = vrot.lane.b32.xlu0 %v888, 16
        %v1462 = vpop.permute.xlu0 %1461
        %1463 = vrot.lane.b32.xlu0 %v889, 16
        %v1464 = vpop.permute.xlu0 %1463
        %1465 = vrot.lane.b32.xlu0 %v890, 16
        %v1466 = vpop.permute.xlu0 %1465
        %1467 = vrot.lane.b32.xlu0 %v891, 16
        %v1468 = vpop.permute.xlu0 %1467
        %1469 = vrot.lane.b32.xlu0 %v892, 16
        %v1470 = vpop.permute.xlu0 %1469
        %1471 = vrot.lane.b32.xlu0 %v893, 16
        %v1472 = vpop.permute.xlu0 %1471
        %1489 = vrot.lane.b32.xlu0 %v1341, 20
        %v1490 = vpop.permute.xlu0 %1489
        %1491 = vrot.lane.b32.xlu0 %v1342, 20
        %v1492 = vpop.permute.xlu0 %1491
        %1493 = vrot.lane.b32.xlu0 %v1343, 20
        %v1494 = vpop.permute.xlu0 %1493
        %1495 = vrot.lane.b32.xlu0 %v1344, 20
        %v1496 = vpop.permute.xlu0 %1495
        %1497 = vrot.lane.b32.xlu0 %v1345, 20
        %v1498 = vpop.permute.xlu0 %1497
        %1499 = vrot.lane.b32.xlu0 %v1346, 20
        %v1500 = vpop.permute.xlu0 %1499
        %1501 = vrot.lane.b32.xlu0 %v1347, 20
        %v1502 = vpop.permute.xlu0 %1501
        %1503 = vrot.lane.b32.xlu0 %v1348, 20
        %v1504 = vpop.permute.xlu0 %1503
        %1521 = vrot.lane.b32.xlu0 %v1351, 24
        %v1522 = vpop.permute.xlu0 %1521
        %1523 = vrot.lane.b32.xlu0 %v1352, 24
        %v1524 = vpop.permute.xlu0 %1523
        %1525 = vrot.lane.b32.xlu0 %v1353, 24
        %v1526 = vpop.permute.xlu0 %1525
        %1527 = vrot.lane.b32.xlu0 %v1354, 24
        %v1528 = vpop.permute.xlu0 %1527
        %1529 = vrot.lane.b32.xlu0 %v1355, 24
        %v1530 = vpop.permute.xlu0 %1529
        %1531 = vrot.lane.b32.xlu0 %v1356, 24
        %v1532 = vpop.permute.xlu0 %1531
        %1533 = vrot.lane.b32.xlu0 %v1357, 24
        %v1534 = vpop.permute.xlu0 %1533
        %1535 = vrot.lane.b32.xlu0 %v1358, 24
        %v1536 = vpop.permute.xlu0 %1535
        %1545 = vrot.lane.b32.xlu0 %v887, 28
        %v1546 = vpop.permute.xlu0 %1545
        %1547 = vrot.lane.b32.xlu0 %v888, 28
        %v1548 = vpop.permute.xlu0 %1547
        %1549 = vrot.lane.b32.xlu0 %v889, 28
        %v1550 = vpop.permute.xlu0 %1549
        %1551 = vrot.lane.b32.xlu0 %v890, 28
        %v1552 = vpop.permute.xlu0 %1551
        %1553 = vrot.lane.b32.xlu0 %v891, 28
        %v1554 = vpop.permute.xlu0 %1553
        %1555 = vrot.lane.b32.xlu0 %v892, 28
        %v1556 = vpop.permute.xlu0 %1555
        %1557 = vrot.lane.b32.xlu0 %v893, 28
        %v1558 = vpop.permute.xlu0 %1557
        %1559 = vrot.lane.b32.xlu0 0.0, 28
        %v1560 = vpop.permute.xlu0 %1559
        %1577 = vrot.lane.b32.xlu0 %v1361, 32
        %v1578 = vpop.permute.xlu0 %1577
        %1579 = vrot.lane.b32.xlu0 %v1362, 32
        %v1580 = vpop.permute.xlu0 %1579
        %1581 = vrot.lane.b32.xlu0 %v1363, 32
        %v1582 = vpop.permute.xlu0 %1581
        %1583 = vrot.lane.b32.xlu0 %v1364, 32
        %v1584 = vpop.permute.xlu0 %1583
        %1585 = vrot.lane.b32.xlu0 %v1365, 32
        %v1586 = vpop.permute.xlu0 %1585
        %1587 = vrot.lane.b32.xlu0 %v1366, 32
        %v1588 = vpop.permute.xlu0 %1587
        %1589 = vrot.lane.b32.xlu0 %v1367, 32
        %v1590 = vpop.permute.xlu0 %1589
        %1591 = vrot.lane.b32.xlu0 %v1368, 32
        %v1592 = vpop.permute.xlu0 %1591
        %v1601 = vsel %vm1053, %v1253, %v1370
        %v1602 = vsel %vm1053, %v1254, %v1372
        %v1603 = vsel %vm1053, %v1255, %v1374
        %v1604 = vsel %vm1053, %v1256, %v1376
        %v1605 = vsel %vm1053, %v1257, %v1378
        %v1606 = vsel %vm1053, %v1258, %v1380
        %v1607 = vsel %vm1053, %v1259, %v1382
        %v1608 = vsel %vm1053, %v1260, %v1384
        %vm1609 = vcmask 64512
        %v1610 = vsel %vm1609, %v1601, %v1402
        %v1611 = vsel %vm1609, %v1602, %v1404
        %v1612 = vsel %vm1609, %v1603, %v1406
        %v1613 = vsel %vm1609, %v1604, %v1408
        %v1614 = vsel %vm1609, %v1605, %v1410
        %v1615 = vsel %vm1609, %v1606, %v1412
        %v1616 = vsel %vm1609, %v1607, %v1414
        %v1617 = vsel %vm1609, %v1608, %v1416
        %vm1618 = vcmask 97280
        %v1619 = vsel %vm1618, %v1610, %v1434
        %v1620 = vsel %vm1618, %v1611, %v1436
        %v1621 = vsel %vm1618, %v1612, %v1438
        %v1622 = vsel %vm1618, %v1613, %v1440
        %v1623 = vsel %vm1618, %v1614, %v1442
        %v1624 = vsel %vm1618, %v1615, %v1444
        %v1625 = vsel %vm1618, %v1616, %v1446
        %v1626 = vsel %vm1618, %v1617, %v1448
        %vm1627 = vcmask 130048
        %v1628 = vsel %vm1627, %v1619, %v1458
        %v1629 = vsel %vm1627, %v1620, %v1460
        %v1630 = vsel %vm1627, %v1621, %v1462
        %v1631 = vsel %vm1627, %v1622, %v1464
        %v1632 = vsel %vm1627, %v1623, %v1466
        %v1633 = vsel %vm1627, %v1624, %v1468
        %v1634 = vsel %vm1627, %v1625, %v1470
        %v1635 = vsel %vm1627, %v1626, %v1472
        %vm1636 = vcmask 162816
        %v1637 = vsel %vm1636, %v1628, %v1490
        %v1638 = vsel %vm1636, %v1629, %v1492
        %v1639 = vsel %vm1636, %v1630, %v1494
        %v1640 = vsel %vm1636, %v1631, %v1496
        %v1641 = vsel %vm1636, %v1632, %v1498
        %v1642 = vsel %vm1636, %v1633, %v1500
        %v1643 = vsel %vm1636, %v1634, %v1502
        %v1644 = vsel %vm1636, %v1635, %v1504
        %vm1645 = vcmask 195584
        %v1646 = vsel %vm1645, %v1637, %v1522
        %v1647 = vsel %vm1645, %v1638, %v1524
        %v1648 = vsel %vm1645, %v1639, %v1526
        %v1649 = vsel %vm1645, %v1640, %v1528
        %v1650 = vsel %vm1645, %v1641, %v1530
        %v1651 = vsel %vm1645, %v1642, %v1532
        %v1652 = vsel %vm1645, %v1643, %v1534
        %v1653 = vsel %vm1645, %v1644, %v1536
        %vm1654 = vcmask 228352
        %v1655 = vsel %vm1654, %v1646, %v1546
        %v1656 = vsel %vm1654, %v1647, %v1548
        %v1657 = vsel %vm1654, %v1648, %v1550
        %v1658 = vsel %vm1654, %v1649, %v1552
        %v1659 = vsel %vm1654, %v1650, %v1554
        %v1660 = vsel %vm1654, %v1651, %v1556
        %v1661 = vsel %vm1654, %v1652, %v1558
        %v1662 = vsel %vm1654, %v1653, %v1560
        %v1663 = vsel %vm916, %v1655, %v1578
        %v1664 = vsel %vm916, %v1656, %v1580
        %v1665 = vsel %vm916, %v1657, %v1582
        %v1666 = vsel %vm916, %v1658, %v1584
        %v1667 = vsel %vm916, %v1659, %v1586
        %v1668 = vsel %vm916, %v1660, %v1588
        %v1669 = vsel %vm916, %v1661, %v1590
        %v1670 = vsel %vm916, %v1662, %v1592
        %v1671 = vpack.c.bf16 %v1664, %v1663
        %v1672 = vpack.c.bf16 %v1666, %v1665
        %v1673 = vpack.c.bf16 %v1668, %v1667
        %v1674 = vpack.c.bf16 %v1670, %v1669
        %v1675 = vld [vmem:[%s20] sm:$0xf]
        %v1676 = vld [vmem:[%s20 + $0x4] sm:$0xf]
        %v1677 = vld [vmem:[%s20 + $0x8] sm:$0xf]
        %v1678 = vld [vmem:[%s20 + $0xc] sm:$0xf]
        %v1679 = vld [vmem:[%s20 + $0x10] sm:$0x3]
        %v1680 = vld [vmem:[%s21] sm:$0x1]
        %v1682 = vperm.slane %v1680, 0
        %v1689 = vunpack.c.l.b16 %v1675
        %v1690 = vunpack.c.l.b16 %v1676
        %v1691 = vunpack.c.l.b16 %v1677
        %v1692 = vunpack.c.l.b16 %v1678
        %v1693 = vunpack.c.l.b16 %v1679
        %v1694 = vpack.c.b16 %v1690, %v1689
        %v1695 = vpack.c.b16 %v1692, %v1691
        %v1696 = vpack.c.b16 %v1693, %v1693
        %vm1699 = vcmask 293888
        %v1701 = vsel %vm1699, %v1671, 0
        %v1704 = vsel %vm1699, %v1672, 0
        %v1707 = vsel %vm1699, %v1673, 0
        %v1710 = vsel %vm1699, %v1674, 0
        %v1713 = vsel %vm1066, %v1696, 0
        %1715 = vmatpush.bf16.msra.mxu0 0
        %1716 = vmatpush.bf16.msra.mxu0 0
        %1717 = vmatpush.bf16.msra.mxu0 0
        %1718 = vmatpush.bf16.msra.mxu0 0
        %1719 = vmatpush.bf16.msra.mxu0 0
        %1720 = vmatpush.bf16.msra.mxu0 %v1713
        %1721 = vmatpush.bf16.msra.mxu0 %v1695
        %1722 = vmatpush.bf16.msra.mxu0 %v1694
        %1723 = vmatmul.bf16.gmra.mxu0 %v1701
        %v1724 = vpop.f32.mrf.mxu0
        %v1725 = vadd.f32 %v1682, %v1724
        %v1726 = vpop.f32.mrf.mxu0
        %v1727 = vadd.f32 %v1682, %v1726
        %1728 = vmatmul.bf16.gmra.mxu0 %v1704
        %v1729 = vpop.f32.mrf.mxu0
        %v1730 = vadd.f32 %v1682, %v1729
        %v1731 = vpop.f32.mrf.mxu0
        %v1732 = vadd.f32 %v1682, %v1731
        %1733 = vmatmul.bf16.gmra.mxu0 %v1707
        %v1734 = vpop.f32.mrf.mxu0
        %v1735 = vadd.f32 %v1682, %v1734
        %v1736 = vpop.f32.mrf.mxu0
        %v1737 = vadd.f32 %v1682, %v1736
        %1738 = vmatmul.bf16.gmra.mxu0 %v1710
        %v1739 = vpop.f32.mrf.mxu0
        %v1740 = vadd.f32 %v1682, %v1739
        %v1741 = vpop.f32.mrf.mxu0
        %v1742 = vadd.f32 %v1682, %v1741
        %1743 = vdwg.mxu0
        %v1744 = vmax.f32 %v1725, 0.0
        %v1745 = vmax.f32 %v1727, 0.0
        %v1746 = vmax.f32 %v1730, 0.0
        %v1747 = vmax.f32 %v1732, 0.0
        %v1748 = vmax.f32 %v1735, 0.0
        %v1749 = vmax.f32 %v1737, 0.0
        %v1750 = vmax.f32 %v1740, 0.0
        %v1751 = vmax.f32 %v1742, 0.0
        %v1759 = vrot.slane %v1744, 7
        %v1760 = vsel %vm1228, %v1229, %v1759
        %v1761 = vrot.slane %v1745, 7
        %v1762 = vsel %vm1228, %v1759, %v1761
        %v1763 = vrot.slane %v1746, 7
        %v1764 = vsel %vm1228, %v1761, %v1763
        %v1765 = vrot.slane %v1747, 7
        %v1766 = vsel %vm1228, %v1763, %v1765
        %v1767 = vrot.slane %v1748, 7
        %v1768 = vsel %vm1228, %v1765, %v1767
        %v1769 = vrot.slane %v1749, 7
        %v1770 = vsel %vm1228, %v1767, %v1769
        %v1771 = vrot.slane %v1750, 7
        %v1772 = vsel %vm1228, %v1769, %v1771
        %v1780 = vsel %vm1213, %v1760, 0.0
        %v1781 = vsel %vm1214, %v1762, 0.0
        %v1782 = vsel %vm1215, %v1764, 0.0
        %v1783 = vsel %vm1216, %v1766, 0.0
        %v1784 = vsel %vm1217, %v1768, 0.0
        %v1785 = vsel %vm1218, %v1770, 0.0
        %v1786 = vsel %vm1219, %v1772, 0.0
        %v1788 = vrot.slane %v1744, 1
        %v1789 = vsel %vm1294, %v1295, %v1788
        %v1790 = vrot.slane %v1745, 1
        %v1791 = vsel %vm1294, %v1788, %v1790
        %v1792 = vrot.slane %v1746, 1
        %v1793 = vsel %vm1294, %v1790, %v1792
        %v1794 = vrot.slane %v1747, 1
        %v1795 = vsel %vm1294, %v1792, %v1794
        %v1796 = vrot.slane %v1748, 1
        %v1797 = vsel %vm1294, %v1794, %v1796
        %v1798 = vrot.slane %v1749, 1
        %v1799 = vsel %vm1294, %v1796, %v1798
        %v1800 = vrot.slane %v1750, 1
        %v1801 = vsel %vm1294, %v1798, %v1800
        %v1802 = vrot.slane %v1751, 1
        %v1803 = vsel %vm1294, %v1800, %v1802
        %v1812 = vsel %vm1285, %v1789, 0.0
        %v1813 = vsel %vm1286, %v1791, 0.0
        %v1814 = vsel %vm1287, %v1793, 0.0
        %v1815 = vsel %vm1288, %v1795, 0.0
        %v1816 = vsel %vm1289, %v1797, 0.0
        %v1817 = vsel %vm1290, %v1799, 0.0
        %v1818 = vsel %vm1291, %v1801, 0.0
        %v1819 = vsel %vm1292, %v1803, 0.0
        %v1820 = vrot.slane %v1751, 7
        %v1821 = vsel %vm1228, %v1771, %v1820
        %v1823 = vsel %vm1212, %v1760, 0.0
        %v1824 = vsel %vm1213, %v1762, 0.0
        %v1825 = vsel %vm1214, %v1764, 0.0
        %v1826 = vsel %vm1215, %v1766, 0.0
        %v1827 = vsel %vm1216, %v1768, 0.0
        %v1828 = vsel %vm1217, %v1770, 0.0
        %v1829 = vsel %vm1218, %v1772, 0.0
        %v1830 = vsel %vm1219, %v1821, 0.0
        %v1831 = vsel %vm1294, %v1802, %v1295
        %v1833 = vsel %vm1285, %v1791, 0.0
        %v1834 = vsel %vm1286, %v1793, 0.0
        %v1835 = vsel %vm1287, %v1795, 0.0
        %v1836 = vsel %vm1288, %v1797, 0.0
        %v1837 = vsel %vm1289, %v1799, 0.0
        %v1838 = vsel %vm1290, %v1801, 0.0
        %v1839 = vsel %vm1291, %v1803, 0.0
        %v1840 = vsel %vm1292, %v1831, 0.0
        %v1841 = vsel %vm1228, %v1820, %v1229
        %v1843 = vsel %vm1212, %v1762, 0.0
        %v1844 = vsel %vm1213, %v1764, 0.0
        %v1845 = vsel %vm1214, %v1766, 0.0
        %v1846 = vsel %vm1215, %v1768, 0.0
        %v1847 = vsel %vm1216, %v1770, 0.0
        %v1848 = vsel %vm1217, %v1772, 0.0
        %v1849 = vsel %vm1218, %v1821, 0.0
        %v1850 = vsel %vm1219, %v1841, 0.0
        %v1851 = vsel %vm1285, %v1793, 0.0
        %v1852 = vsel %vm1286, %v1795, 0.0
        %v1853 = vsel %vm1287, %v1797, 0.0
        %v1854 = vsel %vm1288, %v1799, 0.0
        %v1855 = vsel %vm1289, %v1801, 0.0
        %v1856 = vsel %vm1290, %v1803, 0.0
        %v1857 = vsel %vm1291, %v1831, 0.0
        %v1858 = vpack.c.bf16 %v1780, %v1253
        %v1859 = vpack.c.bf16 %v1744, 0.0
        %v1860 = vpack.c.bf16 %v1813, %v1812
        %v1861 = vpack.c.bf16 %v1824, %v1823
        %v1862 = vpack.c.bf16 %v1745, %v1744
        %v1863 = vpack.c.bf16 %v1834, %v1833
        %v1864 = vpack.c.bf16 %v1844, %v1843
        %v1865 = vpack.c.bf16 %v1746, %v1745
        %v1866 = vpack.c.bf16 %v1852, %v1851
        %v1867 = vpack.c.bf16 %v1782, %v1781
        %v1868 = vpack.c.bf16 %v1815, %v1814
        %v1869 = vpack.c.bf16 %v1826, %v1825
        %v1870 = vpack.c.bf16 %v1747, %v1746
        %v1871 = vpack.c.bf16 %v1836, %v1835
        %v1872 = vpack.c.bf16 %v1846, %v1845
        %v1873 = vpack.c.bf16 %v1748, %v1747
        %v1874 = vpack.c.bf16 %v1854, %v1853
        %v1875 = vpack.c.bf16 %v1784, %v1783
        %v1876 = vpack.c.bf16 %v1817, %v1816
        %v1877 = vpack.c.bf16 %v1828, %v1827
        %v1878 = vpack.c.bf16 %v1749, %v1748
        %v1879 = vpack.c.bf16 %v1838, %v1837
        %v1880 = vpack.c.bf16 %v1848, %v1847
        %v1881 = vpack.c.bf16 %v1750, %v1749
        %v1882 = vpack.c.bf16 %v1856, %v1855
        %v1883 = vpack.c.bf16 %v1786, %v1785
        %v1884 = vpack.c.bf16 %v1819, %v1818
        %v1885 = vpack.c.bf16 %v1830, %v1829
        %v1886 = vpack.c.bf16 %v1751, %v1750
        %v1887 = vpack.c.bf16 %v1840, %v1839
        %v1888 = vpack.c.bf16 %v1850, %v1849
        %v1889 = vpack.c.bf16 0.0, %v1751
        %v1890 = vpack.c.bf16 %v1368, %v1857
        %v1891 = vld [vmem:[%s22] sm:$0xf]
        %v1892 = vld [vmem:[%s22 + $0x4] sm:$0xf]
        %v1893 = vld [vmem:[%s22 + $0x8] sm:$0xf]
        %v1894 = vld [vmem:[%s22 + $0xc] sm:$0xf]
        %v1895 = vld [vmem:[%s22 + $0x10] sm:$0xf]
        %v1896 = vld [vmem:[%s22 + $0x14] sm:$0xf]
        %v1897 = vld [vmem:[%s22 + $0x18] sm:$0xf]
        %v1898 = vld [vmem:[%s22 + $0x1c] sm:$0xf]
        %v1899 = vld [vmem:[%s22 + $0x20] sm:$0xf]
        %v1900 = vld [vmem:[%s22 + $0x24] sm:$0xf]
        %v1901 = vld [vmem:[%s22 + $0x28] sm:$0xf]
        %v1902 = vld [vmem:[%s22 + $0x2c] sm:$0xf]
        %v1903 = vld [vmem:[%s22 + $0x30] sm:$0xf]
        %v1904 = vld [vmem:[%s22 + $0x34] sm:$0xf]
        %v1905 = vld [vmem:[%s22 + $0x38] sm:$0xf]
        %v1906 = vld [vmem:[%s22 + $0x3c] sm:$0xf]
        %v1907 = vld [vmem:[%s22 + $0x40] sm:$0xf]
        %v1908 = vld [vmem:[%s22 + $0x44] sm:$0xf]
        %v1909 = vld [vmem:[%s22 + $0x48] sm:$0xf]
        %v1910 = vld [vmem:[%s22 + $0x4c] sm:$0xf]
        %v1911 = vld [vmem:[%s22 + $0x50] sm:$0xf]
        %v1912 = vld [vmem:[%s22 + $0x54] sm:$0xf]
        %v1913 = vld [vmem:[%s22 + $0x58] sm:$0xf]
        %v1914 = vld [vmem:[%s22 + $0x5c] sm:$0xf]
        %v1915 = vld [vmem:[%s22 + $0x60] sm:$0xf]
        %v1916 = vld [vmem:[%s22 + $0x64] sm:$0xf]
        %v1917 = vld [vmem:[%s22 + $0x68] sm:$0xf]
        %v1918 = vld [vmem:[%s22 + $0x6c] sm:$0xf]
        %v1919 = vld [vmem:[%s22 + $0x70] sm:$0xf]
        %v1920 = vld [vmem:[%s22 + $0x74] sm:$0xf]
        %v1921 = vld [vmem:[%s22 + $0x78] sm:$0xf]
        %v1922 = vld [vmem:[%s22 + $0x7c] sm:$0xf]
        %v1923 = vld [vmem:[%s22 + $0x80] sm:$0xf]
        %v1924 = vld [vmem:[%s22 + $0x84] sm:$0xf]
        %v1925 = vld [vmem:[%s22 + $0x88] sm:$0xf]
        %v1926 = vld [vmem:[%s22 + $0x8c] sm:$0xf]
        %v1927 = vld [vmem:[%s22 + $0x90] sm:$0xf]
        %v1928 = vld [vmem:[%s22 + $0x94] sm:$0xf]
        %v1929 = vld [vmem:[%s22 + $0x98] sm:$0xf]
        %v1930 = vld [vmem:[%s22 + $0x9c] sm:$0xf]
        %v1931 = vld [vmem:[%s22 + $0xa0] sm:$0xf]
        %v1932 = vld [vmem:[%s22 + $0xa4] sm:$0xf]
        %v1933 = vld [vmem:[%s22 + $0xa8] sm:$0xf]
        %v1934 = vld [vmem:[%s22 + $0xac] sm:$0xf]
        %v1935 = vld [vmem:[%s22 + $0xb0] sm:$0xf]
        %v1936 = vld [vmem:[%s22 + $0xb4] sm:$0xf]
        %v1937 = vld [vmem:[%s22 + $0xb8] sm:$0xf]
        %v1938 = vld [vmem:[%s22 + $0xbc] sm:$0xf]
        %v1939 = vld [vmem:[%s22 + $0xc0] sm:$0xf]
        %v1940 = vld [vmem:[%s22 + $0xc4] sm:$0xf]
        %v1941 = vld [vmem:[%s22 + $0xc8] sm:$0xf]
        %v1942 = vld [vmem:[%s22 + $0xcc] sm:$0xf]
        %v1943 = vld [vmem:[%s22 + $0xd0] sm:$0xf]
        %v1944 = vld [vmem:[%s22 + $0xd4] sm:$0xf]
        %v1945 = vld [vmem:[%s22 + $0xd8] sm:$0xf]
        %v1946 = vld [vmem:[%s22 + $0xdc] sm:$0xf]
        %v1947 = vld [vmem:[%s22 + $0xe0] sm:$0xf]
        %v1948 = vld [vmem:[%s22 + $0xe4] sm:$0xf]
        %v1949 = vld [vmem:[%s22 + $0xe8] sm:$0xf]
        %v1950 = vld [vmem:[%s22 + $0xec] sm:$0xf]
        %v1951 = vld [vmem:[%s22 + $0xf0] sm:$0xf]
        %v1952 = vld [vmem:[%s22 + $0xf4] sm:$0xf]
        %v1953 = vld [vmem:[%s22 + $0xf8] sm:$0xf]
        %v1954 = vld [vmem:[%s22 + $0xfc] sm:$0xf]
        %v1955 = vld [vmem:[%s22 + $0x100] sm:$0xf]
        %v1956 = vld [vmem:[%s22 + $0x104] sm:$0xf]
        %v1957 = vld [vmem:[%s22 + $0x108] sm:$0xf]
        %v1958 = vld [vmem:[%s22 + $0x10c] sm:$0xf]
        %v1959 = vld [vmem:[%s22 + $0x110] sm:$0xf]
        %v1960 = vld [vmem:[%s22 + $0x114] sm:$0xf]
        %v1961 = vld [vmem:[%s22 + $0x118] sm:$0xf]
        %v1962 = vld [vmem:[%s22 + $0x11c] sm:$0xf]
        %v1963 = vld [vmem:[%s22 + $0x120] sm:$0xf]
        %v1964 = vld [vmem:[%s22 + $0x124] sm:$0xf]
        %v1965 = vld [vmem:[%s22 + $0x128] sm:$0xf]
        %v1966 = vld [vmem:[%s22 + $0x12c] sm:$0xf]
        %v1967 = vld [vmem:[%s22 + $0x130] sm:$0xf]
        %v1968 = vld [vmem:[%s22 + $0x134] sm:$0xf]
        %v1969 = vld [vmem:[%s22 + $0x138] sm:$0xf]
        %v1970 = vld [vmem:[%s22 + $0x13c] sm:$0xf]
        %v1971 = vld [vmem:[%s22 + $0x140] sm:$0xf]
        %v1972 = vld [vmem:[%s22 + $0x144] sm:$0xf]
        %v1973 = vld [vmem:[%s22 + $0x148] sm:$0xf]
        %v1974 = vld [vmem:[%s22 + $0x14c] sm:$0xf]
        %v1975 = vld [vmem:[%s22 + $0x150] sm:$0xf]
        %v1976 = vld [vmem:[%s22 + $0x154] sm:$0xf]
        %v1977 = vld [vmem:[%s22 + $0x158] sm:$0xf]
        %v1978 = vld [vmem:[%s22 + $0x15c] sm:$0xf]
        %v1979 = vld [vmem:[%s22 + $0x160] sm:$0xf]
        %v1980 = vld [vmem:[%s22 + $0x164] sm:$0xf]
        %v1981 = vld [vmem:[%s22 + $0x168] sm:$0xf]
        %v1982 = vld [vmem:[%s22 + $0x16c] sm:$0xf]
        %v1983 = vld [vmem:[%s22 + $0x170] sm:$0xf]
        %v1984 = vld [vmem:[%s22 + $0x174] sm:$0xf]
        %v1985 = vld [vmem:[%s22 + $0x178] sm:$0xf]
        %v1986 = vld [vmem:[%s22 + $0x17c] sm:$0xf]
        %v1987 = vld [vmem:[%s22 + $0x180] sm:$0xf]
        %v1988 = vld [vmem:[%s22 + $0x184] sm:$0xf]
        %v1989 = vld [vmem:[%s22 + $0x188] sm:$0xf]
        %v1990 = vld [vmem:[%s22 + $0x18c] sm:$0xf]
        %v1991 = vld [vmem:[%s22 + $0x190] sm:$0xf]
        %v1992 = vld [vmem:[%s22 + $0x194] sm:$0xf]
        %v1993 = vld [vmem:[%s22 + $0x198] sm:$0xf]
        %v1994 = vld [vmem:[%s22 + $0x19c] sm:$0xf]
        %v1995 = vld [vmem:[%s22 + $0x1a0] sm:$0xf]
        %v1996 = vld [vmem:[%s22 + $0x1a4] sm:$0xf]
        %v1997 = vld [vmem:[%s22 + $0x1a8] sm:$0xf]
        %v1998 = vld [vmem:[%s22 + $0x1ac] sm:$0xf]
        %v1999 = vld [vmem:[%s22 + $0x1b0] sm:$0xf]
        %v2000 = vld [vmem:[%s22 + $0x1b4] sm:$0xf]
        %v2001 = vld [vmem:[%s22 + $0x1b8] sm:$0xf]
        %v2002 = vld [vmem:[%s22 + $0x1bc] sm:$0xf]
        %v2003 = vld [vmem:[%s22 + $0x1c0] sm:$0xf]
        %v2004 = vld [vmem:[%s22 + $0x1c4] sm:$0xf]
        %v2005 = vld [vmem:[%s22 + $0x1c8] sm:$0xf]
        %v2006 = vld [vmem:[%s22 + $0x1cc] sm:$0xf]
        %v2007 = vld [vmem:[%s22 + $0x1d0] sm:$0xf]
        %v2008 = vld [vmem:[%s22 + $0x1d4] sm:$0xf]
        %v2009 = vld [vmem:[%s22 + $0x1d8] sm:$0xf]
        %v2010 = vld [vmem:[%s22 + $0x1dc] sm:$0xf]
        %v2011 = vld [vmem:[%s22 + $0x1e0] sm:$0xf]
        %v2012 = vld [vmem:[%s22 + $0x1e4] sm:$0xf]
        %v2013 = vld [vmem:[%s22 + $0x1e8] sm:$0xf]
        %v2014 = vld [vmem:[%s22 + $0x1ec] sm:$0xf]
        %v2015 = vld [vmem:[%s22 + $0x1f0] sm:$0xf]
        %v2016 = vld [vmem:[%s22 + $0x1f4] sm:$0xf]
        %v2017 = vld [vmem:[%s22 + $0x1f8] sm:$0xf]
        %v2018 = vld [vmem:[%s22 + $0x1fc] sm:$0xf]
        %v2019 = vld [vmem:[%s22 + $0x200] sm:$0xf]
        %v2020 = vld [vmem:[%s22 + $0x204] sm:$0xf]
        %v2021 = vld [vmem:[%s22 + $0x208] sm:$0xf]
        %v2022 = vld [vmem:[%s22 + $0x20c] sm:$0xf]
        %v2023 = vld [vmem:[%s22 + $0x210] sm:$0xf]
        %v2024 = vld [vmem:[%s22 + $0x214] sm:$0xf]
        %v2025 = vld [vmem:[%s22 + $0x218] sm:$0xf]
        %v2026 = vld [vmem:[%s22 + $0x21c] sm:$0xf]
        %v2027 = vld [vmem:[%s22 + $0x220] sm:$0xf]
        %v2028 = vld [vmem:[%s22 + $0x224] sm:$0xf]
        %v2029 = vld [vmem:[%s22 + $0x228] sm:$0xf]
        %v2030 = vld [vmem:[%s22 + $0x22c] sm:$0xf]
        %v2031 = vld [vmem:[%s22 + $0x230] sm:$0xf]
        %v2032 = vld [vmem:[%s22 + $0x234] sm:$0xf]
        %v2033 = vld [vmem:[%s22 + $0x238] sm:$0xf]
        %v2034 = vld [vmem:[%s22 + $0x23c] sm:$0xf]
        %v2035 = vld [vmem:[%s23] sm:$0x1]
        %v2037 = vperm.slane %v2035, 0
        %v2183 = vunpack.c.l.b16 %v1891
        %v2184 = vunpack.c.l.b16 %v1892
        %v2185 = vunpack.c.l.b16 %v1893
        %v2186 = vunpack.c.l.b16 %v1894
        %v2187 = vunpack.c.l.b16 %v1895
        %v2188 = vunpack.c.l.b16 %v1896
        %v2189 = vunpack.c.l.b16 %v1897
        %v2190 = vunpack.c.l.b16 %v1898
        %v2191 = vunpack.c.l.b16 %v1899
        %v2192 = vunpack.c.l.b16 %v1900
        %v2193 = vunpack.c.l.b16 %v1901
        %v2194 = vunpack.c.l.b16 %v1902
        %v2195 = vunpack.c.l.b16 %v1903
        %v2196 = vunpack.c.l.b16 %v1904
        %v2197 = vunpack.c.l.b16 %v1905
        %v2198 = vunpack.c.l.b16 %v1906
        %v2199 = vunpack.c.l.b16 %v1907
        %v2200 = vunpack.c.l.b16 %v1908
        %v2201 = vunpack.c.l.b16 %v1909
        %v2202 = vunpack.c.l.b16 %v1910
        %v2203 = vunpack.c.l.b16 %v1911
        %v2204 = vunpack.c.l.b16 %v1912
        %v2205 = vunpack.c.l.b16 %v1913
        %v2206 = vunpack.c.l.b16 %v1914
        %v2207 = vunpack.c.l.b16 %v1915
        %v2208 = vunpack.c.l.b16 %v1916
        %v2209 = vunpack.c.l.b16 %v1917
        %v2210 = vunpack.c.l.b16 %v1918
        %v2211 = vunpack.c.l.b16 %v1919
        %v2212 = vunpack.c.l.b16 %v1920
        %v2213 = vunpack.c.l.b16 %v1921
        %v2214 = vunpack.c.l.b16 %v1922
        %v2215 = vunpack.c.l.b16 %v1923
        %v2216 = vunpack.c.l.b16 %v1924
        %v2217 = vunpack.c.l.b16 %v1925
        %v2218 = vunpack.c.l.b16 %v1926
        %v2219 = vunpack.c.l.b16 %v1927
        %v2220 = vunpack.c.l.b16 %v1928
        %v2221 = vunpack.c.l.b16 %v1929
        %v2222 = vunpack.c.l.b16 %v1930
        %v2223 = vunpack.c.l.b16 %v1931
        %v2224 = vunpack.c.l.b16 %v1932
        %v2225 = vunpack.c.l.b16 %v1933
        %v2226 = vunpack.c.l.b16 %v1934
        %v2227 = vunpack.c.l.b16 %v1935
        %v2228 = vunpack.c.l.b16 %v1936
        %v2229 = vunpack.c.l.b16 %v1937
        %v2230 = vunpack.c.l.b16 %v1938
        %v2231 = vunpack.c.l.b16 %v1939
        %v2232 = vunpack.c.l.b16 %v1940
        %v2233 = vunpack.c.l.b16 %v1941
        %v2234 = vunpack.c.l.b16 %v1942
        %v2235 = vunpack.c.l.b16 %v1943
        %v2236 = vunpack.c.l.b16 %v1944
        %v2237 = vunpack.c.l.b16 %v1945
        %v2238 = vunpack.c.l.b16 %v1946
        %v2239 = vunpack.c.l.b16 %v1947
        %v2240 = vunpack.c.l.b16 %v1948
        %v2241 = vunpack.c.l.b16 %v1949
        %v2242 = vunpack.c.l.b16 %v1950
        %v2243 = vunpack.c.l.b16 %v1951
        %v2244 = vunpack.c.l.b16 %v1952
        %v2245 = vunpack.c.l.b16 %v1953
        %v2246 = vunpack.c.l.b16 %v1954
        %v2247 = vunpack.c.l.b16 %v1955
        %v2248 = vunpack.c.l.b16 %v1956
        %v2249 = vunpack.c.l.b16 %v1957
        %v2250 = vunpack.c.l.b16 %v1958
        %v2251 = vunpack.c.l.b16 %v1959
        %v2252 = vunpack.c.l.b16 %v1960
        %v2253 = vunpack.c.l.b16 %v1961
        %v2254 = vunpack.c.l.b16 %v1962
        %v2255 = vunpack.c.l.b16 %v1963
        %v2256 = vunpack.c.l.b16 %v1964
        %v2257 = vunpack.c.l.b16 %v1965
        %v2258 = vunpack.c.l.b16 %v1966
        %v2259 = vunpack.c.l.b16 %v1967
        %v2260 = vunpack.c.l.b16 %v1968
        %v2261 = vunpack.c.l.b16 %v1969
        %v2262 = vunpack.c.l.b16 %v1970
        %v2263 = vunpack.c.l.b16 %v1971
        %v2264 = vunpack.c.l.b16 %v1972
        %v2265 = vunpack.c.l.b16 %v1973
        %v2266 = vunpack.c.l.b16 %v1974
        %v2267 = vunpack.c.l.b16 %v1975
        %v2268 = vunpack.c.l.b16 %v1976
        %v2269 = vunpack.c.l.b16 %v1977
        %v2270 = vunpack.c.l.b16 %v1978
        %v2271 = vunpack.c.l.b16 %v1979
        %v2272 = vunpack.c.l.b16 %v1980
        %v2273 = vunpack.c.l.b16 %v1981
        %v2274 = vunpack.c.l.b16 %v1982
        %v2275 = vunpack.c.l.b16 %v1983
        %v2276 = vunpack.c.l.b16 %v1984
        %v2277 = vunpack.c.l.b16 %v1985
        %v2278 = vunpack.c.l.b16 %v1986
        %v2279 = vunpack.c.l.b16 %v1987
        %v2280 = vunpack.c.l.b16 %v1988
        %v2281 = vunpack.c.l.b16 %v1989
        %v2282 = vunpack.c.l.b16 %v1990
        %v2283 = vunpack.c.l.b16 %v1991
        %v2284 = vunpack.c.l.b16 %v1992
        %v2285 = vunpack.c.l.b16 %v1993
        %v2286 = vunpack.c.l.b16 %v1994
        %v2287 = vunpack.c.l.b16 %v1995
        %v2288 = vunpack.c.l.b16 %v1996
        %v2289 = vunpack.c.l.b16 %v1997
        %v2290 = vunpack.c.l.b16 %v1998
        %v2291 = vunpack.c.l.b16 %v1999
        %v2292 = vunpack.c.l.b16 %v2000
        %v2293 = vunpack.c.l.b16 %v2001
        %v2294 = vunpack.c.l.b16 %v2002
        %v2295 = vunpack.c.l.b16 %v2003
        %v2296 = vunpack.c.l.b16 %v2004
        %v2297 = vunpack.c.l.b16 %v2005
        %v2298 = vunpack.c.l.b16 %v2006
        %v2299 = vunpack.c.l.b16 %v2007
        %v2300 = vunpack.c.l.b16 %v2008
        %v2301 = vunpack.c.l.b16 %v2009
        %v2302 = vunpack.c.l.b16 %v2010
        %v2303 = vunpack.c.l.b16 %v2011
        %v2304 = vunpack.c.l.b16 %v2012
        %v2305 = vunpack.c.l.b16 %v2013
        %v2306 = vunpack.c.l.b16 %v2014
        %v2307 = vunpack.c.l.b16 %v2015
        %v2308 = vunpack.c.l.b16 %v2016
        %v2309 = vunpack.c.l.b16 %v2017
        %v2310 = vunpack.c.l.b16 %v2018
        %v2311 = vunpack.c.l.b16 %v2019
        %v2312 = vunpack.c.l.b16 %v2020
        %v2313 = vunpack.c.l.b16 %v2021
        %v2314 = vunpack.c.l.b16 %v2022
        %v2315 = vunpack.c.l.b16 %v2023
        %v2316 = vunpack.c.l.b16 %v2024
        %v2317 = vunpack.c.l.b16 %v2025
        %v2318 = vunpack.c.l.b16 %v2026
        %v2319 = vunpack.c.l.b16 %v2027
        %v2320 = vunpack.c.l.b16 %v2028
        %v2321 = vunpack.c.l.b16 %v2029
        %v2322 = vunpack.c.l.b16 %v2030
        %v2323 = vunpack.c.l.b16 %v2031
        %v2324 = vunpack.c.l.b16 %v2032
        %v2325 = vunpack.c.l.b16 %v2033
        %v2326 = vunpack.c.l.b16 %v2034
        %v2327 = vpack.c.b16 %v2184, %v2183
        %v2328 = vpack.c.b16 %v2186, %v2185
        %v2329 = vpack.c.b16 %v2188, %v2187
        %v2330 = vpack.c.b16 %v2190, %v2189
        %v2331 = vpack.c.b16 %v2192, %v2191
        %v2332 = vpack.c.b16 %v2194, %v2193
        %v2333 = vpack.c.b16 %v2196, %v2195
        %v2334 = vpack.c.b16 %v2198, %v2197
        %v2335 = vpack.c.b16 %v2200, %v2199
        %v2336 = vpack.c.b16 %v2202, %v2201
        %v2337 = vpack.c.b16 %v2204, %v2203
        %v2338 = vpack.c.b16 %v2206, %v2205
        %v2339 = vpack.c.b16 %v2208, %v2207
        %v2340 = vpack.c.b16 %v2210, %v2209
        %v2341 = vpack.c.b16 %v2212, %v2211
        %v2342 = vpack.c.b16 %v2214, %v2213
        %v2343 = vpack.c.b16 %v2216, %v2215
        %v2344 = vpack.c.b16 %v2218, %v2217
        %v2345 = vpack.c.b16 %v2220, %v2219
        %v2346 = vpack.c.b16 %v2222, %v2221
        %v2347 = vpack.c.b16 %v2224, %v2223
        %v2348 = vpack.c.b16 %v2226, %v2225
        %v2349 = vpack.c.b16 %v2228, %v2227
        %v2350 = vpack.c.b16 %v2230, %v2229
        %v2351 = vpack.c.b16 %v2232, %v2231
        %v2352 = vpack.c.b16 %v2234, %v2233
        %v2353 = vpack.c.b16 %v2236, %v2235
        %v2354 = vpack.c.b16 %v2238, %v2237
        %v2355 = vpack.c.b16 %v2240, %v2239
        %v2356 = vpack.c.b16 %v2242, %v2241
        %v2357 = vpack.c.b16 %v2244, %v2243
        %v2358 = vpack.c.b16 %v2246, %v2245
        %v2359 = vpack.c.b16 %v2248, %v2247
        %v2360 = vpack.c.b16 %v2250, %v2249
        %v2361 = vpack.c.b16 %v2252, %v2251
        %v2362 = vpack.c.b16 %v2254, %v2253
        %v2363 = vpack.c.b16 %v2256, %v2255
        %v2364 = vpack.c.b16 %v2258, %v2257
        %v2365 = vpack.c.b16 %v2260, %v2259
        %v2366 = vpack.c.b16 %v2262, %v2261
        %v2367 = vpack.c.b16 %v2264, %v2263
        %v2368 = vpack.c.b16 %v2266, %v2265
        %v2369 = vpack.c.b16 %v2268, %v2267
        %v2370 = vpack.c.b16 %v2270, %v2269
        %v2371 = vpack.c.b16 %v2272, %v2271
        %v2372 = vpack.c.b16 %v2274, %v2273
        %v2373 = vpack.c.b16 %v2276, %v2275
        %v2374 = vpack.c.b16 %v2278, %v2277
        %v2375 = vpack.c.b16 %v2280, %v2279
        %v2376 = vpack.c.b16 %v2282, %v2281
        %v2377 = vpack.c.b16 %v2284, %v2283
        %v2378 = vpack.c.b16 %v2286, %v2285
        %v2379 = vpack.c.b16 %v2288, %v2287
        %v2380 = vpack.c.b16 %v2290, %v2289
        %v2381 = vpack.c.b16 %v2292, %v2291
        %v2382 = vpack.c.b16 %v2294, %v2293
        %v2383 = vpack.c.b16 %v2296, %v2295
        %v2384 = vpack.c.b16 %v2298, %v2297
        %v2385 = vpack.c.b16 %v2300, %v2299
        %v2386 = vpack.c.b16 %v2302, %v2301
        %v2387 = vpack.c.b16 %v2304, %v2303
        %v2388 = vpack.c.b16 %v2306, %v2305
        %v2389 = vpack.c.b16 %v2308, %v2307
        %v2390 = vpack.c.b16 %v2310, %v2309
        %v2391 = vpack.c.b16 %v2312, %v2311
        %v2392 = vpack.c.b16 %v2314, %v2313
        %v2393 = vpack.c.b16 %v2316, %v2315
        %v2394 = vpack.c.b16 %v2318, %v2317
        %v2395 = vpack.c.b16 %v2320, %v2319
        %v2396 = vpack.c.b16 %v2322, %v2321
        %v2397 = vpack.c.b16 %v2324, %v2323
        %v2398 = vpack.c.b16 %v2326, %v2325
        %2471 = vmatpush.bf16.msra.mxu0 %v2334
        %2472 = vmatpush.bf16.msra.mxu0 %v2333
        %2473 = vmatpush.bf16.msra.mxu0 %v2332
        %2474 = vmatpush.bf16.msra.mxu0 %v2331
        %2475 = vmatpush.bf16.msra.mxu0 %v2330
        %2476 = vmatpush.bf16.msra.mxu0 %v2329
        %2477 = vmatpush.bf16.msra.mxu0 %v2328
        %2478 = vmatpush.bf16.msra.mxu0 %v2327
        %2479 = vmatmul.bf16.gmra.mxu0 %v1858
        %v2480 = vpop.f32.mrf.mxu0
        %v2481 = vadd.f32 %v2037, %v2480
        %v2482 = vpop.f32.mrf.mxu0
        %v2483 = vadd.f32 %v2037, %v2482
        %2484 = vmatmul.bf16.gmra.mxu0 %v1867
        %v2485 = vpop.f32.mrf.mxu0
        %v2486 = vadd.f32 %v2037, %v2485
        %v2487 = vpop.f32.mrf.mxu0
        %v2488 = vadd.f32 %v2037, %v2487
        %2489 = vmatmul.bf16.gmra.mxu0 %v1875
        %v2490 = vpop.f32.mrf.mxu0
        %v2491 = vadd.f32 %v2037, %v2490
        %v2492 = vpop.f32.mrf.mxu0
        %v2493 = vadd.f32 %v2037, %v2492
        %2494 = vmatmul.bf16.gmra.mxu0 %v1883
        %v2495 = vpop.f32.mrf.mxu0
        %v2496 = vadd.f32 %v2037, %v2495
        %v2497 = vpop.f32.mrf.mxu0
        %v2498 = vadd.f32 %v2037, %v2497
        %2499 = vdwg.mxu0
        %2500 = vmatpush.bf16.msra.mxu0 %v2342
        %2501 = vmatpush.bf16.msra.mxu0 %v2341
        %2502 = vmatpush.bf16.msra.mxu0 %v2340
        %2503 = vmatpush.bf16.msra.mxu0 %v2339
        %2504 = vmatpush.bf16.msra.mxu0 %v2338
        %2505 = vmatpush.bf16.msra.mxu0 %v2337
        %2506 = vmatpush.bf16.msra.mxu0 %v2336
        %2507 = vmatpush.bf16.msra.mxu0 %v2335
        %2508 = vmatmul.bf16.gmra.mxu0 %v1859
        %v2509 = vpop.f32.mrf.mxu0
        %v2510 = vadd.f32 %v2481, %v2509
        %v2511 = vpop.f32.mrf.mxu0
        %v2512 = vadd.f32 %v2483, %v2511
        %2513 = vmatmul.bf16.gmra.mxu0 %v1865
        %v2514 = vpop.f32.mrf.mxu0
        %v2515 = vadd.f32 %v2486, %v2514
        %v2516 = vpop.f32.mrf.mxu0
        %v2517 = vadd.f32 %v2488, %v2516
        %2518 = vmatmul.bf16.gmra.mxu0 %v1873
        %v2519 = vpop.f32.mrf.mxu0
        %v2520 = vadd.f32 %v2491, %v2519
        %v2521 = vpop.f32.mrf.mxu0
        %v2522 = vadd.f32 %v2493, %v2521
        %2523 = vmatmul.bf16.gmra.mxu0 %v1881
        %v2524 = vpop.f32.mrf.mxu0
        %v2525 = vadd.f32 %v2496, %v2524
        %v2526 = vpop.f32.mrf.mxu0
        %v2527 = vadd.f32 %v2498, %v2526
        %2528 = vdwg.mxu0
        %2529 = vmatpush.bf16.msra.mxu0 %v2350
        %2530 = vmatpush.bf16.msra.mxu0 %v2349
        %2531 = vmatpush.bf16.msra.mxu0 %v2348
        %2532 = vmatpush.bf16.msra.mxu0 %v2347
        %2533 = vmatpush.bf16.msra.mxu0 %v2346
        %2534 = vmatpush.bf16.msra.mxu0 %v2345
        %2535 = vmatpush.bf16.msra.mxu0 %v2344
        %2536 = vmatpush.bf16.msra.mxu0 %v2343
        %2537 = vmatmul.bf16.gmra.mxu0 %v1860
        %v2538 = vpop.f32.mrf.mxu0
        %v2539 = vadd.f32 %v2510, %v2538
        %v2540 = vpop.f32.mrf.mxu0
        %v2541 = vadd.f32 %v2512, %v2540
        %2542 = vmatmul.bf16.gmra.mxu0 %v1868
        %v2543 = vpop.f32.mrf.mxu0
        %v2544 = vadd.f32 %v2515, %v2543
        %v2545 = vpop.f32.mrf.mxu0
        %v2546 = vadd.f32 %v2517, %v2545
        %2547 = vmatmul.bf16.gmra.mxu0 %v1876
        %v2548 = vpop.f32.mrf.mxu0
        %v2549 = vadd.f32 %v2520, %v2548
        %v2550 = vpop.f32.mrf.mxu0
        %v2551 = vadd.f32 %v2522, %v2550
        %2552 = vmatmul.bf16.gmra.mxu0 %v1884
        %v2553 = vpop.f32.mrf.mxu0
        %v2554 = vadd.f32 %v2525, %v2553
        %v2555 = vpop.f32.mrf.mxu0
        %v2556 = vadd.f32 %v2527, %v2555
        %2557 = vdwg.mxu0
        %2558 = vmatpush.bf16.msra.mxu0 %v2358
        %2559 = vmatpush.bf16.msra.mxu0 %v2357
        %2560 = vmatpush.bf16.msra.mxu0 %v2356
        %2561 = vmatpush.bf16.msra.mxu0 %v2355
        %2562 = vmatpush.bf16.msra.mxu0 %v2354
        %2563 = vmatpush.bf16.msra.mxu0 %v2353
        %2564 = vmatpush.bf16.msra.mxu0 %v2352
        %2565 = vmatpush.bf16.msra.mxu0 %v2351
        %2566 = vmatmul.bf16.gmra.mxu0 %v1861
        %v2567 = vpop.f32.mrf.mxu0
        %v2568 = vadd.f32 %v2539, %v2567
        %v2569 = vpop.f32.mrf.mxu0
        %v2570 = vadd.f32 %v2541, %v2569
        %2571 = vmatmul.bf16.gmra.mxu0 %v1869
        %v2572 = vpop.f32.mrf.mxu0
        %v2573 = vadd.f32 %v2544, %v2572
        %v2574 = vpop.f32.mrf.mxu0
        %v2575 = vadd.f32 %v2546, %v2574
        %2576 = vmatmul.bf16.gmra.mxu0 %v1877
        %v2577 = vpop.f32.mrf.mxu0
        %v2578 = vadd.f32 %v2549, %v2577
        %v2579 = vpop.f32.mrf.mxu0
        %v2580 = vadd.f32 %v2551, %v2579
        %2581 = vmatmul.bf16.gmra.mxu0 %v1885
        %v2582 = vpop.f32.mrf.mxu0
        %v2583 = vadd.f32 %v2554, %v2582
        %v2584 = vpop.f32.mrf.mxu0
        %v2585 = vadd.f32 %v2556, %v2584
        %2586 = vdwg.mxu0
        %2587 = vmatpush.bf16.msra.mxu0 %v2366
        %2588 = vmatpush.bf16.msra.mxu0 %v2365
        %2589 = vmatpush.bf16.msra.mxu0 %v2364
        %2590 = vmatpush.bf16.msra.mxu0 %v2363
        %2591 = vmatpush.bf16.msra.mxu0 %v2362
        %2592 = vmatpush.bf16.msra.mxu0 %v2361
        %2593 = vmatpush.bf16.msra.mxu0 %v2360
        %2594 = vmatpush.bf16.msra.mxu0 %v2359
        %2595 = vmatmul.bf16.gmra.mxu0 %v1862
        %v2596 = vpop.f32.mrf.mxu0
        %v2597 = vadd.f32 %v2568, %v2596
        %v2598 = vpop.f32.mrf.mxu0
        %v2599 = vadd.f32 %v2570, %v2598
        %2600 = vmatmul.bf16.gmra.mxu0 %v1870
        %v2601 = vpop.f32.mrf.mxu0
        %v2602 = vadd.f32 %v2573, %v2601
        %v2603 = vpop.f32.mrf.mxu0
        %v2604 = vadd.f32 %v2575, %v2603
        %2605 = vmatmul.bf16.gmra.mxu0 %v1878
        %v2606 = vpop.f32.mrf.mxu0
        %v2607 = vadd.f32 %v2578, %v2606
        %v2608 = vpop.f32.mrf.mxu0
        %v2609 = vadd.f32 %v2580, %v2608
        %2610 = vmatmul.bf16.gmra.mxu0 %v1886
        %v2611 = vpop.f32.mrf.mxu0
        %v2612 = vadd.f32 %v2583, %v2611
        %v2613 = vpop.f32.mrf.mxu0
        %v2614 = vadd.f32 %v2585, %v2613
        %2615 = vdwg.mxu0
        %2616 = vmatpush.bf16.msra.mxu0 %v2374
        %2617 = vmatpush.bf16.msra.mxu0 %v2373
        %2618 = vmatpush.bf16.msra.mxu0 %v2372
        %2619 = vmatpush.bf16.msra.mxu0 %v2371
        %2620 = vmatpush.bf16.msra.mxu0 %v2370
        %2621 = vmatpush.bf16.msra.mxu0 %v2369
        %2622 = vmatpush.bf16.msra.mxu0 %v2368
        %2623 = vmatpush.bf16.msra.mxu0 %v2367
        %2624 = vmatmul.bf16.gmra.mxu0 %v1863
        %v2625 = vpop.f32.mrf.mxu0
        %v2626 = vadd.f32 %v2597, %v2625
        %v2627 = vpop.f32.mrf.mxu0
        %v2628 = vadd.f32 %v2599, %v2627
        %2629 = vmatmul.bf16.gmra.mxu0 %v1871
        %v2630 = vpop.f32.mrf.mxu0
        %v2631 = vadd.f32 %v2602, %v2630
        %v2632 = vpop.f32.mrf.mxu0
        %v2633 = vadd.f32 %v2604, %v2632
        %2634 = vmatmul.bf16.gmra.mxu0 %v1879
        %v2635 = vpop.f32.mrf.mxu0
        %v2636 = vadd.f32 %v2607, %v2635
        %v2637 = vpop.f32.mrf.mxu0
        %v2638 = vadd.f32 %v2609, %v2637
        %2639 = vmatmul.bf16.gmra.mxu0 %v1887
        %v2640 = vpop.f32.mrf.mxu0
        %v2641 = vadd.f32 %v2612, %v2640
        %v2642 = vpop.f32.mrf.mxu0
        %v2643 = vadd.f32 %v2614, %v2642
        %2644 = vdwg.mxu0
        %2645 = vmatpush.bf16.msra.mxu0 %v2382
        %2646 = vmatpush.bf16.msra.mxu0 %v2381
        %2647 = vmatpush.bf16.msra.mxu0 %v2380
        %2648 = vmatpush.bf16.msra.mxu0 %v2379
        %2649 = vmatpush.bf16.msra.mxu0 %v2378
        %2650 = vmatpush.bf16.msra.mxu0 %v2377
        %2651 = vmatpush.bf16.msra.mxu0 %v2376
        %2652 = vmatpush.bf16.msra.mxu0 %v2375
        %2653 = vmatmul.bf16.gmra.mxu0 %v1864
        %v2654 = vpop.f32.mrf.mxu0
        %v2655 = vadd.f32 %v2626, %v2654
        %v2656 = vpop.f32.mrf.mxu0
        %v2657 = vadd.f32 %v2628, %v2656
        %2658 = vmatmul.bf16.gmra.mxu0 %v1872
        %v2659 = vpop.f32.mrf.mxu0
        %v2660 = vadd.f32 %v2631, %v2659
        %v2661 = vpop.f32.mrf.mxu0
        %v2662 = vadd.f32 %v2633, %v2661
        %2663 = vmatmul.bf16.gmra.mxu0 %v1880
        %v2664 = vpop.f32.mrf.mxu0
        %v2665 = vadd.f32 %v2636, %v2664
        %v2666 = vpop.f32.mrf.mxu0
        %v2667 = vadd.f32 %v2638, %v2666
        %2668 = vmatmul.bf16.gmra.mxu0 %v1888
        %v2669 = vpop.f32.mrf.mxu0
        %v2670 = vadd.f32 %v2641, %v2669
        %v2671 = vpop.f32.mrf.mxu0
        %v2672 = vadd.f32 %v2643, %v2671
        %2673 = vdwg.mxu0
        %2674 = vmatpush.bf16.msra.mxu0 %v2390
        %2675 = vmatpush.bf16.msra.mxu0 %v2389
        %2676 = vmatpush.bf16.msra.mxu0 %v2388
        %2677 = vmatpush.bf16.msra.mxu0 %v2387
        %2678 = vmatpush.bf16.msra.mxu0 %v2386
        %2679 = vmatpush.bf16.msra.mxu0 %v2385
        %2680 = vmatpush.bf16.msra.mxu0 %v2384
        %2681 = vmatpush.bf16.msra.mxu0 %v2383
        %2682 = vmatmul.bf16.gmra.mxu0 %v1865
        %v2683 = vpop.f32.mrf.mxu0
        %v2684 = vadd.f32 %v2655, %v2683
        %v2685 = vpop.f32.mrf.mxu0
        %v2686 = vadd.f32 %v2657, %v2685
        %2687 = vmatmul.bf16.gmra.mxu0 %v1873
        %v2688 = vpop.f32.mrf.mxu0
        %v2689 = vadd.f32 %v2660, %v2688
        %v2690 = vpop.f32.mrf.mxu0
        %v2691 = vadd.f32 %v2662, %v2690
        %2692 = vmatmul.bf16.gmra.mxu0 %v1881
        %v2693 = vpop.f32.mrf.mxu0
        %v2694 = vadd.f32 %v2665, %v2693
        %v2695 = vpop.f32.mrf.mxu0
        %v2696 = vadd.f32 %v2667, %v2695
        %2697 = vmatmul.bf16.gmra.mxu0 %v1889
        %v2698 = vpop.f32.mrf.mxu0
        %v2699 = vadd.f32 %v2670, %v2698
        %v2700 = vpop.f32.mrf.mxu0
        %v2701 = vadd.f32 %v2672, %v2700
        %2702 = vdwg.mxu0
        %2703 = vmatpush.bf16.msra.mxu0 %v2398
        %2704 = vmatpush.bf16.msra.mxu0 %v2397
        %2705 = vmatpush.bf16.msra.mxu0 %v2396
        %2706 = vmatpush.bf16.msra.mxu0 %v2395
        %2707 = vmatpush.bf16.msra.mxu0 %v2394
        %2708 = vmatpush.bf16.msra.mxu0 %v2393
        %2709 = vmatpush.bf16.msra.mxu0 %v2392
        %2710 = vmatpush.bf16.msra.mxu0 %v2391
        %2711 = vmatmul.bf16.gmra.mxu0 %v1866
        %v2712 = vpop.f32.mrf.mxu0
        %v2713 = vadd.f32 %v2684, %v2712
        %v2714 = vpop.f32.mrf.mxu0
        %v2715 = vadd.f32 %v2686, %v2714
        %2716 = vmatmul.bf16.gmra.mxu0 %v1874
        %v2717 = vpop.f32.mrf.mxu0
        %v2718 = vadd.f32 %v2689, %v2717
        %v2719 = vpop.f32.mrf.mxu0
        %v2720 = vadd.f32 %v2691, %v2719
        %2721 = vmatmul.bf16.gmra.mxu0 %v1882
        %v2722 = vpop.f32.mrf.mxu0
        %v2723 = vadd.f32 %v2694, %v2722
        %v2724 = vpop.f32.mrf.mxu0
        %v2725 = vadd.f32 %v2696, %v2724
        %2726 = vmatmul.bf16.gmra.mxu0 %v1890
        %v2727 = vpop.f32.mrf.mxu0
        %v2728 = vadd.f32 %v2699, %v2727
        %v2729 = vpop.f32.mrf.mxu0
        %v2730 = vadd.f32 %v2701, %v2729
        %2731 = vdwg.mxu0
        %v2732 = vld [vmem:[%s870] sm:$0xff]
        %v2733 = vld [vmem:[%s870 + $0x8] sm:$0xff]
        %v2734 = vld [vmem:[%s870 + $0x10] sm:$0xff]
        %v2735 = vld [vmem:[%s870 + $0x18] sm:$0xff]
        %vm2736 = vcmask 523264
        %v2737 = vsel %vm2736, %v2732, 0.0
        %2738 = vadd.xlane.f32.xlu0 %v2737
        %v2739 = vpop.xlane.xlu0 %2738
        %v2740 = vsel %vm2736, %v2733, 0.0
        %2741 = vadd.xlane.f32.xlu0 %v2740
        %v2742 = vpop.xlane.xlu0 %2741
        %v2743 = vsel %vm2736, %v2734, 0.0
        %2744 = vadd.xlane.f32.xlu0 %v2743
        %v2745 = vpop.xlane.xlu0 %2744
        %v2746 = vsel %vm2736, %v2735, 0.0
        %2747 = vadd.xlane.f32.xlu0 %v2746
        %v2748 = vpop.xlane.xlu0 %2747
        %v2749 = vrcp.pop 64.0
        %v2750 = vmul.f32 64.0, %v2749
        %v2751 = vsub.f32 1.0, %v2750
        %v2752 = vmul.f32 %v2749, %v2751
        %v2753 = vadd.f32 %v2749, %v2752
        %vm2754 = vweird.f32 %v2749
        %v2755 = vsel %vm2754, %v2749, %v2753
        %v2756 = vmul.f32 %v2739, %v2755
        %v2757 = vmul.f32 %v2742, %v2755
        %v2758 = vmul.f32 %v2745, %v2755
        %v2759 = vmul.f32 %v2748, %v2755
        %v2760 = vsub.f32 %v2732, %v2756
        %v2761 = vsub.f32 %v2733, %v2757
        %v2762 = vsub.f32 %v2734, %v2758
        %v2763 = vsub.f32 %v2735, %v2759
        %v2764 = vmul.f32 %v2760, %v2760
        %v2765 = vmul.f32 %v2761, %v2761
        %v2766 = vmul.f32 %v2762, %v2762
        %v2767 = vmul.f32 %v2763, %v2763
        %v2768 = vsel %vm2736, %v2764, 0.0
        %2769 = vadd.xlane.f32.xlu0 %v2768
        %v2770 = vpop.xlane.xlu0 %2769
        %v2771 = vsel %vm2736, %v2765, 0.0
        %2772 = vadd.xlane.f32.xlu0 %v2771
        %v2773 = vpop.xlane.xlu0 %2772
        %v2774 = vsel %vm2736, %v2766, 0.0
        %2775 = vadd.xlane.f32.xlu0 %v2774
        %v2776 = vpop.xlane.xlu0 %2775
        %v2777 = vsel %vm2736, %v2767, 0.0
        %2778 = vadd.xlane.f32.xlu0 %v2777
        %v2779 = vpop.xlane.xlu0 %2778
        %v2780 = vmul.f32 %v2770, %v2755
        %v2781 = vmul.f32 %v2773, %v2755
        %v2782 = vmul.f32 %v2776, %v2755
        %v2783 = vmul.f32 %v2779, %v2755
        %v2784 = vadd.f32 %v2780, 1e-05
        %v2785 = vadd.f32 %v2781, 1e-05
        %v2786 = vadd.f32 %v2782, 1e-05
        %v2787 = vadd.f32 %v2783, 1e-05
        %v2788 = vrsqrt.pop %v2784
        %v2789 = vmul.f32 %v2788, %v2784
        %v2790 = vmul.f32 %v2789, %v2788
        %v2791 = vmul.f32 0.5, %v2790
        %v2792 = vsub.f32 1.5, %v2791
        %v2793 = vmul.f32 %v2788, %v2792
        %vm2794 = vweird.f32 %v2784
        %vm2795 = vweird.f32 %v2788
        %vm2796 = vmor %vm2794, %vm2795
        %v2797 = vsel %vm2796, %v2788, %v2793
        %v2798 = vrsqrt.pop %v2785
        %v2799 = vmul.f32 %v2798, %v2785
        %v2800 = vmul.f32 %v2799, %v2798
        %v2801 = vmul.f32 0.5, %v2800
        %v2802 = vsub.f32 1.5, %v2801
        %v2803 = vmul.f32 %v2798, %v2802
        %vm2804 = vweird.f32 %v2785
        %vm2805 = vweird.f32 %v2798
        %vm2806 = vmor %vm2804, %vm2805
        %v2807 = vsel %vm2806, %v2798, %v2803
        %v2808 = vrsqrt.pop %v2786
        %v2809 = vmul.f32 %v2808, %v2786
        %v2810 = vmul.f32 %v2809, %v2808
        %v2811 = vmul.f32 0.5, %v2810
        %v2812 = vsub.f32 1.5, %v2811
        %v2813 = vmul.f32 %v2808, %v2812
        %vm2814 = vweird.f32 %v2786
        %vm2815 = vweird.f32 %v2808
        %vm2816 = vmor %vm2814, %vm2815
        %v2817 = vsel %vm2816, %v2808, %v2813
        %v2818 = vrsqrt.pop %v2787
        %v2819 = vmul.f32 %v2818, %v2787
        %v2820 = vmul.f32 %v2819, %v2818
        %v2821 = vmul.f32 0.5, %v2820
        %v2822 = vsub.f32 1.5, %v2821
        %v2823 = vmul.f32 %v2818, %v2822
        %vm2824 = vweird.f32 %v2787
        %vm2825 = vweird.f32 %v2818
        %vm2826 = vmor %vm2824, %vm2825
        %v2827 = vsel %vm2826, %v2818, %v2823
        %v2828 = vmul.f32 %v2760, %v2797
        %v2829 = vmul.f32 %v2761, %v2807
        %v2830 = vmul.f32 %v2762, %v2817
        %v2831 = vmul.f32 %v2763, %v2827
        %v2832 = vld [vmem:[%s24] sm:$0x1]
        %v2834 = vperm.slane %v2832, 0
        %v2836 = vmul.f32 %v2834, %v1145
        %v2837 = vmul.f32 %v2834, %v1147
        %v2838 = vmul.f32 %v2834, %v1150
        %v2839 = vmul.f32 %v2834, %v1152
        %v2840 = vmul.f32 %v2834, %v1155
        %v2841 = vmul.f32 %v2834, %v1157
        %v2842 = vmul.f32 %v2834, %v1160
        %v2843 = vmul.f32 %v2834, %v1162
        %v2844 = vsub.f32 1.0, %v2832
        %v2846 = vperm.slane %v2844, 0
        %v2848 = vmul.f32 %v2846, %v2713
        %v2849 = vmul.f32 %v2846, %v2715
        %v2850 = vmul.f32 %v2846, %v2718
        %v2851 = vmul.f32 %v2846, %v2720
        %v2852 = vmul.f32 %v2846, %v2723
        %v2853 = vmul.f32 %v2846, %v2725
        %v2854 = vmul.f32 %v2846, %v2728
        %v2855 = vmul.f32 %v2846, %v2730
        %v2856 = vadd.f32 %v2836, %v2848
        %v2857 = vadd.f32 %v2837, %v2849
        %v2858 = vadd.f32 %v2838, %v2850
        %v2859 = vadd.f32 %v2839, %v2851
        %v2860 = vadd.f32 %v2840, %v2852
        %v2861 = vadd.f32 %v2841, %v2853
        %v2862 = vadd.f32 %v2842, %v2854
        %v2863 = vadd.f32 %v2843, %v2855
        %v2864 = vld [vmem:[%s884] sm:$0xff]
        %v2865 = vld [vmem:[%s884 + $0x8] sm:$0xff]
        %v2866 = vld [vmem:[%s884 + $0x10] sm:$0xff]
        %v2867 = vld [vmem:[%s884 + $0x18] sm:$0xff]
        %v2868 = vld [vmem:[%s884 + $0x20] sm:$0xff]
        %v2869 = vld [vmem:[%s884 + $0x28] sm:$0xff]
        %v2870 = vld [vmem:[%s884 + $0x30] sm:$0xff]
        %v2871 = vld [vmem:[%s884 + $0x38] sm:$0xff]
        %v2872 = vld [vmem:[%s25] sm:$0x1]
        %2874 = vset.pattern.permute.xlu0 0
        %2875 = vperm.xlu0 %2874, %v2864
        %v2876 = vpop.permute.xlu0 %2875
        %2879 = vset.pattern.permute.xlu0 0
        %2880 = vperm.xlu0 %2879, %v2865
        %v2881 = vpop.permute.xlu0 %2880
        %2884 = vset.pattern.permute.xlu0 0
        %2885 = vperm.xlu0 %2884, %v2866
        %v2886 = vpop.permute.xlu0 %2885
        %2889 = vset.pattern.permute.xlu0 0
        %2890 = vperm.xlu0 %2889, %v2867
        %v2891 = vpop.permute.xlu0 %2890
        %2894 = vset.pattern.permute.xlu0 0
        %2895 = vperm.xlu0 %2894, %v2868
        %v2896 = vpop.permute.xlu0 %2895
        %2899 = vset.pattern.permute.xlu0 0
        %2900 = vperm.xlu0 %2899, %v2869
        %v2901 = vpop.permute.xlu0 %2900
        %2904 = vset.pattern.permute.xlu0 0
        %2905 = vperm.xlu0 %2904, %v2870
        %v2906 = vpop.permute.xlu0 %2905
        %2909 = vset.pattern.permute.xlu0 0
        %2910 = vperm.xlu0 %2909, %v2871
        %v2911 = vpop.permute.xlu0 %2910
        %v2914 = vperm.slane %v2872, 0
        %v2916 = vmul.f32 %v2876, %v2914
        %v2917 = vmul.f32 %v2881, %v2914
        %v2918 = vmul.f32 %v2886, %v2914
        %v2919 = vmul.f32 %v2891, %v2914
        %v2920 = vmul.f32 %v2896, %v2914
        %v2921 = vmul.f32 %v2901, %v2914
        %v2922 = vmul.f32 %v2906, %v2914
        %v2923 = vmul.f32 %v2911, %v2914
        %v2924 = vadd.f32 %v2856, %v2916
        %v2925 = vadd.f32 %v2857, %v2917
        %v2926 = vadd.f32 %v2858, %v2918
        %v2927 = vadd.f32 %v2859, %v2919
        %v2928 = vadd.f32 %v2860, %v2920
        %v2929 = vadd.f32 %v2861, %v2921
        %v2930 = vadd.f32 %v2862, %v2922
        %v2931 = vadd.f32 %v2863, %v2923
        %2932 = vxpose.xlu0.b32.start [1/16] %v2924, 128
        %2933 = vxpose.xlu0.b32.cont [2/16] %v2925, 128
        %2934 = vxpose.xlu0.b32.cont [3/16] %v2926, 128
        %2935 = vxpose.xlu0.b32.cont [4/16] %v2927, 128
        %2936 = vxpose.xlu0.b32.cont [5/16] %v2928, 128
        %2937 = vxpose.xlu0.b32.cont [6/16] %v2929, 128
        %2938 = vxpose.xlu0.b32.cont [7/16] %v2930, 128
        %2939 = vxpose.xlu0.b32.cont [8/16] %v2931, 128
        %2940 = vxpose.xlu0.b32.cont [9/16] 0.0, 128
        %2941 = vxpose.xlu0.b32.cont [10/16] 0.0, 128
        %2942 = vxpose.xlu0.b32.cont [11/16] 0.0, 128
        %2943 = vxpose.xlu0.b32.cont [12/16] 0.0, 128
        %2944 = vxpose.xlu0.b32.cont [13/16] 0.0, 128
        %2945 = vxpose.xlu0.b32.cont [14/16] 0.0, 128
        %2946 = vxpose.xlu0.b32.cont [15/16] 0.0, 128
        %2947 = vxpose.xlu0.b32.end [16/16] 0.0, 128
        %v2948 = vpop.trf.xlu0
        %v2949 = vpop.trf.xlu0
        %v2950 = vpop.trf.xlu0
        %v2951 = vpop.trf.xlu0
        %v2952 = vpop.trf.xlu0
        %v2953 = vpop.trf.xlu0
        %v2954 = vpop.trf.xlu0
        %v2955 = vpop.trf.xlu0
        %v2956 = vpop.trf.xlu0
        %v2957 = vpop.trf.xlu0
        %v2958 = vpop.trf.xlu0
        %v2959 = vpop.trf.xlu0
        %v2960 = vpop.trf.xlu0
        %v2961 = vpop.trf.xlu0
        %v2962 = vpop.trf.xlu0
        %v2963 = vpop.trf.xlu0
        %v2964 = vadd.f32 %v2948, 1.0
        %v2965 = vadd.f32 %v2949, 1.0
        %v2966 = vadd.f32 %v2950, 1.0
        %v2967 = vadd.f32 %v2951, 1.0
        %v2968 = vmul.f32 %v2964, %v2828
        %v2969 = vmul.f32 %v2965, %v2829
        %v2970 = vmul.f32 %v2966, %v2830
        %v2971 = vmul.f32 %v2967, %v2831
        %v2972 = vadd.f32 %v2968, %v2952
        %v2973 = vadd.f32 %v2969, %v2953
        %v2974 = vadd.f32 %v2970, %v2954
        %v2975 = vadd.f32 %v2971, %v2955
        %v2976 = vmul.f32 %v2972, 0.2
        %v2977 = vmul.f32 %v2973, 0.2
        %v2978 = vmul.f32 %v2974, 0.2
        %v2979 = vmul.f32 %v2975, 0.2
        %v2980 = vmax.f32 %v2972, %v2976
        %v2981 = vmax.f32 %v2973, %v2977
        %v2982 = vmax.f32 %v2974, %v2978
        %v2983 = vmax.f32 %v2975, %v2979
        %2984 = vst.msk [vmem:[%s858] sm:$0xff] %vm2736, %v2980
        %2985 = vst.msk [vmem:[%s858 + $0x8] sm:$0xff] %vm2736, %v2981
        %2986 = vst.msk [vmem:[%s858 + $0x10] sm:$0xff] %vm2736, %v2982
        %2987 = vst.msk [vmem:[%s858 + $0x18] sm:$0xff] %vm2736, %v2983
        %s2988 = sand.u32 %s619, 1
        %s2989 = scalar_lea.sflag [#allocation3], %s2988
        %s2990 = sand.u32 %s619, 1
        %s2991 = smul.addr %s2990, 32
        %s2992 = scalar_lea.vmem [#allocation2], %s2991
        %s2993 = sand.u32 %s645, 1
        %s2994 = scalar_lea.sflag [#allocation5], %s2993
        %s2995 = sand.u32 %s645, 1
        %s2996 = smul.addr %s2995, 4
        %s2997 = scalar_lea.vmem [#allocation4], %s2996
        // Predicated region
        $region125: #{tpu_custom_call.1} parent=123 // pred_check
          %p2998 = pneg %p629
        $region126: #{tpu_custom_call.1} parent=123 // pred_check_branch
          %3000 = sbr.rel (%p2998) target = $region128
        $region127: #{tpu_custom_call.1} parent=123 // pred_region
          %3002 = vsyncadd %s2989, 0
          %s3003 = smul.addr %s45, 4
          %s3004 = smul.addr %s3003, 8
          %s3005 = scalar_lea.hbm %s26, %s3004
          %s3006 = sshll.u32 %s2992, 4
          %s3007 = int_to_ptr.vmem [resolvable:$true] %s3006
          %s3008 = sshll.u32 %s3005, 4
          %s3009 = int_to_ptr.hbm [resolvable:$true] %s3008
          %3014 = dma.vmem_to_hbm [thread:$0]  %s3007, 512, %s3009, %s2989, 128, 128, 8
        $region128: #{tpu_custom_call.1} parent=123 // pred_fallthru
          _
        // Predicated region
        $region129: #{tpu_custom_call.1} parent=123 // pred_check
          %p3015 = pneg %p655
        $region130: #{tpu_custom_call.1} parent=123 // pred_check_branch
          %3017 = sbr.rel (%p3015) target = $region132
        $region131: #{tpu_custom_call.1} parent=123 // pred_region
          %3019 = vsyncadd %s2994, 0
          %s3020 = smul.addr %s45, 4
          %s3021 = scalar_lea.hbm %s27, %s3020
          %s3023 = sshll.u32 %s2997, 4
          %s3024 = int_to_ptr.vmem [resolvable:$true] %s3023
          %s3025 = sshll.u32 %s3021, 4
          %s3026 = int_to_ptr.hbm [resolvable:$true] %s3025
          %3028 = dma.vmem_to_hbm [thread:$0]  %s3024, 64, %s3026, %s2994
        $region132: #{tpu_custom_call.1} parent=123 // pred_fallthru
          _
      $region124: #{tpu_custom_call.1} parent=5 // pred_fallthru
        _
      %p3029 = scmp.le.s32.totalorder 2, %s40
      // Predicated region
      $region133: #{tpu_custom_call.1} parent=5 // pred_check
        %p3030 = pneg %p3029
      $region134: #{tpu_custom_call.1} parent=5 // pred_check_branch
        %3032 = sbr.rel (%p3030) target = $region136
      $region135: #{tpu_custom_call.1} parent=5 // pred_region
        %s3033 = ssub.s32 %s40, 2
        // Predicated region
        $region137: #{tpu_custom_call.1} parent=135 // pred_check
          %p3034 = pneg %p635
        $region138: #{tpu_custom_call.1} parent=135 // pred_check_branch
          %3036 = sbr.rel (%p3034) target = $region140
        $region139: #{tpu_custom_call.1} parent=135 // pred_region
          %s3037 = sand.u32 %s620, 1
          %s3038 = scalar_lea.sflag [#allocation3], %s3037
          %s3039 = sand.u32 %s620, 1
          %s3040 = smul.addr %s3039, 32
          %s3041 = scalar_lea.vmem [#allocation2], %s3040
          %3043 = dma.done %s3038, 512
        $region140: #{tpu_custom_call.1} parent=135 // pred_fallthru
          _
        // Predicated region
        $region141: #{tpu_custom_call.1} parent=135 // pred_check
          %p3044 = pneg %p661
        $region142: #{tpu_custom_call.1} parent=135 // pred_check_branch
          %3046 = sbr.rel (%p3044) target = $region144
        $region143: #{tpu_custom_call.1} parent=135 // pred_region
          %s3047 = sand.u32 %s646, 1
          %s3048 = scalar_lea.sflag [#allocation5], %s3047
          %s3049 = sand.u32 %s646, 1
          %s3050 = smul.addr %s3049, 4
          %s3051 = scalar_lea.vmem [#allocation4], %s3050
          %3053 = dma.done %s3048, 64
        $region144: #{tpu_custom_call.1} parent=135 // pred_fallthru
          _
      $region136: #{tpu_custom_call.1} parent=5 // pred_fallthru
        _
    $region6: #{tpu_custom_call.1} parent=1 // loop_footer
      %s44 = sadd.s32 1, %s40
    $region7: #{tpu_custom_call.1} parent=1 // loop_footer_branch
      %39 = sbr.rel target = $region3
    $region8: #{tpu_custom_call.1} parent=1 // loop_exit
      _
    %3054 = vsyncpa [#allocation3], 1
    %s3055 = scalar_lea.sflag [#allocation3], 1
    %3056 = vsyncpa %s3055, 1
    %3057 = vsyncpa [#allocation5], 1
    %s3058 = scalar_lea.sflag [#allocation5], 1
    %3059 = vsyncpa %s3058, 1

</llo_original>
